<compile_context>
chip_gen: v5e
topology: v5e:2x2
jax: 0.10.0
libtpu: 0.0.40
codegen_flags: <defaults>
</compile_context>

<pallas_src>
import math
import functools

import jax
import jax.numpy as jnp
from jax import lax
from jax.experimental import pallas as pl
from jax.experimental.pallas import tpu as pltpu

# ----------------------------- config ---------------------------------------
VOCAB = 128
HIDDEN = 64
N_HEAD = 2
HEAD_DIM = HIDDEN // N_HEAD
N_LAYER = 2
MAX_POS = 64
B = 2
SEQ = 8        # new tokens
PAST = 4       # cached tokens
EPS = 1e-5
NEG_INF = -1e9


# ----------------------------- in-kernel helpers -----------------------------
def _layer_norm(x, g, b):
    mu = jnp.mean(x, axis=-1, keepdims=True)
    var = jnp.mean(jnp.square(x - mu), axis=-1, keepdims=True)
    return (x - mu) * lax.rsqrt(var + EPS) * g + b


def _gelu_new(x):
    # GPT-2 "gelu_new" (tanh approximation); tanh runs on the EUP.
    return 0.5 * x * (1.0 + jnp.tanh(0.7978845608028654 *
                                     (x + 0.044715 * x * x * x)))


# ----------------------------- fused kernel ----------------------------------
def _gpt2_fused_kernel(ids_ref, pos_ref, mask_ref,
                       wte_ref, wpe_ref, wte_t_ref, lnf_ref,
                       vecs_ref, attn_b_ref, fc_b_ref,
                       attn_w_ref, proj_w_ref, fc_w_ref, mproj_w_ref,
                       past_ref,
                       logits_ref, pres_ref, *, n_head):
    """Whole GPT-2 forward, batch folded into sublanes; everything in VMEM."""
    f32 = jnp.float32
    bf16 = jnp.bfloat16
    dn_t = (((1,), (1,)), ((), ()))       # contract last dims: A @ B.T, no transpose

    n_layer = attn_w_ref.shape[0]
    vocab, hidden = wte_ref.shape
    max_pos = wpe_ref.shape[0]
    bs = ids_ref.shape[0]                 # B * S rows (batch folded into sublanes)
    batch = mask_ref.shape[0]
    s_len = bs // batch
    p_len = past_ref.shape[1]
    t_len = pres_ref.shape[1]
    head_dim = hidden // n_head
    scale = 1.0 / math.sqrt(head_dim)

    # ---- token + position embeddings: one-hot @ table (one-hots exact in bf16) --
    ids = ids_ref[...]                                                    # (BS,1)
    pos = pos_ref[...]                                                    # (BS,1)
    tok_oh = (lax.broadcasted_iota(jnp.int32, (bs, vocab), 1) == ids).astype(bf16)
    pos_oh = (lax.broadcasted_iota(jnp.int32, (bs, max_pos), 1) == pos).astype(bf16)
    h = (jnp.dot(tok_oh, wte_ref[...], preferred_element_type=f32)
         + jnp.dot(pos_oh, wpe_ref[...], preferred_element_type=f32))     # (BS,H) f32

    # ---- additive attention bias (causal shared, padding per batch row) --------
    q_pos = p_len + lax.broadcasted_iota(jnp.int32, (s_len, t_len), 0)
    k_pos = lax.broadcasted_iota(jnp.int32, (s_len, t_len), 1)
    causal_bias = jnp.where(k_pos <= q_pos, 0.0, NEG_INF)                 # (S,T)
    pad_bias = (1.0 - mask_ref[...].astype(f32)) * NEG_INF                # (B,T)

    # past KV slab, packed lane-dense: (B, P, n_layer*2*H), per layer [K | V].
    past_all = past_ref[...].astype(f32)

    new_kv_parts = []                      # [k_all_l0, v_all_l0, k_all_l1, ...]
    for l in range(n_layer):
        g1 = vecs_ref[l, 0:1, :]
        b1 = vecs_ref[l, 1:2, :]
        g2 = vecs_ref[l, 2:3, :]
        b2 = vecs_ref[l, 3:4, :]
        cproj_b = vecs_ref[l, 4:5, :]
        mproj_b = vecs_ref[l, 5:6, :]

        # ------------------------- attention block --------------------------
        x_ln = _layer_norm(h, g1, b1)                                      # (BS,H)
        qkv = (jnp.dot(x_ln.astype(bf16), attn_w_ref[l],
                       preferred_element_type=f32)
               + attn_b_ref[l])                                            # (BS,3H)
        q_all = qkv[:, :hidden] * scale                                    # (BS,H)
        k_all = qkv[:, hidden:2 * hidden]                                  # (BS,H)
        v_all = qkv[:, 2 * hidden:]                                        # (BS,H)
        new_kv_parts.append(k_all)
        new_kv_parts.append(v_all)

        ctx_rows = []
        for b in range(batch):                                 # tiny unrolled loop
            bias_b = causal_bias + pad_bias[b:b + 1, :]                    # (S,T)
            r0 = b * s_len
            ctx_heads = []
            for hh in range(n_head):
                c0 = hh * head_dim
                base = l * 2 * hidden
                q = q_all[r0:r0 + s_len, c0:c0 + head_dim]                 # (S,D)
                k_new = k_all[r0:r0 + s_len, c0:c0 + head_dim]             # (S,D)
                v_new = v_all[r0:r0 + s_len, c0:c0 + head_dim]             # (S,D)
                pk = past_all[b, :, base + c0:base + c0 + head_dim]        # (P,D)
                pv = past_all[b, :, base + hidden + c0:
                              base + hidden + c0 + head_dim]               # (P,D)
                k_full = jnp.concatenate([pk, k_new], axis=0)              # (T,D)
                v_full = jnp.concatenate([pv, v_new], axis=0)              # (T,D)

                s = lax.dot_general(q.astype(bf16), k_full.astype(bf16), dn_t,
                                    preferred_element_type=f32)            # (S,T)
                s = s + bias_b
                m = jnp.max(s, axis=-1, keepdims=True)
                p = jnp.exp(s - m)
                p = p / jnp.sum(p, axis=-1, keepdims=True)                 # exact
                ctx_heads.append(jnp.dot(p.astype(bf16), v_full.astype(bf16),
                                         preferred_element_type=f32))      # (S,D)
            ctx_rows.append(jnp.concatenate(ctx_heads, axis=-1))           # (S,H)
        ctx_all = jnp.concatenate(ctx_rows, axis=0)                        # (BS,H)

        attn_out = (jnp.dot(ctx_all.astype(bf16), proj_w_ref[l],
                            preferred_element_type=f32) + cproj_b)
        h = h + attn_out

        # --------------------------- MLP block -------------------------------
        x_ln2 = _layer_norm(h, g2, b2)
        y = jnp.dot(x_ln2.astype(bf16), fc_w_ref[l],
                    preferred_element_type=f32) + fc_b_ref[l]              # (BS,4H)
        y = _gelu_new(y)
        h = h + (jnp.dot(y.astype(bf16), mproj_w_ref[l],
                         preferred_element_type=f32) + mproj_b)

    # ---- final LN + tied LM head (pre-transposed wte; plain dense matmul) -----
    xf = _layer_norm(h, lnf_ref[0:1, :], lnf_ref[1:2, :])
    logits_ref[...] = jnp.dot(xf.astype(bf16), wte_t_ref[...],
                              preferred_element_type=f32)                  # (BS,V)

    # ---- present = [past ; new], single lane-dense (B, T, n_layer*2*H) store ---
    new_packed = jnp.concatenate(new_kv_parts, axis=-1)                    # (BS, 2*H*L)
    new_packed = new_packed.reshape(batch, s_len, n_layer * 2 * hidden)    # tile-aligned
    pres_ref[...] = jnp.concatenate([past_all, new_packed], axis=1)        # (B,T,2HL)


# ----------------------------- parameters ------------------------------------
def init_params(key):
    """Deterministic synthetic GPT-2 weights in the layouts the kernel wants:
    fused c_attn, bf16 matmul weights, packed per-layer vectors, wte.T copy."""
    def nrm(k, shape, scale=0.02):
        return scale * jax.random.normal(k, shape, dtype=jnp.float32)

    bf16 = jnp.bfloat16
    keys = iter(jax.random.split(key, 2 + 8 * N_LAYER))
    wte = nrm(next(keys), (VOCAB, HIDDEN))
    wpe = nrm(next(keys), (MAX_POS, HIDDEN))

    attn_w, attn_b, proj_w, fc_w, fc_b, mproj_w, vecs = [], [], [], [], [], [], []
    for _ in range(N_LAYER):
        c_attn_w = nrm(next(keys), (HIDDEN, 3 * HIDDEN))     # HF Conv1D layout
        c_attn_b = nrm(next(keys), (3 * HIDDEN,))
        c_proj_w = nrm(next(keys), (HIDDEN, HIDDEN))
        c_proj_b = nrm(next(keys), (HIDDEN,))
        fcw = nrm(next(keys), (HIDDEN, 4 * HIDDEN))
        fcb = nrm(next(keys), (4 * HIDDEN,))
        mpw = nrm(next(keys), (4 * HIDDEN, HIDDEN))
        mpb = nrm(next(keys), (HIDDEN,))

        attn_w.append(c_attn_w)
        attn_b.append(c_attn_b.reshape(1, 3 * HIDDEN))
        proj_w.append(c_proj_w)
        fc_w.append(fcw)
        fc_b.append(fcb.reshape(1, 4 * HIDDEN))
        mproj_w.append(mpw)
        # packed per-layer vectors: ln1 g/b, ln2 g/b, c_proj bias, mlp-proj bias
        vecs.append(jnp.stack([jnp.ones((HIDDEN,), jnp.float32),
                               jnp.zeros((HIDDEN,), jnp.float32),
                               jnp.ones((HIDDEN,), jnp.float32),
                               jnp.zeros((HIDDEN,), jnp.float32),
                               c_proj_b, mpb], axis=0))

    stk = lambda xs: jnp.stack(xs, axis=0)
    return {
        "wte": wte.astype(bf16), "wpe": wpe.astype(bf16),
        "wte_t": wte.T.astype(bf16),                      # (H,V): no in-kernel transpose
        "lnf": jnp.stack([jnp.ones((HIDDEN,), jnp.float32),
                          jnp.zeros((HIDDEN,), jnp.float32)], axis=0),
        "vecs": stk(vecs),                                # (L,6,H)  f32
        "attn_w": stk(attn_w).astype(bf16),               # (L,H,3H)
        "attn_b": stk(attn_b),                            # (L,1,3H) f32
        "proj_w": stk(proj_w).astype(bf16),               # (L,H,H)
        "fc_w": stk(fc_w).astype(bf16),                   # (L,H,4H)
        "fc_b": stk(fc_b),                                # (L,1,4H) f32
        "mproj_w": stk(mproj_w).astype(bf16),             # (L,4H,H)
    }


# ----------------------------- forward wrapper --------------------------------
def model_wrapper_forward(params, input_ids, attention_mask, position_ids,
                          *past_key_values):
    """Mirrors ModelWrapper.forward: returns (logits, k0, v0, k1, v1, ...)."""
    n_layer = params["attn_w"].shape[0]
    vocab, hidden = params["wte"].shape
    bsz, s_len = input_ids.shape
    n_head = past_key_values[0].shape[1]
    head_dim = past_key_values[0].shape[3]
    p_len = past_key_values[0].shape[2]
    t_len = p_len + s_len

    # Pack past KV into ONE lane-dense slab (B, P, n_layer*2*H); per layer [K|V],
    # heads contiguous along lanes.  TODO(synk): keep the cache in this packed
    # layout across decode steps so this pack/unpack disappears entirely.
    past_slab = jnp.concatenate(
        [jnp.transpose(p, (0, 2, 1, 3)).reshape(bsz, p_len, n_head * head_dim)
         for p in past_key_values], axis=-1)

    ids2 = input_ids.astype(jnp.int32).reshape(bsz * s_len, 1)
    pos2 = position_ids.astype(jnp.int32).reshape(bsz * s_len, 1)
    mask2 = attention_mask.astype(jnp.int32)                 # (B, T)

    args = (ids2, pos2, mask2,
            params["wte"], params["wpe"], params["wte_t"], params["lnf"],
            params["vecs"], params["attn_b"], params["fc_b"],
            params["attn_w"], params["proj_w"], params["fc_w"], params["mproj_w"],
            past_slab)

    out_shape = (
        jax.ShapeDtypeStruct((bsz * s_len, vocab), jnp.float32),           # logits
        jax.ShapeDtypeStruct((bsz, t_len, n_layer * 2 * hidden), jnp.float32),  # KV slab
    )

    # Rough cost model so XLA schedules the pack/unpack around the custom call.
    h2 = hidden * hidden
    flops = (2 * bsz * s_len * (vocab * hidden + h2
                                + n_layer * (3 * h2 + h2 + 8 * h2)
                                + hidden * vocab)
             + 4 * bsz * n_layer * n_head * s_len * t_len * head_dim)
    transcendentals = n_layer * bsz * s_len * (n_head * t_len + 4 * hidden)
    bytes_accessed = (sum(int(a.size) * a.dtype.itemsize for a in args)
                      + sum(int(math.prod(s.shape)) * 4 for s in out_shape))

    vmem = pl.BlockSpec(memory_space=pltpu.MemorySpace.VMEM)
    logits_flat, pres_slab = pl.pallas_call(
        functools.partial(_gpt2_fused_kernel, n_head=n_head),
        in_specs=[vmem] * len(args),
        out_specs=(vmem, vmem),
        out_shape=out_shape,
        cost_estimate=pl.CostEstimate(flops=flops,
                                      transcendentals=transcendentals,
                                      bytes_accessed=bytes_accessed),
    )(*args)

    logits = logits_flat.reshape(bsz, s_len, vocab)

    # Unpack the lane-dense present slab back to the ModelWrapper contract.
    outs = [logits]
    for l in range(n_layer):
        base = l * 2 * hidden
        k = pres_slab[:, :, base:base + hidden]
        v = pres_slab[:, :, base + hidden:base + 2 * hidden]
        outs.append(k.reshape(bsz, t_len, n_head, head_dim).transpose(0, 2, 1, 3))
        outs.append(v.reshape(bsz, t_len, n_head, head_dim).transpose(0, 2, 1, 3))
    return tuple(outs)


# ----------------------------- driver ----------------------------------------
if __name__ == "__main__":
    key = jax.random.PRNGKey(0)
    k_param, k_ids, k_kv = jax.random.split(key, 3)

    params = init_params(k_param)

    input_ids = jax.random.randint(k_ids, (B, SEQ), 0, VOCAB, dtype=jnp.int32)
    attention_mask = jnp.ones((B, PAST + SEQ), dtype=jnp.int32)
    position_ids = jnp.broadcast_to(PAST + jnp.arange(SEQ, dtype=jnp.int32),
                                    (B, SEQ))

    kv_keys = jax.random.split(k_kv, 2 * N_LAYER)
    past_key_values = tuple(
        0.02 * jax.random.normal(kv_keys[i], (B, N_HEAD, PAST, HEAD_DIM),
                                 dtype=jnp.float32)
        for i in range(2 * N_LAYER)
    )

    fwd = jax.jit(functools.partial(model_wrapper_forward, params))
    outputs = fwd(input_ids, attention_mask, position_ids, *past_key_values)
    outputs = jax.block_until_ready(outputs)

    logits = outputs[0]
    assert logits.shape == (B, SEQ, VOCAB)
    assert len(outputs) == 1 + 2 * N_LAYER
    for t in outputs[1:]:
        assert t.shape == (B, N_HEAD, PAST + SEQ, HEAD_DIM)
    # present must carry the past slice through unchanged
    for i, p in enumerate(past_key_values):
        assert bool(jnp.allclose(outputs[1 + i][:, :, :PAST, :], p, atol=1e-6))
    assert all(bool(jnp.all(jnp.isfinite(t))) for t in outputs)

    print("KERNEL_OK")
</pallas_src>

<mosaic_0001>
module attributes {stable_mosaic.version = 11 : i64} {
  func.func @_gpt2_fused_kernel(%arg0: memref<16x1xi32, #tpu.memory_space<vmem>>, %arg1: memref<16x1xi32, #tpu.memory_space<vmem>>, %arg2: memref<2x12xi32, #tpu.memory_space<vmem>>, %arg3: memref<128x64xbf16, #tpu.memory_space<vmem>>, %arg4: memref<64x64xbf16, #tpu.memory_space<vmem>>, %arg5: memref<64x128xbf16, #tpu.memory_space<vmem>>, %arg6: memref<2x64xf32, #tpu.memory_space<vmem>>, %arg7: memref<2x6x64xf32, #tpu.memory_space<vmem>>, %arg8: memref<2x1x192xf32, #tpu.memory_space<vmem>>, %arg9: memref<2x1x256xf32, #tpu.memory_space<vmem>>, %arg10: memref<2x64x192xbf16, #tpu.memory_space<vmem>>, %arg11: memref<2x64x64xbf16, #tpu.memory_space<vmem>>, %arg12: memref<2x64x256xbf16, #tpu.memory_space<vmem>>, %arg13: memref<2x256x64xbf16, #tpu.memory_space<vmem>>, %arg14: memref<2x4x256xf32, #tpu.memory_space<vmem>>, %arg15: memref<16x128xf32, #tpu.memory_space<vmem>>, %arg16: memref<2x12x256xf32, #tpu.memory_space<vmem>>) attributes {dimension_semantics = [], scalar_prefetch = 0 : i64, scratch_operands = 0 : i64, tpu.core_type = #tpu.core_type<tc>} {
    %c0 = arith.constant 0 : index
    %c0_0 = arith.constant 0 : index
    %0 = vector.load %arg0[%c0, %c0_0] : memref<16x1xi32, #tpu.memory_space<vmem>>, vector<16x1xi32>
    %c0_1 = arith.constant 0 : index
    %c0_2 = arith.constant 0 : index
    %1 = vector.load %arg1[%c0_1, %c0_2] : memref<16x1xi32, #tpu.memory_space<vmem>>, vector<16x1xi32>
    %2 = tpu.iota {dimensions = array<i32: 1>} : vector<16x128xi32>
    %3 = vector.broadcast %0 : vector<16x1xi32> to vector<16x128xi32>
    %4 = arith.cmpi eq, %2, %3 : vector<16x128xi32>
    %5 = arith.extui %4 : vector<16x128xi1> to vector<16x128xi32>
    %6 = arith.sitofp %5 : vector<16x128xi32> to vector<16x128xf32>
    %7 = arith.truncf %6 : vector<16x128xf32> to vector<16x128xbf16>
    %8 = tpu.iota {dimensions = array<i32: 1>} : vector<16x64xi32>
    %9 = vector.broadcast %1 : vector<16x1xi32> to vector<16x64xi32>
    %10 = arith.cmpi eq, %8, %9 : vector<16x64xi32>
    %11 = arith.extui %10 : vector<16x64xi1> to vector<16x64xi32>
    %12 = arith.sitofp %11 : vector<16x64xi32> to vector<16x64xf32>
    %13 = arith.truncf %12 : vector<16x64xf32> to vector<16x64xbf16>
    %c0_3 = arith.constant 0 : index
    %c0_4 = arith.constant 0 : index
    %14 = vector.load %arg3[%c0_3, %c0_4] : memref<128x64xbf16, #tpu.memory_space<vmem>>, vector<128x64xbf16>
    %cst = arith.constant dense<0.000000e+00> : vector<16x64xf32>
    %15 = tpu.matmul %7, %14, %cst {dimension_numbers = #tpu.dot_dimension_numbers<[1], [0], [0], [1], [0, 0, 1, 1], [], []>} : vector<16x128xbf16>, vector<128x64xbf16>, vector<16x64xf32> -> vector<16x64xf32>
    %c0_5 = arith.constant 0 : index
    %c0_6 = arith.constant 0 : index
    %16 = vector.load %arg4[%c0_5, %c0_6] : memref<64x64xbf16, #tpu.memory_space<vmem>>, vector<64x64xbf16>
    %cst_7 = arith.constant dense<0.000000e+00> : vector<16x64xf32>
    %17 = tpu.matmul %13, %16, %cst_7 {dimension_numbers = #tpu.dot_dimension_numbers<[1], [0], [0], [1], [0, 0, 1, 1], [], []>} : vector<16x64xbf16>, vector<64x64xbf16>, vector<16x64xf32> -> vector<16x64xf32>
    %18 = arith.addf %15, %17 : vector<16x64xf32>
    %19 = tpu.iota {dimensions = array<i32: 0>} : vector<8x12xi32>
    %c4_i32 = arith.constant 4 : i32
    %20 = vector.broadcast %c4_i32 : i32 to vector<8x12xi32>
    %21 = arith.addi %20, %19 : vector<8x12xi32>
    %22 = tpu.iota {dimensions = array<i32: 1>} : vector<8x12xi32>
    %23 = arith.cmpi sle, %22, %21 : vector<8x12xi32>
    %cst_8 = arith.constant 0.000000e+00 : f32
    %cst_9 = arith.constant -1.000000e+09 : f32
    %24 = vector.broadcast %cst_8 : f32 to vector<8x12xf32>
    %25 = vector.broadcast %cst_9 : f32 to vector<8x12xf32>
    %26 = arith.select %23, %24, %25 : vector<8x12xi1>, vector<8x12xf32>
    %c0_10 = arith.constant 0 : index
    %c0_11 = arith.constant 0 : index
    %27 = vector.load %arg2[%c0_10, %c0_11] : memref<2x12xi32, #tpu.memory_space<vmem>>, vector<2x12xi32>
    %28 = arith.sitofp %27 : vector<2x12xi32> to vector<2x12xf32>
    %cst_12 = arith.constant 1.000000e+00 : f32
    %29 = vector.broadcast %cst_12 : f32 to vector<2x12xf32>
    %30 = arith.subf %29, %28 : vector<2x12xf32>
    %cst_13 = arith.constant -1.000000e+09 : f32
    %31 = vector.broadcast %cst_13 : f32 to vector<2x12xf32>
    %32 = arith.mulf %30, %31 : vector<2x12xf32>
    %c0_14 = arith.constant 0 : index
    %c0_15 = arith.constant 0 : index
    %c0_16 = arith.constant 0 : index
    %33 = vector.load %arg14[%c0_14, %c0_15, %c0_16] : memref<2x4x256xf32, #tpu.memory_space<vmem>>, vector<2x4x256xf32>
    %c0_17 = arith.constant 0 : index
    %c0_18 = arith.constant 0 : index
    %c0_19 = arith.constant 0 : index
    %34 = vector.load %arg7[%c0_17, %c0_18, %c0_19] : memref<2x6x64xf32, #tpu.memory_space<vmem>>, vector<1x1x64xf32>
    %35 = vector.shape_cast %34 : vector<1x1x64xf32> to vector<1x64xf32>
    %c0_20 = arith.constant 0 : index
    %c1 = arith.constant 1 : index
    %c0_21 = arith.constant 0 : index
    %36 = vector.load %arg7[%c0_20, %c1, %c0_21] : memref<2x6x64xf32, #tpu.memory_space<vmem>>, vector<1x1x64xf32>
    %37 = vector.shape_cast %36 : vector<1x1x64xf32> to vector<1x64xf32>
    %c0_22 = arith.constant 0 : index
    %c2 = arith.constant 2 : index
    %c0_23 = arith.constant 0 : index
    %38 = vector.load %arg7[%c0_22, %c2, %c0_23] : memref<2x6x64xf32, #tpu.memory_space<vmem>>, vector<1x1x64xf32>
    %39 = vector.shape_cast %38 : vector<1x1x64xf32> to vector<1x64xf32>
    %c0_24 = arith.constant 0 : index
    %c3 = arith.constant 3 : index
    %c0_25 = arith.constant 0 : index
    %40 = vector.load %arg7[%c0_24, %c3, %c0_25] : memref<2x6x64xf32, #tpu.memory_space<vmem>>, vector<1x1x64xf32>
    %41 = vector.shape_cast %40 : vector<1x1x64xf32> to vector<1x64xf32>
    %c0_26 = arith.constant 0 : index
    %c4 = arith.constant 4 : index
    %c0_27 = arith.constant 0 : index
    %42 = vector.load %arg7[%c0_26, %c4, %c0_27] : memref<2x6x64xf32, #tpu.memory_space<vmem>>, vector<1x1x64xf32>
    %43 = vector.shape_cast %42 : vector<1x1x64xf32> to vector<1x64xf32>
    %c0_28 = arith.constant 0 : index
    %c5 = arith.constant 5 : index
    %c0_29 = arith.constant 0 : index
    %44 = vector.load %arg7[%c0_28, %c5, %c0_29] : memref<2x6x64xf32, #tpu.memory_space<vmem>>, vector<1x1x64xf32>
    %45 = vector.shape_cast %44 : vector<1x1x64xf32> to vector<1x64xf32>
    %cst_30 = arith.constant dense<0.000000e+00> : vector<16xf32>
    %46 = vector.multi_reduction <add>, %18, %cst_30 [1] : vector<16x64xf32> to vector<16xf32>
    %47 = vector.shape_cast %46 : vector<16xf32> to vector<16x1xf32>
    %cst_31 = arith.constant 6.400000e+01 : f32
    %48 = vector.broadcast %cst_31 : f32 to vector<16x1xf32>
    %49 = arith.divf %47, %48 : vector<16x1xf32>
    %50 = vector.broadcast %49 : vector<16x1xf32> to vector<16x64xf32>
    %51 = arith.subf %18, %50 : vector<16x64xf32>
    %52 = arith.mulf %51, %51 : vector<16x64xf32>
    %cst_32 = arith.constant dense<0.000000e+00> : vector<16xf32>
    %53 = vector.multi_reduction <add>, %52, %cst_32 [1] : vector<16x64xf32> to vector<16xf32>
    %54 = vector.shape_cast %53 : vector<16xf32> to vector<16x1xf32>
    %cst_33 = arith.constant 6.400000e+01 : f32
    %55 = vector.broadcast %cst_33 : f32 to vector<16x1xf32>
    %56 = arith.divf %54, %55 : vector<16x1xf32>
    %57 = vector.broadcast %49 : vector<16x1xf32> to vector<16x64xf32>
    %58 = arith.subf %18, %57 : vector<16x64xf32>
    %cst_34 = arith.constant 9.99999974E-6 : f32
    %59 = vector.broadcast %cst_34 : f32 to vector<16x1xf32>
    %60 = arith.addf %56, %59 : vector<16x1xf32>
    %61 = math.rsqrt %60 : vector<16x1xf32>
    %62 = vector.broadcast %61 : vector<16x1xf32> to vector<16x64xf32>
    %63 = arith.mulf %58, %62 : vector<16x64xf32>
    %64 = vector.broadcast %35 : vector<1x64xf32> to vector<16x64xf32>
    %65 = arith.mulf %63, %64 : vector<16x64xf32>
    %66 = vector.broadcast %37 : vector<1x64xf32> to vector<16x64xf32>
    %67 = arith.addf %65, %66 : vector<16x64xf32>
    %68 = arith.truncf %67 : vector<16x64xf32> to vector<16x64xbf16>
    %c0_35 = arith.constant 0 : index
    %c0_36 = arith.constant 0 : index
    %c0_37 = arith.constant 0 : index
    %69 = vector.load %arg10[%c0_35, %c0_36, %c0_37] : memref<2x64x192xbf16, #tpu.memory_space<vmem>>, vector<1x64x192xbf16>
    %70 = vector.shape_cast %69 : vector<1x64x192xbf16> to vector<64x192xbf16>
    %cst_38 = arith.constant dense<0.000000e+00> : vector<16x192xf32>
    %71 = tpu.matmul %68, %70, %cst_38 {dimension_numbers = #tpu.dot_dimension_numbers<[1], [0], [0], [1], [0, 0, 1, 1], [], []>} : vector<16x64xbf16>, vector<64x192xbf16>, vector<16x192xf32> -> vector<16x192xf32>
    %c0_39 = arith.constant 0 : index
    %c0_40 = arith.constant 0 : index
    %c0_41 = arith.constant 0 : index
    %72 = vector.load %arg8[%c0_39, %c0_40, %c0_41] : memref<2x1x192xf32, #tpu.memory_space<vmem>>, vector<1x1x192xf32>
    %73 = vector.shape_cast %72 : vector<1x1x192xf32> to vector<1x192xf32>
    %74 = vector.broadcast %73 : vector<1x192xf32> to vector<16x192xf32>
    %75 = arith.addf %71, %74 : vector<16x192xf32>
    %76 = vector.extract_strided_slice %75 {offsets = [0, 0], sizes = [16, 64], strides = [1, 1]} : vector<16x192xf32> to vector<16x64xf32>
    %cst_42 = arith.constant 0.176776692 : f32
    %77 = vector.broadcast %cst_42 : f32 to vector<16x64xf32>
    %78 = arith.mulf %76, %77 : vector<16x64xf32>
    %79 = vector.extract_strided_slice %75 {offsets = [0, 64], sizes = [16, 64], strides = [1, 1]} : vector<16x192xf32> to vector<16x64xf32>
    %80 = vector.extract_strided_slice %75 {offsets = [0, 128], sizes = [16, 64], strides = [1, 1]} : vector<16x192xf32> to vector<16x64xf32>
    %81 = vector.extract_strided_slice %32 {offsets = [0, 0], sizes = [1, 12], strides = [1, 1]} : vector<2x12xf32> to vector<1x12xf32>
    %82 = vector.broadcast %81 : vector<1x12xf32> to vector<8x12xf32>
    %83 = arith.addf %26, %82 : vector<8x12xf32>
    %84 = vector.extract_strided_slice %78 {offsets = [0, 0], sizes = [8, 32], strides = [1, 1]} : vector<16x64xf32> to vector<8x32xf32>
    %85 = vector.extract_strided_slice %79 {offsets = [0, 0], sizes = [8, 32], strides = [1, 1]} : vector<16x64xf32> to vector<8x32xf32>
    %86 = vector.extract_strided_slice %80 {offsets = [0, 0], sizes = [8, 32], strides = [1, 1]} : vector<16x64xf32> to vector<8x32xf32>
    %87 = vector.extract_strided_slice %33 {offsets = [0, 0, 0], sizes = [1, 4, 32], strides = [1, 1, 1]} : vector<2x4x256xf32> to vector<1x4x32xf32>
    %88 = vector.shape_cast %87 : vector<1x4x32xf32> to vector<4x32xf32>
    %89 = vector.extract_strided_slice %33 {offsets = [0, 0, 64], sizes = [1, 4, 32], strides = [1, 1, 1]} : vector<2x4x256xf32> to vector<1x4x32xf32>
    %90 = vector.shape_cast %89 : vector<1x4x32xf32> to vector<4x32xf32>
    %91 = tpu.concatenate %88, %85 in 0 : vector<4x32xf32>, vector<8x32xf32> -> vector<12x32xf32>
    %92 = tpu.concatenate %90, %86 in 0 : vector<4x32xf32>, vector<8x32xf32> -> vector<12x32xf32>
    %93 = arith.truncf %84 : vector<8x32xf32> to vector<8x32xbf16>
    %94 = arith.truncf %91 : vector<12x32xf32> to vector<12x32xbf16>
    %cst_43 = arith.constant dense<0.000000e+00> : vector<8x12xf32>
    %95 = tpu.matmul %93, %94, %cst_43 {dimension_numbers = #tpu.dot_dimension_numbers<[1], [1], [0], [0], [0, 0, 1, 0], [], []>} : vector<8x32xbf16>, vector<12x32xbf16>, vector<8x12xf32> -> vector<8x12xf32>
    %96 = arith.addf %95, %83 : vector<8x12xf32>
    %cst_44 = arith.constant dense<0xFF800000> : vector<8xf32>
    %97 = vector.multi_reduction <maximumf>, %96, %cst_44 [1] : vector<8x12xf32> to vector<8xf32>
    %98 = vector.shape_cast %97 : vector<8xf32> to vector<8x1xf32>
    %99 = vector.broadcast %98 : vector<8x1xf32> to vector<8x12xf32>
    %100 = arith.subf %96, %99 : vector<8x12xf32>
    %101 = math.exp %100 : vector<8x12xf32>
    %cst_45 = arith.constant dense<0.000000e+00> : vector<8xf32>
    %102 = vector.multi_reduction <add>, %101, %cst_45 [1] : vector<8x12xf32> to vector<8xf32>
    %103 = vector.shape_cast %102 : vector<8xf32> to vector<8x1xf32>
    %104 = vector.broadcast %103 : vector<8x1xf32> to vector<8x12xf32>
    %105 = arith.divf %101, %104 : vector<8x12xf32>
    %106 = arith.truncf %105 : vector<8x12xf32> to vector<8x12xbf16>
    %107 = arith.truncf %92 : vector<12x32xf32> to vector<12x32xbf16>
    %cst_46 = arith.constant dense<0.000000e+00> : vector<8x32xf32>
    %108 = tpu.matmul %106, %107, %cst_46 {dimension_numbers = #tpu.dot_dimension_numbers<[1], [0], [0], [1], [0, 0, 1, 1], [], []>} : vector<8x12xbf16>, vector<12x32xbf16>, vector<8x32xf32> -> vector<8x32xf32>
    %109 = vector.extract_strided_slice %78 {offsets = [0, 32], sizes = [8, 32], strides = [1, 1]} : vector<16x64xf32> to vector<8x32xf32>
    %110 = vector.extract_strided_slice %79 {offsets = [0, 32], sizes = [8, 32], strides = [1, 1]} : vector<16x64xf32> to vector<8x32xf32>
    %111 = vector.extract_strided_slice %80 {offsets = [0, 32], sizes = [8, 32], strides = [1, 1]} : vector<16x64xf32> to vector<8x32xf32>
    %112 = vector.extract_strided_slice %33 {offsets = [0, 0, 32], sizes = [1, 4, 32], strides = [1, 1, 1]} : vector<2x4x256xf32> to vector<1x4x32xf32>
    %113 = vector.shape_cast %112 : vector<1x4x32xf32> to vector<4x32xf32>
    %114 = vector.extract_strided_slice %33 {offsets = [0, 0, 96], sizes = [1, 4, 32], strides = [1, 1, 1]} : vector<2x4x256xf32> to vector<1x4x32xf32>
    %115 = vector.shape_cast %114 : vector<1x4x32xf32> to vector<4x32xf32>
    %116 = tpu.concatenate %113, %110 in 0 : vector<4x32xf32>, vector<8x32xf32> -> vector<12x32xf32>
    %117 = tpu.concatenate %115, %111 in 0 : vector<4x32xf32>, vector<8x32xf32> -> vector<12x32xf32>
    %118 = arith.truncf %109 : vector<8x32xf32> to vector<8x32xbf16>
    %119 = arith.truncf %116 : vector<12x32xf32> to vector<12x32xbf16>
    %cst_47 = arith.constant dense<0.000000e+00> : vector<8x12xf32>
    %120 = tpu.matmul %118, %119, %cst_47 {dimension_numbers = #tpu.dot_dimension_numbers<[1], [1], [0], [0], [0, 0, 1, 0], [], []>} : vector<8x32xbf16>, vector<12x32xbf16>, vector<8x12xf32> -> vector<8x12xf32>
    %121 = arith.addf %120, %83 : vector<8x12xf32>
    %cst_48 = arith.constant dense<0xFF800000> : vector<8xf32>
    %122 = vector.multi_reduction <maximumf>, %121, %cst_48 [1] : vector<8x12xf32> to vector<8xf32>
    %123 = vector.shape_cast %122 : vector<8xf32> to vector<8x1xf32>
    %124 = vector.broadcast %123 : vector<8x1xf32> to vector<8x12xf32>
    %125 = arith.subf %121, %124 : vector<8x12xf32>
    %126 = math.exp %125 : vector<8x12xf32>
    %cst_49 = arith.constant dense<0.000000e+00> : vector<8xf32>
    %127 = vector.multi_reduction <add>, %126, %cst_49 [1] : vector<8x12xf32> to vector<8xf32>
    %128 = vector.shape_cast %127 : vector<8xf32> to vector<8x1xf32>
    %129 = vector.broadcast %128 : vector<8x1xf32> to vector<8x12xf32>
    %130 = arith.divf %126, %129 : vector<8x12xf32>
    %131 = arith.truncf %130 : vector<8x12xf32> to vector<8x12xbf16>
    %132 = arith.truncf %117 : vector<12x32xf32> to vector<12x32xbf16>
    %cst_50 = arith.constant dense<0.000000e+00> : vector<8x32xf32>
    %133 = tpu.matmul %131, %132, %cst_50 {dimension_numbers = #tpu.dot_dimension_numbers<[1], [0], [0], [1], [0, 0, 1, 1], [], []>} : vector<8x12xbf16>, vector<12x32xbf16>, vector<8x32xf32> -> vector<8x32xf32>
    %134 = tpu.concatenate %108, %133 in 1 : vector<8x32xf32>, vector<8x32xf32> -> vector<8x64xf32>
    %135 = vector.extract_strided_slice %32 {offsets = [1, 0], sizes = [1, 12], strides = [1, 1]} : vector<2x12xf32> to vector<1x12xf32>
    %136 = vector.broadcast %135 : vector<1x12xf32> to vector<8x12xf32>
    %137 = arith.addf %26, %136 : vector<8x12xf32>
    %138 = vector.extract_strided_slice %78 {offsets = [8, 0], sizes = [8, 32], strides = [1, 1]} : vector<16x64xf32> to vector<8x32xf32>
    %139 = vector.extract_strided_slice %79 {offsets = [8, 0], sizes = [8, 32], strides = [1, 1]} : vector<16x64xf32> to vector<8x32xf32>
    %140 = vector.extract_strided_slice %80 {offsets = [8, 0], sizes = [8, 32], strides = [1, 1]} : vector<16x64xf32> to vector<8x32xf32>
    %141 = vector.extract_strided_slice %33 {offsets = [1, 0, 0], sizes = [1, 4, 32], strides = [1, 1, 1]} : vector<2x4x256xf32> to vector<1x4x32xf32>
    %142 = vector.shape_cast %141 : vector<1x4x32xf32> to vector<4x32xf32>
    %143 = vector.extract_strided_slice %33 {offsets = [1, 0, 64], sizes = [1, 4, 32], strides = [1, 1, 1]} : vector<2x4x256xf32> to vector<1x4x32xf32>
    %144 = vector.shape_cast %143 : vector<1x4x32xf32> to vector<4x32xf32>
    %145 = tpu.concatenate %142, %139 in 0 : vector<4x32xf32>, vector<8x32xf32> -> vector<12x32xf32>
    %146 = tpu.concatenate %144, %140 in 0 : vector<4x32xf32>, vector<8x32xf32> -> vector<12x32xf32>
    %147 = arith.truncf %138 : vector<8x32xf32> to vector<8x32xbf16>
    %148 = arith.truncf %145 : vector<12x32xf32> to vector<12x32xbf16>
    %cst_51 = arith.constant dense<0.000000e+00> : vector<8x12xf32>
    %149 = tpu.matmul %147, %148, %cst_51 {dimension_numbers = #tpu.dot_dimension_numbers<[1], [1], [0], [0], [0, 0, 1, 0], [], []>} : vector<8x32xbf16>, vector<12x32xbf16>, vector<8x12xf32> -> vector<8x12xf32>
    %150 = arith.addf %149, %137 : vector<8x12xf32>
    %cst_52 = arith.constant dense<0xFF800000> : vector<8xf32>
    %151 = vector.multi_reduction <maximumf>, %150, %cst_52 [1] : vector<8x12xf32> to vector<8xf32>
    %152 = vector.shape_cast %151 : vector<8xf32> to vector<8x1xf32>
    %153 = vector.broadcast %152 : vector<8x1xf32> to vector<8x12xf32>
    %154 = arith.subf %150, %153 : vector<8x12xf32>
    %155 = math.exp %154 : vector<8x12xf32>
    %cst_53 = arith.constant dense<0.000000e+00> : vector<8xf32>
    %156 = vector.multi_reduction <add>, %155, %cst_53 [1] : vector<8x12xf32> to vector<8xf32>
    %157 = vector.shape_cast %156 : vector<8xf32> to vector<8x1xf32>
    %158 = vector.broadcast %157 : vector<8x1xf32> to vector<8x12xf32>
    %159 = arith.divf %155, %158 : vector<8x12xf32>
    %160 = arith.truncf %159 : vector<8x12xf32> to vector<8x12xbf16>
    %161 = arith.truncf %146 : vector<12x32xf32> to vector<12x32xbf16>
    %cst_54 = arith.constant dense<0.000000e+00> : vector<8x32xf32>
    %162 = tpu.matmul %160, %161, %cst_54 {dimension_numbers = #tpu.dot_dimension_numbers<[1], [0], [0], [1], [0, 0, 1, 1], [], []>} : vector<8x12xbf16>, vector<12x32xbf16>, vector<8x32xf32> -> vector<8x32xf32>
    %163 = vector.extract_strided_slice %78 {offsets = [8, 32], sizes = [8, 32], strides = [1, 1]} : vector<16x64xf32> to vector<8x32xf32>
    %164 = vector.extract_strided_slice %79 {offsets = [8, 32], sizes = [8, 32], strides = [1, 1]} : vector<16x64xf32> to vector<8x32xf32>
    %165 = vector.extract_strided_slice %80 {offsets = [8, 32], sizes = [8, 32], strides = [1, 1]} : vector<16x64xf32> to vector<8x32xf32>
    %166 = vector.extract_strided_slice %33 {offsets = [1, 0, 32], sizes = [1, 4, 32], strides = [1, 1, 1]} : vector<2x4x256xf32> to vector<1x4x32xf32>
    %167 = vector.shape_cast %166 : vector<1x4x32xf32> to vector<4x32xf32>
    %168 = vector.extract_strided_slice %33 {offsets = [1, 0, 96], sizes = [1, 4, 32], strides = [1, 1, 1]} : vector<2x4x256xf32> to vector<1x4x32xf32>
    %169 = vector.shape_cast %168 : vector<1x4x32xf32> to vector<4x32xf32>
    %170 = tpu.concatenate %167, %164 in 0 : vector<4x32xf32>, vector<8x32xf32> -> vector<12x32xf32>
    %171 = tpu.concatenate %169, %165 in 0 : vector<4x32xf32>, vector<8x32xf32> -> vector<12x32xf32>
    %172 = arith.truncf %163 : vector<8x32xf32> to vector<8x32xbf16>
    %173 = arith.truncf %170 : vector<12x32xf32> to vector<12x32xbf16>
    %cst_55 = arith.constant dense<0.000000e+00> : vector<8x12xf32>
    %174 = tpu.matmul %172, %173, %cst_55 {dimension_numbers = #tpu.dot_dimension_numbers<[1], [1], [0], [0], [0, 0, 1, 0], [], []>} : vector<8x32xbf16>, vector<12x32xbf16>, vector<8x12xf32> -> vector<8x12xf32>
    %175 = arith.addf %174, %137 : vector<8x12xf32>
    %cst_56 = arith.constant dense<0xFF800000> : vector<8xf32>
    %176 = vector.multi_reduction <maximumf>, %175, %cst_56 [1] : vector<8x12xf32> to vector<8xf32>
    %177 = vector.shape_cast %176 : vector<8xf32> to vector<8x1xf32>
    %178 = vector.broadcast %177 : vector<8x1xf32> to vector<8x12xf32>
    %179 = arith.subf %175, %178 : vector<8x12xf32>
    %180 = math.exp %179 : vector<8x12xf32>
    %cst_57 = arith.constant dense<0.000000e+00> : vector<8xf32>
    %181 = vector.multi_reduction <add>, %180, %cst_57 [1] : vector<8x12xf32> to vector<8xf32>
    %182 = vector.shape_cast %181 : vector<8xf32> to vector<8x1xf32>
    %183 = vector.broadcast %182 : vector<8x1xf32> to vector<8x12xf32>
    %184 = arith.divf %180, %183 : vector<8x12xf32>
    %185 = arith.truncf %184 : vector<8x12xf32> to vector<8x12xbf16>
    %186 = arith.truncf %171 : vector<12x32xf32> to vector<12x32xbf16>
    %cst_58 = arith.constant dense<0.000000e+00> : vector<8x32xf32>
    %187 = tpu.matmul %185, %186, %cst_58 {dimension_numbers = #tpu.dot_dimension_numbers<[1], [0], [0], [1], [0, 0, 1, 1], [], []>} : vector<8x12xbf16>, vector<12x32xbf16>, vector<8x32xf32> -> vector<8x32xf32>
    %188 = tpu.concatenate %162, %187 in 1 : vector<8x32xf32>, vector<8x32xf32> -> vector<8x64xf32>
    %189 = tpu.concatenate %134, %188 in 0 : vector<8x64xf32>, vector<8x64xf32> -> vector<16x64xf32>
    %190 = arith.truncf %189 : vector<16x64xf32> to vector<16x64xbf16>
    %c0_59 = arith.constant 0 : index
    %c0_60 = arith.constant 0 : index
    %c0_61 = arith.constant 0 : index
    %191 = vector.load %arg11[%c0_59, %c0_60, %c0_61] : memref<2x64x64xbf16, #tpu.memory_space<vmem>>, vector<1x64x64xbf16>
    %192 = vector.shape_cast %191 : vector<1x64x64xbf16> to vector<64x64xbf16>
    %cst_62 = arith.constant dense<0.000000e+00> : vector<16x64xf32>
    %193 = tpu.matmul %190, %192, %cst_62 {dimension_numbers = #tpu.dot_dimension_numbers<[1], [0], [0], [1], [0, 0, 1, 1], [], []>} : vector<16x64xbf16>, vector<64x64xbf16>, vector<16x64xf32> -> vector<16x64xf32>
    %194 = vector.broadcast %43 : vector<1x64xf32> to vector<16x64xf32>
    %195 = arith.addf %193, %194 : vector<16x64xf32>
    %196 = arith.addf %18, %195 : vector<16x64xf32>
    %cst_63 = arith.constant dense<0.000000e+00> : vector<16xf32>
    %197 = vector.multi_reduction <add>, %196, %cst_63 [1] : vector<16x64xf32> to vector<16xf32>
    %198 = vector.shape_cast %197 : vector<16xf32> to vector<16x1xf32>
    %cst_64 = arith.constant 6.400000e+01 : f32
    %199 = vector.broadcast %cst_64 : f32 to vector<16x1xf32>
    %200 = arith.divf %198, %199 : vector<16x1xf32>
    %201 = vector.broadcast %200 : vector<16x1xf32> to vector<16x64xf32>
    %202 = arith.subf %196, %201 : vector<16x64xf32>
    %203 = arith.mulf %202, %202 : vector<16x64xf32>
    %cst_65 = arith.constant dense<0.000000e+00> : vector<16xf32>
    %204 = vector.multi_reduction <add>, %203, %cst_65 [1] : vector<16x64xf32> to vector<16xf32>
    %205 = vector.shape_cast %204 : vector<16xf32> to vector<16x1xf32>
    %cst_66 = arith.constant 6.400000e+01 : f32
    %206 = vector.broadcast %cst_66 : f32 to vector<16x1xf32>
    %207 = arith.divf %205, %206 : vector<16x1xf32>
    %208 = vector.broadcast %200 : vector<16x1xf32> to vector<16x64xf32>
    %209 = arith.subf %196, %208 : vector<16x64xf32>
    %cst_67 = arith.constant 9.99999974E-6 : f32
    %210 = vector.broadcast %cst_67 : f32 to vector<16x1xf32>
    %211 = arith.addf %207, %210 : vector<16x1xf32>
    %212 = math.rsqrt %211 : vector<16x1xf32>
    %213 = vector.broadcast %212 : vector<16x1xf32> to vector<16x64xf32>
    %214 = arith.mulf %209, %213 : vector<16x64xf32>
    %215 = vector.broadcast %39 : vector<1x64xf32> to vector<16x64xf32>
    %216 = arith.mulf %214, %215 : vector<16x64xf32>
    %217 = vector.broadcast %41 : vector<1x64xf32> to vector<16x64xf32>
    %218 = arith.addf %216, %217 : vector<16x64xf32>
    %219 = arith.truncf %218 : vector<16x64xf32> to vector<16x64xbf16>
    %c0_68 = arith.constant 0 : index
    %c0_69 = arith.constant 0 : index
    %c0_70 = arith.constant 0 : index
    %220 = vector.load %arg12[%c0_68, %c0_69, %c0_70] : memref<2x64x256xbf16, #tpu.memory_space<vmem>>, vector<1x64x256xbf16>
    %221 = vector.shape_cast %220 : vector<1x64x256xbf16> to vector<64x256xbf16>
    %cst_71 = arith.constant dense<0.000000e+00> : vector<16x256xf32>
    %222 = tpu.matmul %219, %221, %cst_71 {dimension_numbers = #tpu.dot_dimension_numbers<[1], [0], [0], [1], [0, 0, 1, 1], [], []>} : vector<16x64xbf16>, vector<64x256xbf16>, vector<16x256xf32> -> vector<16x256xf32>
    %c0_72 = arith.constant 0 : index
    %c0_73 = arith.constant 0 : index
    %c0_74 = arith.constant 0 : index
    %223 = vector.load %arg9[%c0_72, %c0_73, %c0_74] : memref<2x1x256xf32, #tpu.memory_space<vmem>>, vector<1x1x256xf32>
    %224 = vector.shape_cast %223 : vector<1x1x256xf32> to vector<1x256xf32>
    %225 = vector.broadcast %224 : vector<1x256xf32> to vector<16x256xf32>
    %226 = arith.addf %222, %225 : vector<16x256xf32>
    %cst_75 = arith.constant 5.000000e-01 : f32
    %227 = vector.broadcast %cst_75 : f32 to vector<16x256xf32>
    %228 = arith.mulf %227, %226 : vector<16x256xf32>
    %cst_76 = arith.constant 4.471500e-02 : f32
    %229 = vector.broadcast %cst_76 : f32 to vector<16x256xf32>
    %230 = arith.mulf %229, %226 : vector<16x256xf32>
    %231 = arith.mulf %230, %226 : vector<16x256xf32>
    %232 = arith.mulf %231, %226 : vector<16x256xf32>
    %233 = arith.addf %226, %232 : vector<16x256xf32>
    %cst_77 = arith.constant 0.797884583 : f32
    %234 = vector.broadcast %cst_77 : f32 to vector<16x256xf32>
    %235 = arith.mulf %234, %233 : vector<16x256xf32>
    %236 = math.tanh %235 : vector<16x256xf32>
    %cst_78 = arith.constant 1.000000e+00 : f32
    %237 = vector.broadcast %cst_78 : f32 to vector<16x256xf32>
    %238 = arith.addf %237, %236 : vector<16x256xf32>
    %239 = arith.mulf %228, %238 : vector<16x256xf32>
    %240 = arith.truncf %239 : vector<16x256xf32> to vector<16x256xbf16>
    %c0_79 = arith.constant 0 : index
    %c0_80 = arith.constant 0 : index
    %c0_81 = arith.constant 0 : index
    %241 = vector.load %arg13[%c0_79, %c0_80, %c0_81] : memref<2x256x64xbf16, #tpu.memory_space<vmem>>, vector<1x256x64xbf16>
    %242 = vector.shape_cast %241 : vector<1x256x64xbf16> to vector<256x64xbf16>
    %cst_82 = arith.constant dense<0.000000e+00> : vector<16x64xf32>
    %243 = tpu.matmul %240, %242, %cst_82 {dimension_numbers = #tpu.dot_dimension_numbers<[1], [0], [0], [1], [0, 0, 1, 1], [], []>} : vector<16x256xbf16>, vector<256x64xbf16>, vector<16x64xf32> -> vector<16x64xf32>
    %244 = vector.broadcast %45 : vector<1x64xf32> to vector<16x64xf32>
    %245 = arith.addf %243, %244 : vector<16x64xf32>
    %246 = arith.addf %196, %245 : vector<16x64xf32>
    %c1_83 = arith.constant 1 : index
    %c0_84 = arith.constant 0 : index
    %c0_85 = arith.constant 0 : index
    %247 = vector.load %arg7[%c1_83, %c0_84, %c0_85] : memref<2x6x64xf32, #tpu.memory_space<vmem>>, vector<1x1x64xf32>
    %248 = vector.shape_cast %247 : vector<1x1x64xf32> to vector<1x64xf32>
    %c1_86 = arith.constant 1 : index
    %c1_87 = arith.constant 1 : index
    %c0_88 = arith.constant 0 : index
    %249 = vector.load %arg7[%c1_86, %c1_87, %c0_88] : memref<2x6x64xf32, #tpu.memory_space<vmem>>, vector<1x1x64xf32>
    %250 = vector.shape_cast %249 : vector<1x1x64xf32> to vector<1x64xf32>
    %c1_89 = arith.constant 1 : index
    %c2_90 = arith.constant 2 : index
    %c0_91 = arith.constant 0 : index
    %251 = vector.load %arg7[%c1_89, %c2_90, %c0_91] : memref<2x6x64xf32, #tpu.memory_space<vmem>>, vector<1x1x64xf32>
    %252 = vector.shape_cast %251 : vector<1x1x64xf32> to vector<1x64xf32>
    %c1_92 = arith.constant 1 : index
    %c3_93 = arith.constant 3 : index
    %c0_94 = arith.constant 0 : index
    %253 = vector.load %arg7[%c1_92, %c3_93, %c0_94] : memref<2x6x64xf32, #tpu.memory_space<vmem>>, vector<1x1x64xf32>
    %254 = vector.shape_cast %253 : vector<1x1x64xf32> to vector<1x64xf32>
    %c1_95 = arith.constant 1 : index
    %c4_96 = arith.constant 4 : index
    %c0_97 = arith.constant 0 : index
    %255 = vector.load %arg7[%c1_95, %c4_96, %c0_97] : memref<2x6x64xf32, #tpu.memory_space<vmem>>, vector<1x1x64xf32>
    %256 = vector.shape_cast %255 : vector<1x1x64xf32> to vector<1x64xf32>
    %c1_98 = arith.constant 1 : index
    %c5_99 = arith.constant 5 : index
    %c0_100 = arith.constant 0 : index
    %257 = vector.load %arg7[%c1_98, %c5_99, %c0_100] : memref<2x6x64xf32, #tpu.memory_space<vmem>>, vector<1x1x64xf32>
    %258 = vector.shape_cast %257 : vector<1x1x64xf32> to vector<1x64xf32>
    %cst_101 = arith.constant dense<0.000000e+00> : vector<16xf32>
    %259 = vector.multi_reduction <add>, %246, %cst_101 [1] : vector<16x64xf32> to vector<16xf32>
    %260 = vector.shape_cast %259 : vector<16xf32> to vector<16x1xf32>
    %cst_102 = arith.constant 6.400000e+01 : f32
    %261 = vector.broadcast %cst_102 : f32 to vector<16x1xf32>
    %262 = arith.divf %260, %261 : vector<16x1xf32>
    %263 = vector.broadcast %262 : vector<16x1xf32> to vector<16x64xf32>
    %264 = arith.subf %246, %263 : vector<16x64xf32>
    %265 = arith.mulf %264, %264 : vector<16x64xf32>
    %cst_103 = arith.constant dense<0.000000e+00> : vector<16xf32>
    %266 = vector.multi_reduction <add>, %265, %cst_103 [1] : vector<16x64xf32> to vector<16xf32>
    %267 = vector.shape_cast %266 : vector<16xf32> to vector<16x1xf32>
    %cst_104 = arith.constant 6.400000e+01 : f32
    %268 = vector.broadcast %cst_104 : f32 to vector<16x1xf32>
    %269 = arith.divf %267, %268 : vector<16x1xf32>
    %270 = vector.broadcast %262 : vector<16x1xf32> to vector<16x64xf32>
    %271 = arith.subf %246, %270 : vector<16x64xf32>
    %cst_105 = arith.constant 9.99999974E-6 : f32
    %272 = vector.broadcast %cst_105 : f32 to vector<16x1xf32>
    %273 = arith.addf %269, %272 : vector<16x1xf32>
    %274 = math.rsqrt %273 : vector<16x1xf32>
    %275 = vector.broadcast %274 : vector<16x1xf32> to vector<16x64xf32>
    %276 = arith.mulf %271, %275 : vector<16x64xf32>
    %277 = vector.broadcast %248 : vector<1x64xf32> to vector<16x64xf32>
    %278 = arith.mulf %276, %277 : vector<16x64xf32>
    %279 = vector.broadcast %250 : vector<1x64xf32> to vector<16x64xf32>
    %280 = arith.addf %278, %279 : vector<16x64xf32>
    %281 = arith.truncf %280 : vector<16x64xf32> to vector<16x64xbf16>
    %c1_106 = arith.constant 1 : index
    %c0_107 = arith.constant 0 : index
    %c0_108 = arith.constant 0 : index
    %282 = vector.load %arg10[%c1_106, %c0_107, %c0_108] : memref<2x64x192xbf16, #tpu.memory_space<vmem>>, vector<1x64x192xbf16>
    %283 = vector.shape_cast %282 : vector<1x64x192xbf16> to vector<64x192xbf16>
    %cst_109 = arith.constant dense<0.000000e+00> : vector<16x192xf32>
    %284 = tpu.matmul %281, %283, %cst_109 {dimension_numbers = #tpu.dot_dimension_numbers<[1], [0], [0], [1], [0, 0, 1, 1], [], []>} : vector<16x64xbf16>, vector<64x192xbf16>, vector<16x192xf32> -> vector<16x192xf32>
    %c1_110 = arith.constant 1 : index
    %c0_111 = arith.constant 0 : index
    %c0_112 = arith.constant 0 : index
    %285 = vector.load %arg8[%c1_110, %c0_111, %c0_112] : memref<2x1x192xf32, #tpu.memory_space<vmem>>, vector<1x1x192xf32>
    %286 = vector.shape_cast %285 : vector<1x1x192xf32> to vector<1x192xf32>
    %287 = vector.broadcast %286 : vector<1x192xf32> to vector<16x192xf32>
    %288 = arith.addf %284, %287 : vector<16x192xf32>
    %289 = vector.extract_strided_slice %288 {offsets = [0, 0], sizes = [16, 64], strides = [1, 1]} : vector<16x192xf32> to vector<16x64xf32>
    %cst_113 = arith.constant 0.176776692 : f32
    %290 = vector.broadcast %cst_113 : f32 to vector<16x64xf32>
    %291 = arith.mulf %289, %290 : vector<16x64xf32>
    %292 = vector.extract_strided_slice %288 {offsets = [0, 64], sizes = [16, 64], strides = [1, 1]} : vector<16x192xf32> to vector<16x64xf32>
    %293 = vector.extract_strided_slice %288 {offsets = [0, 128], sizes = [16, 64], strides = [1, 1]} : vector<16x192xf32> to vector<16x64xf32>
    %294 = vector.extract_strided_slice %32 {offsets = [0, 0], sizes = [1, 12], strides = [1, 1]} : vector<2x12xf32> to vector<1x12xf32>
    %295 = vector.broadcast %294 : vector<1x12xf32> to vector<8x12xf32>
    %296 = arith.addf %26, %295 : vector<8x12xf32>
    %297 = vector.extract_strided_slice %291 {offsets = [0, 0], sizes = [8, 32], strides = [1, 1]} : vector<16x64xf32> to vector<8x32xf32>
    %298 = vector.extract_strided_slice %292 {offsets = [0, 0], sizes = [8, 32], strides = [1, 1]} : vector<16x64xf32> to vector<8x32xf32>
    %299 = vector.extract_strided_slice %293 {offsets = [0, 0], sizes = [8, 32], strides = [1, 1]} : vector<16x64xf32> to vector<8x32xf32>
    %300 = vector.extract_strided_slice %33 {offsets = [0, 0, 128], sizes = [1, 4, 32], strides = [1, 1, 1]} : vector<2x4x256xf32> to vector<1x4x32xf32>
    %301 = vector.shape_cast %300 : vector<1x4x32xf32> to vector<4x32xf32>
    %302 = vector.extract_strided_slice %33 {offsets = [0, 0, 192], sizes = [1, 4, 32], strides = [1, 1, 1]} : vector<2x4x256xf32> to vector<1x4x32xf32>
    %303 = vector.shape_cast %302 : vector<1x4x32xf32> to vector<4x32xf32>
    %304 = tpu.concatenate %301, %298 in 0 : vector<4x32xf32>, vector<8x32xf32> -> vector<12x32xf32>
    %305 = tpu.concatenate %303, %299 in 0 : vector<4x32xf32>, vector<8x32xf32> -> vector<12x32xf32>
    %306 = arith.truncf %297 : vector<8x32xf32> to vector<8x32xbf16>
    %307 = arith.truncf %304 : vector<12x32xf32> to vector<12x32xbf16>
    %cst_114 = arith.constant dense<0.000000e+00> : vector<8x12xf32>
    %308 = tpu.matmul %306, %307, %cst_114 {dimension_numbers = #tpu.dot_dimension_numbers<[1], [1], [0], [0], [0, 0, 1, 0], [], []>} : vector<8x32xbf16>, vector<12x32xbf16>, vector<8x12xf32> -> vector<8x12xf32>
    %309 = arith.addf %308, %296 : vector<8x12xf32>
    %cst_115 = arith.constant dense<0xFF800000> : vector<8xf32>
    %310 = vector.multi_reduction <maximumf>, %309, %cst_115 [1] : vector<8x12xf32> to vector<8xf32>
    %311 = vector.shape_cast %310 : vector<8xf32> to vector<8x1xf32>
    %312 = vector.broadcast %311 : vector<8x1xf32> to vector<8x12xf32>
    %313 = arith.subf %309, %312 : vector<8x12xf32>
    %314 = math.exp %313 : vector<8x12xf32>
    %cst_116 = arith.constant dense<0.000000e+00> : vector<8xf32>
    %315 = vector.multi_reduction <add>, %314, %cst_116 [1] : vector<8x12xf32> to vector<8xf32>
    %316 = vector.shape_cast %315 : vector<8xf32> to vector<8x1xf32>
    %317 = vector.broadcast %316 : vector<8x1xf32> to vector<8x12xf32>
    %318 = arith.divf %314, %317 : vector<8x12xf32>
    %319 = arith.truncf %318 : vector<8x12xf32> to vector<8x12xbf16>
    %320 = arith.truncf %305 : vector<12x32xf32> to vector<12x32xbf16>
    %cst_117 = arith.constant dense<0.000000e+00> : vector<8x32xf32>
    %321 = tpu.matmul %319, %320, %cst_117 {dimension_numbers = #tpu.dot_dimension_numbers<[1], [0], [0], [1], [0, 0, 1, 1], [], []>} : vector<8x12xbf16>, vector<12x32xbf16>, vector<8x32xf32> -> vector<8x32xf32>
    %322 = vector.extract_strided_slice %291 {offsets = [0, 32], sizes = [8, 32], strides = [1, 1]} : vector<16x64xf32> to vector<8x32xf32>
    %323 = vector.extract_strided_slice %292 {offsets = [0, 32], sizes = [8, 32], strides = [1, 1]} : vector<16x64xf32> to vector<8x32xf32>
    %324 = vector.extract_strided_slice %293 {offsets = [0, 32], sizes = [8, 32], strides = [1, 1]} : vector<16x64xf32> to vector<8x32xf32>
    %325 = vector.extract_strided_slice %33 {offsets = [0, 0, 160], sizes = [1, 4, 32], strides = [1, 1, 1]} : vector<2x4x256xf32> to vector<1x4x32xf32>
    %326 = vector.shape_cast %325 : vector<1x4x32xf32> to vector<4x32xf32>
    %327 = vector.extract_strided_slice %33 {offsets = [0, 0, 224], sizes = [1, 4, 32], strides = [1, 1, 1]} : vector<2x4x256xf32> to vector<1x4x32xf32>
    %328 = vector.shape_cast %327 : vector<1x4x32xf32> to vector<4x32xf32>
    %329 = tpu.concatenate %326, %323 in 0 : vector<4x32xf32>, vector<8x32xf32> -> vector<12x32xf32>
    %330 = tpu.concatenate %328, %324 in 0 : vector<4x32xf32>, vector<8x32xf32> -> vector<12x32xf32>
    %331 = arith.truncf %322 : vector<8x32xf32> to vector<8x32xbf16>
    %332 = arith.truncf %329 : vector<12x32xf32> to vector<12x32xbf16>
    %cst_118 = arith.constant dense<0.000000e+00> : vector<8x12xf32>
    %333 = tpu.matmul %331, %332, %cst_118 {dimension_numbers = #tpu.dot_dimension_numbers<[1], [1], [0], [0], [0, 0, 1, 0], [], []>} : vector<8x32xbf16>, vector<12x32xbf16>, vector<8x12xf32> -> vector<8x12xf32>
    %334 = arith.addf %333, %296 : vector<8x12xf32>
    %cst_119 = arith.constant dense<0xFF800000> : vector<8xf32>
    %335 = vector.multi_reduction <maximumf>, %334, %cst_119 [1] : vector<8x12xf32> to vector<8xf32>
    %336 = vector.shape_cast %335 : vector<8xf32> to vector<8x1xf32>
    %337 = vector.broadcast %336 : vector<8x1xf32> to vector<8x12xf32>
    %338 = arith.subf %334, %337 : vector<8x12xf32>
    %339 = math.exp %338 : vector<8x12xf32>
    %cst_120 = arith.constant dense<0.000000e+00> : vector<8xf32>
    %340 = vector.multi_reduction <add>, %339, %cst_120 [1] : vector<8x12xf32> to vector<8xf32>
    %341 = vector.shape_cast %340 : vector<8xf32> to vector<8x1xf32>
    %342 = vector.broadcast %341 : vector<8x1xf32> to vector<8x12xf32>
    %343 = arith.divf %339, %342 : vector<8x12xf32>
    %344 = arith.truncf %343 : vector<8x12xf32> to vector<8x12xbf16>
    %345 = arith.truncf %330 : vector<12x32xf32> to vector<12x32xbf16>
    %cst_121 = arith.constant dense<0.000000e+00> : vector<8x32xf32>
    %346 = tpu.matmul %344, %345, %cst_121 {dimension_numbers = #tpu.dot_dimension_numbers<[1], [0], [0], [1], [0, 0, 1, 1], [], []>} : vector<8x12xbf16>, vector<12x32xbf16>, vector<8x32xf32> -> vector<8x32xf32>
    %347 = tpu.concatenate %321, %346 in 1 : vector<8x32xf32>, vector<8x32xf32> -> vector<8x64xf32>
    %348 = vector.extract_strided_slice %32 {offsets = [1, 0], sizes = [1, 12], strides = [1, 1]} : vector<2x12xf32> to vector<1x12xf32>
    %349 = vector.broadcast %348 : vector<1x12xf32> to vector<8x12xf32>
    %350 = arith.addf %26, %349 : vector<8x12xf32>
    %351 = vector.extract_strided_slice %291 {offsets = [8, 0], sizes = [8, 32], strides = [1, 1]} : vector<16x64xf32> to vector<8x32xf32>
    %352 = vector.extract_strided_slice %292 {offsets = [8, 0], sizes = [8, 32], strides = [1, 1]} : vector<16x64xf32> to vector<8x32xf32>
    %353 = vector.extract_strided_slice %293 {offsets = [8, 0], sizes = [8, 32], strides = [1, 1]} : vector<16x64xf32> to vector<8x32xf32>
    %354 = vector.extract_strided_slice %33 {offsets = [1, 0, 128], sizes = [1, 4, 32], strides = [1, 1, 1]} : vector<2x4x256xf32> to vector<1x4x32xf32>
    %355 = vector.shape_cast %354 : vector<1x4x32xf32> to vector<4x32xf32>
    %356 = vector.extract_strided_slice %33 {offsets = [1, 0, 192], sizes = [1, 4, 32], strides = [1, 1, 1]} : vector<2x4x256xf32> to vector<1x4x32xf32>
    %357 = vector.shape_cast %356 : vector<1x4x32xf32> to vector<4x32xf32>
    %358 = tpu.concatenate %355, %352 in 0 : vector<4x32xf32>, vector<8x32xf32> -> vector<12x32xf32>
    %359 = tpu.concatenate %357, %353 in 0 : vector<4x32xf32>, vector<8x32xf32> -> vector<12x32xf32>
    %360 = arith.truncf %351 : vector<8x32xf32> to vector<8x32xbf16>
    %361 = arith.truncf %358 : vector<12x32xf32> to vector<12x32xbf16>
    %cst_122 = arith.constant dense<0.000000e+00> : vector<8x12xf32>
    %362 = tpu.matmul %360, %361, %cst_122 {dimension_numbers = #tpu.dot_dimension_numbers<[1], [1], [0], [0], [0, 0, 1, 0], [], []>} : vector<8x32xbf16>, vector<12x32xbf16>, vector<8x12xf32> -> vector<8x12xf32>
    %363 = arith.addf %362, %350 : vector<8x12xf32>
    %cst_123 = arith.constant dense<0xFF800000> : vector<8xf32>
    %364 = vector.multi_reduction <maximumf>, %363, %cst_123 [1] : vector<8x12xf32> to vector<8xf32>
    %365 = vector.shape_cast %364 : vector<8xf32> to vector<8x1xf32>
    %366 = vector.broadcast %365 : vector<8x1xf32> to vector<8x12xf32>
    %367 = arith.subf %363, %366 : vector<8x12xf32>
    %368 = math.exp %367 : vector<8x12xf32>
    %cst_124 = arith.constant dense<0.000000e+00> : vector<8xf32>
    %369 = vector.multi_reduction <add>, %368, %cst_124 [1] : vector<8x12xf32> to vector<8xf32>
    %370 = vector.shape_cast %369 : vector<8xf32> to vector<8x1xf32>
    %371 = vector.broadcast %370 : vector<8x1xf32> to vector<8x12xf32>
    %372 = arith.divf %368, %371 : vector<8x12xf32>
    %373 = arith.truncf %372 : vector<8x12xf32> to vector<8x12xbf16>
    %374 = arith.truncf %359 : vector<12x32xf32> to vector<12x32xbf16>
    %cst_125 = arith.constant dense<0.000000e+00> : vector<8x32xf32>
    %375 = tpu.matmul %373, %374, %cst_125 {dimension_numbers = #tpu.dot_dimension_numbers<[1], [0], [0], [1], [0, 0, 1, 1], [], []>} : vector<8x12xbf16>, vector<12x32xbf16>, vector<8x32xf32> -> vector<8x32xf32>
    %376 = vector.extract_strided_slice %291 {offsets = [8, 32], sizes = [8, 32], strides = [1, 1]} : vector<16x64xf32> to vector<8x32xf32>
    %377 = vector.extract_strided_slice %292 {offsets = [8, 32], sizes = [8, 32], strides = [1, 1]} : vector<16x64xf32> to vector<8x32xf32>
    %378 = vector.extract_strided_slice %293 {offsets = [8, 32], sizes = [8, 32], strides = [1, 1]} : vector<16x64xf32> to vector<8x32xf32>
    %379 = vector.extract_strided_slice %33 {offsets = [1, 0, 160], sizes = [1, 4, 32], strides = [1, 1, 1]} : vector<2x4x256xf32> to vector<1x4x32xf32>
    %380 = vector.shape_cast %379 : vector<1x4x32xf32> to vector<4x32xf32>
    %381 = vector.extract_strided_slice %33 {offsets = [1, 0, 224], sizes = [1, 4, 32], strides = [1, 1, 1]} : vector<2x4x256xf32> to vector<1x4x32xf32>
    %382 = vector.shape_cast %381 : vector<1x4x32xf32> to vector<4x32xf32>
    %383 = tpu.concatenate %380, %377 in 0 : vector<4x32xf32>, vector<8x32xf32> -> vector<12x32xf32>
    %384 = tpu.concatenate %382, %378 in 0 : vector<4x32xf32>, vector<8x32xf32> -> vector<12x32xf32>
    %385 = arith.truncf %376 : vector<8x32xf32> to vector<8x32xbf16>
    %386 = arith.truncf %383 : vector<12x32xf32> to vector<12x32xbf16>
    %cst_126 = arith.constant dense<0.000000e+00> : vector<8x12xf32>
    %387 = tpu.matmul %385, %386, %cst_126 {dimension_numbers = #tpu.dot_dimension_numbers<[1], [1], [0], [0], [0, 0, 1, 0], [], []>} : vector<8x32xbf16>, vector<12x32xbf16>, vector<8x12xf32> -> vector<8x12xf32>
    %388 = arith.addf %387, %350 : vector<8x12xf32>
    %cst_127 = arith.constant dense<0xFF800000> : vector<8xf32>
    %389 = vector.multi_reduction <maximumf>, %388, %cst_127 [1] : vector<8x12xf32> to vector<8xf32>
    %390 = vector.shape_cast %389 : vector<8xf32> to vector<8x1xf32>
    %391 = vector.broadcast %390 : vector<8x1xf32> to vector<8x12xf32>
    %392 = arith.subf %388, %391 : vector<8x12xf32>
    %393 = math.exp %392 : vector<8x12xf32>
    %cst_128 = arith.constant dense<0.000000e+00> : vector<8xf32>
    %394 = vector.multi_reduction <add>, %393, %cst_128 [1] : vector<8x12xf32> to vector<8xf32>
    %395 = vector.shape_cast %394 : vector<8xf32> to vector<8x1xf32>
    %396 = vector.broadcast %395 : vector<8x1xf32> to vector<8x12xf32>
    %397 = arith.divf %393, %396 : vector<8x12xf32>
    %398 = arith.truncf %397 : vector<8x12xf32> to vector<8x12xbf16>
    %399 = arith.truncf %384 : vector<12x32xf32> to vector<12x32xbf16>
    %cst_129 = arith.constant dense<0.000000e+00> : vector<8x32xf32>
    %400 = tpu.matmul %398, %399, %cst_129 {dimension_numbers = #tpu.dot_dimension_numbers<[1], [0], [0], [1], [0, 0, 1, 1], [], []>} : vector<8x12xbf16>, vector<12x32xbf16>, vector<8x32xf32> -> vector<8x32xf32>
    %401 = tpu.concatenate %375, %400 in 1 : vector<8x32xf32>, vector<8x32xf32> -> vector<8x64xf32>
    %402 = tpu.concatenate %347, %401 in 0 : vector<8x64xf32>, vector<8x64xf32> -> vector<16x64xf32>
    %403 = arith.truncf %402 : vector<16x64xf32> to vector<16x64xbf16>
    %c1_130 = arith.constant 1 : index
    %c0_131 = arith.constant 0 : index
    %c0_132 = arith.constant 0 : index
    %404 = vector.load %arg11[%c1_130, %c0_131, %c0_132] : memref<2x64x64xbf16, #tpu.memory_space<vmem>>, vector<1x64x64xbf16>
    %405 = vector.shape_cast %404 : vector<1x64x64xbf16> to vector<64x64xbf16>
    %cst_133 = arith.constant dense<0.000000e+00> : vector<16x64xf32>
    %406 = tpu.matmul %403, %405, %cst_133 {dimension_numbers = #tpu.dot_dimension_numbers<[1], [0], [0], [1], [0, 0, 1, 1], [], []>} : vector<16x64xbf16>, vector<64x64xbf16>, vector<16x64xf32> -> vector<16x64xf32>
    %407 = vector.broadcast %256 : vector<1x64xf32> to vector<16x64xf32>
    %408 = arith.addf %406, %407 : vector<16x64xf32>
    %409 = arith.addf %246, %408 : vector<16x64xf32>
    %cst_134 = arith.constant dense<0.000000e+00> : vector<16xf32>
    %410 = vector.multi_reduction <add>, %409, %cst_134 [1] : vector<16x64xf32> to vector<16xf32>
    %411 = vector.shape_cast %410 : vector<16xf32> to vector<16x1xf32>
    %cst_135 = arith.constant 6.400000e+01 : f32
    %412 = vector.broadcast %cst_135 : f32 to vector<16x1xf32>
    %413 = arith.divf %411, %412 : vector<16x1xf32>
    %414 = vector.broadcast %413 : vector<16x1xf32> to vector<16x64xf32>
    %415 = arith.subf %409, %414 : vector<16x64xf32>
    %416 = arith.mulf %415, %415 : vector<16x64xf32>
    %cst_136 = arith.constant dense<0.000000e+00> : vector<16xf32>
    %417 = vector.multi_reduction <add>, %416, %cst_136 [1] : vector<16x64xf32> to vector<16xf32>
    %418 = vector.shape_cast %417 : vector<16xf32> to vector<16x1xf32>
    %cst_137 = arith.constant 6.400000e+01 : f32
    %419 = vector.broadcast %cst_137 : f32 to vector<16x1xf32>
    %420 = arith.divf %418, %419 : vector<16x1xf32>
    %421 = vector.broadcast %413 : vector<16x1xf32> to vector<16x64xf32>
    %422 = arith.subf %409, %421 : vector<16x64xf32>
    %cst_138 = arith.constant 9.99999974E-6 : f32
    %423 = vector.broadcast %cst_138 : f32 to vector<16x1xf32>
    %424 = arith.addf %420, %423 : vector<16x1xf32>
    %425 = math.rsqrt %424 : vector<16x1xf32>
    %426 = vector.broadcast %425 : vector<16x1xf32> to vector<16x64xf32>
    %427 = arith.mulf %422, %426 : vector<16x64xf32>
    %428 = vector.broadcast %252 : vector<1x64xf32> to vector<16x64xf32>
    %429 = arith.mulf %427, %428 : vector<16x64xf32>
    %430 = vector.broadcast %254 : vector<1x64xf32> to vector<16x64xf32>
    %431 = arith.addf %429, %430 : vector<16x64xf32>
    %432 = arith.truncf %431 : vector<16x64xf32> to vector<16x64xbf16>
    %c1_139 = arith.constant 1 : index
    %c0_140 = arith.constant 0 : index
    %c0_141 = arith.constant 0 : index
    %433 = vector.load %arg12[%c1_139, %c0_140, %c0_141] : memref<2x64x256xbf16, #tpu.memory_space<vmem>>, vector<1x64x256xbf16>
    %434 = vector.shape_cast %433 : vector<1x64x256xbf16> to vector<64x256xbf16>
    %cst_142 = arith.constant dense<0.000000e+00> : vector<16x256xf32>
    %435 = tpu.matmul %432, %434, %cst_142 {dimension_numbers = #tpu.dot_dimension_numbers<[1], [0], [0], [1], [0, 0, 1, 1], [], []>} : vector<16x64xbf16>, vector<64x256xbf16>, vector<16x256xf32> -> vector<16x256xf32>
    %c1_143 = arith.constant 1 : index
    %c0_144 = arith.constant 0 : index
    %c0_145 = arith.constant 0 : index
    %436 = vector.load %arg9[%c1_143, %c0_144, %c0_145] : memref<2x1x256xf32, #tpu.memory_space<vmem>>, vector<1x1x256xf32>
    %437 = vector.shape_cast %436 : vector<1x1x256xf32> to vector<1x256xf32>
    %438 = vector.broadcast %437 : vector<1x256xf32> to vector<16x256xf32>
    %439 = arith.addf %435, %438 : vector<16x256xf32>
    %cst_146 = arith.constant 5.000000e-01 : f32
    %440 = vector.broadcast %cst_146 : f32 to vector<16x256xf32>
    %441 = arith.mulf %440, %439 : vector<16x256xf32>
    %cst_147 = arith.constant 4.471500e-02 : f32
    %442 = vector.broadcast %cst_147 : f32 to vector<16x256xf32>
    %443 = arith.mulf %442, %439 : vector<16x256xf32>
    %444 = arith.mulf %443, %439 : vector<16x256xf32>
    %445 = arith.mulf %444, %439 : vector<16x256xf32>
    %446 = arith.addf %439, %445 : vector<16x256xf32>
    %cst_148 = arith.constant 0.797884583 : f32
    %447 = vector.broadcast %cst_148 : f32 to vector<16x256xf32>
    %448 = arith.mulf %447, %446 : vector<16x256xf32>
    %449 = math.tanh %448 : vector<16x256xf32>
    %cst_149 = arith.constant 1.000000e+00 : f32
    %450 = vector.broadcast %cst_149 : f32 to vector<16x256xf32>
    %451 = arith.addf %450, %449 : vector<16x256xf32>
    %452 = arith.mulf %441, %451 : vector<16x256xf32>
    %453 = arith.truncf %452 : vector<16x256xf32> to vector<16x256xbf16>
    %c1_150 = arith.constant 1 : index
    %c0_151 = arith.constant 0 : index
    %c0_152 = arith.constant 0 : index
    %454 = vector.load %arg13[%c1_150, %c0_151, %c0_152] : memref<2x256x64xbf16, #tpu.memory_space<vmem>>, vector<1x256x64xbf16>
    %455 = vector.shape_cast %454 : vector<1x256x64xbf16> to vector<256x64xbf16>
    %cst_153 = arith.constant dense<0.000000e+00> : vector<16x64xf32>
    %456 = tpu.matmul %453, %455, %cst_153 {dimension_numbers = #tpu.dot_dimension_numbers<[1], [0], [0], [1], [0, 0, 1, 1], [], []>} : vector<16x256xbf16>, vector<256x64xbf16>, vector<16x64xf32> -> vector<16x64xf32>
    %457 = vector.broadcast %258 : vector<1x64xf32> to vector<16x64xf32>
    %458 = arith.addf %456, %457 : vector<16x64xf32>
    %459 = arith.addf %409, %458 : vector<16x64xf32>
    %c0_154 = arith.constant 0 : index
    %c0_155 = arith.constant 0 : index
    %460 = vector.load %arg6[%c0_154, %c0_155] : memref<2x64xf32, #tpu.memory_space<vmem>>, vector<1x64xf32>
    %c1_156 = arith.constant 1 : index
    %c0_157 = arith.constant 0 : index
    %461 = vector.load %arg6[%c1_156, %c0_157] : memref<2x64xf32, #tpu.memory_space<vmem>>, vector<1x64xf32>
    %cst_158 = arith.constant dense<0.000000e+00> : vector<16xf32>
    %462 = vector.multi_reduction <add>, %459, %cst_158 [1] : vector<16x64xf32> to vector<16xf32>
    %463 = vector.shape_cast %462 : vector<16xf32> to vector<16x1xf32>
    %cst_159 = arith.constant 6.400000e+01 : f32
    %464 = vector.broadcast %cst_159 : f32 to vector<16x1xf32>
    %465 = arith.divf %463, %464 : vector<16x1xf32>
    %466 = vector.broadcast %465 : vector<16x1xf32> to vector<16x64xf32>
    %467 = arith.subf %459, %466 : vector<16x64xf32>
    %468 = arith.mulf %467, %467 : vector<16x64xf32>
    %cst_160 = arith.constant dense<0.000000e+00> : vector<16xf32>
    %469 = vector.multi_reduction <add>, %468, %cst_160 [1] : vector<16x64xf32> to vector<16xf32>
    %470 = vector.shape_cast %469 : vector<16xf32> to vector<16x1xf32>
    %cst_161 = arith.constant 6.400000e+01 : f32
    %471 = vector.broadcast %cst_161 : f32 to vector<16x1xf32>
    %472 = arith.divf %470, %471 : vector<16x1xf32>
    %473 = vector.broadcast %465 : vector<16x1xf32> to vector<16x64xf32>
    %474 = arith.subf %459, %473 : vector<16x64xf32>
    %cst_162 = arith.constant 9.99999974E-6 : f32
    %475 = vector.broadcast %cst_162 : f32 to vector<16x1xf32>
    %476 = arith.addf %472, %475 : vector<16x1xf32>
    %477 = math.rsqrt %476 : vector<16x1xf32>
    %478 = vector.broadcast %477 : vector<16x1xf32> to vector<16x64xf32>
    %479 = arith.mulf %474, %478 : vector<16x64xf32>
    %480 = vector.broadcast %460 : vector<1x64xf32> to vector<16x64xf32>
    %481 = arith.mulf %479, %480 : vector<16x64xf32>
    %482 = vector.broadcast %461 : vector<1x64xf32> to vector<16x64xf32>
    %483 = arith.addf %481, %482 : vector<16x64xf32>
    %484 = arith.truncf %483 : vector<16x64xf32> to vector<16x64xbf16>
    %c0_163 = arith.constant 0 : index
    %c0_164 = arith.constant 0 : index
    %485 = vector.load %arg5[%c0_163, %c0_164] : memref<64x128xbf16, #tpu.memory_space<vmem>>, vector<64x128xbf16>
    %cst_165 = arith.constant dense<0.000000e+00> : vector<16x128xf32>
    %486 = tpu.matmul %484, %485, %cst_165 {dimension_numbers = #tpu.dot_dimension_numbers<[1], [0], [0], [1], [0, 0, 1, 1], [], []>} : vector<16x64xbf16>, vector<64x128xbf16>, vector<16x128xf32> -> vector<16x128xf32>
    %c0_166 = arith.constant 0 : index
    %c0_167 = arith.constant 0 : index
    %487 = vector.load %arg15[%c0_166, %c0_167] : memref<16x128xf32, #tpu.memory_space<vmem>>, vector<16x128xf32>
    tpu.vector_store %arg15[%c0_166, %c0_167], %486 {strides = array<i32>} : memref<16x128xf32, #tpu.memory_space<vmem>>, vector<16x128xf32>,
    %488 = tpu.concatenate %79, %80, %292, %293 in 1 : vector<16x64xf32>, vector<16x64xf32>, vector<16x64xf32>, vector<16x64xf32> -> vector<16x256xf32>
    %489 = vector.shape_cast %488 : vector<16x256xf32> to vector<2x8x256xf32>
    %490 = tpu.concatenate %33, %489 in 1 : vector<2x4x256xf32>, vector<2x8x256xf32> -> vector<2x12x256xf32>
    %c0_168 = arith.constant 0 : index
    %c0_169 = arith.constant 0 : index
    %c0_170 = arith.constant 0 : index
    %491 = vector.load %arg16[%c0_168, %c0_169, %c0_170] : memref<2x12x256xf32, #tpu.memory_space<vmem>>, vector<2x12x256xf32>
    tpu.vector_store %arg16[%c0_168, %c0_169, %c0_170], %490 {strides = array<i32>} : memref<2x12x256xf32, #tpu.memory_space<vmem>>, vector<2x12x256xf32>,
    return
  }
}

</mosaic_0001>

<llo_original>
// kernel: model_wrapper_forward.1
$region0: #{model_wrapper_forward.1}
  #allocation0 [shape = 'u32[]', space=smem, size = 0x4, offset = 0x4, fixed_abs, tag = 'smem constant byte address 0x4 - core index']
  #allocation1 [shape = 'u32[72,128]{1,0:T(1,128)}', space=vmem, size = 0x9000, scoped, tag = 'internal scratch']
  %s0 = inlined_call_operand.vmem [shape: s32[16,1], index: 0, kind: input, shape index: {}]
  %s1 = inlined_call_operand.vmem [shape: s32[16,1], index: 1, kind: input, shape index: {}]
  %s2 = inlined_call_operand.hbm [shape: s32[2,12], index: 2, kind: input, shape index: {}]
  %s3 = inlined_call_operand.hbm [shape: bf16[128,64], index: 3, kind: input, shape index: {}]
  %s4 = inlined_call_operand.hbm [shape: bf16[64,64], index: 4, kind: input, shape index: {}]
  %s5 = inlined_call_operand.hbm [shape: bf16[64,128], index: 5, kind: input, shape index: {}]
  %s6 = inlined_call_operand.hbm [shape: f32[2,64], index: 6, kind: input, shape index: {}]
  %s7 = inlined_call_operand.hbm [shape: f32[2,6,64], index: 7, kind: input, shape index: {}]
  %s8 = inlined_call_operand.vmem [shape: f32[2,1,192], index: 8, kind: input, shape index: {}]
  %s9 = inlined_call_operand.vmem [shape: f32[2,1,256], index: 9, kind: input, shape index: {}]
  %s10 = inlined_call_operand.hbm [shape: bf16[2,64,192], index: 10, kind: input, shape index: {}]
  %s11 = inlined_call_operand.vmem [shape: bf16[2,64,64], index: 11, kind: input, shape index: {}]
  %s12 = inlined_call_operand.hbm [shape: bf16[2,64,256], index: 12, kind: input, shape index: {}]
  %s13 = inlined_call_operand.vmem [shape: bf16[2,256,64], index: 13, kind: input, shape index: {}]
  %s14 = inlined_call_operand.vmem [shape: f32[2,4,256], index: 14, kind: input, shape index: {}]
  %s15 = inlined_call_operand.hbm [shape: f32[16,128], index: 15, kind: output, shape index: {0}]
  %s16 = inlined_call_operand.vmem [shape: f32[2,12,256], index: 16, kind: output, shape index: {1}]
  %17 = xla_tuple %s15, %s16
  %s18 = sld [smem:[#allocation0]]
  $region110: #{model_wrapper_forward.1} parent=0
    _
  %s20 = ssub.s32 1, %s18
  %s21 = scalar_select 0, %s20, %s18
  $region1: #{model_wrapper_forward.1} parent=0
    #allocation2 [shape = 'u8[1024]{0}', space=vmem, size = 0x400, scoped, tag = 'input window, operand 2, single buffered']
    #allocation3 [shape = 's32[1]{0}', space=sflag, size = 0x4, scoped, tag = 'scoped memory for model_wrapper_forward.1']
    #allocation4 [shape = 's32[1]{0}', space=sflag, size = 0x4, scoped, tag = 'scoped memory for model_wrapper_forward.1']
    #allocation5 [shape = 'u8[32768]{0}', space=vmem, size = 0x8000, scoped, tag = 'input window, operand 3, single buffered']
    #allocation6 [shape = 's32[1]{0}', space=sflag, size = 0x4, scoped, tag = 'scoped memory for model_wrapper_forward.1']
    #allocation7 [shape = 'u8[16384]{0}', space=vmem, size = 0x4000, scoped, tag = 'input window, operand 4, single buffered']
    #allocation8 [shape = 'u8[16384]{0}', space=vmem, size = 0x4000, scoped, tag = 'input window, operand 5, single buffered']
    #allocation9 [shape = 's32[1]{0}', space=sflag, size = 0x4, scoped, tag = 'scoped memory for model_wrapper_forward.1']
    #allocation10 [shape = 'u8[1024]{0}', space=vmem, size = 0x400, scoped, tag = 'input window, operand 6, single buffered']
    #allocation11 [shape = 'u8[8192]{0}', space=vmem, size = 0x2000, scoped, tag = 'input window, operand 7, single buffered']
    #allocation12 [shape = 's32[1]{0}', space=sflag, size = 0x4, scoped, tag = 'scoped memory for model_wrapper_forward.1']
    #allocation13 [shape = 'u8[65536]{0}', space=vmem, size = 0x10000, scoped, tag = 'input window, operand 10, single buffered']
    #allocation14 [shape = 'u8[65536]{0}', space=vmem, size = 0x10000, scoped, tag = 'input window, operand 12, single buffered']
    #allocation15 [shape = 's32[1]{0}', space=sflag, size = 0x4, scoped, tag = 'scoped memory for model_wrapper_forward.1']
    #allocation16 [shape = 'u8[8192]{0}', space=vmem, size = 0x2000, scoped, tag = 'output window, operand 0, single buffered']
    %22 = vsyncpa [#allocation3], 0
    %23 = vsyncpa [#allocation6], 0
    %24 = vsyncpa [#allocation9], 0
    %25 = vsyncpa [#allocation12], 0
    %26 = vsyncpa [#allocation15], 0
    %27 = vsyncpa [#allocation4], 0
    // Predicated region
    $region2: #{model_wrapper_forward.1} parent=1 // pred_check
      _
    $region3: #{model_wrapper_forward.1} parent=1 // pred_check_branch
      %29 = sbr.rel (0) target = $region5
    $region4: #{model_wrapper_forward.1} parent=1 // pred_region
      _
    $region5: #{model_wrapper_forward.1} parent=1 // pred_fallthru
      _
    // Predicated region
    $region6: #{model_wrapper_forward.1} parent=1 // pred_check
      _
    $region7: #{model_wrapper_forward.1} parent=1 // pred_check_branch
      %31 = sbr.rel (0) target = $region9
    $region8: #{model_wrapper_forward.1} parent=1 // pred_region
      _
    $region9: #{model_wrapper_forward.1} parent=1 // pred_fallthru
      _
    // Predicated region
    $region10: #{model_wrapper_forward.1} parent=1 // pred_check
      _
    $region11: #{model_wrapper_forward.1} parent=1 // pred_check_branch
      %33 = sbr.rel (0) target = $region13
    $region12: #{model_wrapper_forward.1} parent=1 // pred_region
      %35 = vsyncadd [#allocation3], 0
      %s37 = sshll.u32 %s2, 4
      %s38 = int_to_ptr.hbm [resolvable:$true] %s37
      %s39 = sshll.u32 [#allocation2], 4
      %s40 = int_to_ptr.vmem [resolvable:$true] %s39
      %42 = dma.hbm_to_vmem [thread:$0]  %s38, 32, %s40, [#allocation3]
    $region13: #{model_wrapper_forward.1} parent=1 // pred_fallthru
      _
    // Predicated region
    $region14: #{model_wrapper_forward.1} parent=1 // pred_check
      _
    $region15: #{model_wrapper_forward.1} parent=1 // pred_check_branch
      %44 = sbr.rel (0) target = $region17
    $region16: #{model_wrapper_forward.1} parent=1 // pred_region
      %46 = vsyncadd [#allocation6], 0
      %s47 = sshll.u32 %s3, 4
      %s48 = int_to_ptr.hbm [resolvable:$true] %s47
      %s49 = sshll.u32 [#allocation5], 4
      %s50 = int_to_ptr.vmem [resolvable:$true] %s49
      %55 = dma.hbm_to_vmem [thread:$0]  %s48, 1024, %s50, [#allocation6], 64, 64, 4
    $region17: #{model_wrapper_forward.1} parent=1 // pred_fallthru
      _
    // Predicated region
    $region18: #{model_wrapper_forward.1} parent=1 // pred_check
      _
    $region19: #{model_wrapper_forward.1} parent=1 // pred_check_branch
      %57 = sbr.rel (0) target = $region21
    $region20: #{model_wrapper_forward.1} parent=1 // pred_region
      %59 = vsyncadd [#allocation6], 0
      %s60 = sshll.u32 %s4, 4
      %s61 = int_to_ptr.hbm [resolvable:$true] %s60
      %s62 = sshll.u32 [#allocation7], 4
      %s63 = int_to_ptr.vmem [resolvable:$true] %s62
      %68 = dma.hbm_to_vmem [thread:$0]  %s61, 512, %s63, [#allocation6], 64, 64, 4
    $region21: #{model_wrapper_forward.1} parent=1 // pred_fallthru
      _
    // Predicated region
    $region22: #{model_wrapper_forward.1} parent=1 // pred_check
      _
    $region23: #{model_wrapper_forward.1} parent=1 // pred_check_branch
      %70 = sbr.rel (0) target = $region25
    $region24: #{model_wrapper_forward.1} parent=1 // pred_region
      %72 = vsyncadd [#allocation9], 0
      %s73 = sshll.u32 %s5, 4
      %s74 = int_to_ptr.hbm [resolvable:$true] %s73
      %s75 = sshll.u32 [#allocation8], 4
      %s76 = int_to_ptr.vmem [resolvable:$true] %s75
      %81 = dma.hbm_to_vmem [thread:$0]  %s74, 512, %s76, [#allocation9], 64, 64, 4
    $region25: #{model_wrapper_forward.1} parent=1 // pred_fallthru
      _
    // Predicated region
    $region26: #{model_wrapper_forward.1} parent=1 // pred_check
      _
    $region27: #{model_wrapper_forward.1} parent=1 // pred_check_branch
      %83 = sbr.rel (0) target = $region29
    $region28: #{model_wrapper_forward.1} parent=1 // pred_region
      %85 = vsyncadd [#allocation9], 0
      %s87 = sshll.u32 %s6, 4
      %s88 = int_to_ptr.hbm [resolvable:$true] %s87
      %s89 = sshll.u32 [#allocation10], 4
      %s90 = int_to_ptr.vmem [resolvable:$true] %s89
      %92 = dma.hbm_to_vmem [thread:$0]  %s88, 32, %s90, [#allocation9]
    $region29: #{model_wrapper_forward.1} parent=1 // pred_fallthru
      _
    // Predicated region
    $region30: #{model_wrapper_forward.1} parent=1 // pred_check
      _
    $region31: #{model_wrapper_forward.1} parent=1 // pred_check_branch
      %94 = sbr.rel (0) target = $region33
    $region32: #{model_wrapper_forward.1} parent=1 // pred_region
      %96 = vsyncadd [#allocation12], 0
      %s97 = sshll.u32 %s7, 4
      %s98 = int_to_ptr.hbm [resolvable:$true] %s97
      %s99 = sshll.u32 [#allocation11], 4
      %s100 = int_to_ptr.vmem [resolvable:$true] %s99
      %105 = dma.hbm_to_vmem [thread:$0]  %s98, 256, %s100, [#allocation12], 128, 128, 8
    $region33: #{model_wrapper_forward.1} parent=1 // pred_fallthru
      _
    // Predicated region
    $region34: #{model_wrapper_forward.1} parent=1 // pred_check
      _
    $region35: #{model_wrapper_forward.1} parent=1 // pred_check_branch
      %107 = sbr.rel (0) target = $region37
    $region36: #{model_wrapper_forward.1} parent=1 // pred_region
      _
    $region37: #{model_wrapper_forward.1} parent=1 // pred_fallthru
      _
    // Predicated region
    $region38: #{model_wrapper_forward.1} parent=1 // pred_check
      _
    $region39: #{model_wrapper_forward.1} parent=1 // pred_check_branch
      %109 = sbr.rel (0) target = $region41
    $region40: #{model_wrapper_forward.1} parent=1 // pred_region
      _
    $region41: #{model_wrapper_forward.1} parent=1 // pred_fallthru
      _
    // Predicated region
    $region42: #{model_wrapper_forward.1} parent=1 // pred_check
      _
    $region43: #{model_wrapper_forward.1} parent=1 // pred_check_branch
      %111 = sbr.rel (0) target = $region45
    $region44: #{model_wrapper_forward.1} parent=1 // pred_region
      %113 = vsyncadd [#allocation12], 0
      %s114 = sshll.u32 %s10, 4
      %s115 = int_to_ptr.hbm [resolvable:$true] %s114
      %s116 = sshll.u32 [#allocation13], 4
      %s117 = int_to_ptr.vmem [resolvable:$true] %s116
      %122 = dma.hbm_to_vmem [thread:$0]  %s115, 2048, %s117, [#allocation12], 128, 128, 8
    $region45: #{model_wrapper_forward.1} parent=1 // pred_fallthru
      _
    // Predicated region
    $region46: #{model_wrapper_forward.1} parent=1 // pred_check
      _
    $region47: #{model_wrapper_forward.1} parent=1 // pred_check_branch
      %124 = sbr.rel (0) target = $region49
    $region48: #{model_wrapper_forward.1} parent=1 // pred_region
      _
    $region49: #{model_wrapper_forward.1} parent=1 // pred_fallthru
      _
    // Predicated region
    $region50: #{model_wrapper_forward.1} parent=1 // pred_check
      _
    $region51: #{model_wrapper_forward.1} parent=1 // pred_check_branch
      %126 = sbr.rel (0) target = $region53
    $region52: #{model_wrapper_forward.1} parent=1 // pred_region
      %128 = vsyncadd [#allocation15], 0
      %s129 = sshll.u32 %s12, 4
      %s130 = int_to_ptr.hbm [resolvable:$true] %s129
      %s131 = sshll.u32 [#allocation14], 4
      %s132 = int_to_ptr.vmem [resolvable:$true] %s131
      %137 = dma.hbm_to_vmem [thread:$0]  %s130, 2048, %s132, [#allocation15], 128, 128, 8
    $region53: #{model_wrapper_forward.1} parent=1 // pred_fallthru
      _
    // Predicated region
    $region54: #{model_wrapper_forward.1} parent=1 // pred_check
      _
    $region55: #{model_wrapper_forward.1} parent=1 // pred_check_branch
      %139 = sbr.rel (0) target = $region57
    $region56: #{model_wrapper_forward.1} parent=1 // pred_region
      _
    $region57: #{model_wrapper_forward.1} parent=1 // pred_fallthru
      _
    // Predicated region
    $region58: #{model_wrapper_forward.1} parent=1 // pred_check
      _
    $region59: #{model_wrapper_forward.1} parent=1 // pred_check_branch
      %141 = sbr.rel (0) target = $region61
    $region60: #{model_wrapper_forward.1} parent=1 // pred_region
      _
    $region61: #{model_wrapper_forward.1} parent=1 // pred_fallthru
      _
    // Predicated region
    $region62: #{model_wrapper_forward.1} parent=1 // pred_check
      _
    $region63: #{model_wrapper_forward.1} parent=1 // pred_check_branch
      %143 = sbr.rel (0) target = $region65
    $region64: #{model_wrapper_forward.1} parent=1 // pred_region
      %145 = dma.done [#allocation3], 32
    $region65: #{model_wrapper_forward.1} parent=1 // pred_fallthru
      _
    // Predicated region
    $region66: #{model_wrapper_forward.1} parent=1 // pred_check
      _
    $region67: #{model_wrapper_forward.1} parent=1 // pred_check_branch
      %147 = sbr.rel (0) target = $region69
    $region68: #{model_wrapper_forward.1} parent=1 // pred_region
      %149 = dma.done [#allocation6], 1024
    $region69: #{model_wrapper_forward.1} parent=1 // pred_fallthru
      _
    // Predicated region
    $region70: #{model_wrapper_forward.1} parent=1 // pred_check
      _
    $region71: #{model_wrapper_forward.1} parent=1 // pred_check_branch
      %151 = sbr.rel (0) target = $region73
    $region72: #{model_wrapper_forward.1} parent=1 // pred_region
      %153 = dma.done [#allocation6], 512
    $region73: #{model_wrapper_forward.1} parent=1 // pred_fallthru
      _
    // Predicated region
    $region74: #{model_wrapper_forward.1} parent=1 // pred_check
      _
    $region75: #{model_wrapper_forward.1} parent=1 // pred_check_branch
      %155 = sbr.rel (0) target = $region77
    $region76: #{model_wrapper_forward.1} parent=1 // pred_region
      %157 = dma.done [#allocation9], 512
    $region77: #{model_wrapper_forward.1} parent=1 // pred_fallthru
      _
    // Predicated region
    $region78: #{model_wrapper_forward.1} parent=1 // pred_check
      _
    $region79: #{model_wrapper_forward.1} parent=1 // pred_check_branch
      %159 = sbr.rel (0) target = $region81
    $region80: #{model_wrapper_forward.1} parent=1 // pred_region
      %161 = dma.done [#allocation9], 32
    $region81: #{model_wrapper_forward.1} parent=1 // pred_fallthru
      _
    // Predicated region
    $region82: #{model_wrapper_forward.1} parent=1 // pred_check
      _
    $region83: #{model_wrapper_forward.1} parent=1 // pred_check_branch
      %163 = sbr.rel (0) target = $region85
    $region84: #{model_wrapper_forward.1} parent=1 // pred_region
      %165 = dma.done [#allocation12], 256
    $region85: #{model_wrapper_forward.1} parent=1 // pred_fallthru
      _
    // Predicated region
    $region86: #{model_wrapper_forward.1} parent=1 // pred_check
      _
    $region87: #{model_wrapper_forward.1} parent=1 // pred_check_branch
      %167 = sbr.rel (0) target = $region89
    $region88: #{model_wrapper_forward.1} parent=1 // pred_region
      %169 = dma.done [#allocation12], 2048
    $region89: #{model_wrapper_forward.1} parent=1 // pred_fallthru
      _
    // Predicated region
    $region90: #{model_wrapper_forward.1} parent=1 // pred_check
      _
    $region91: #{model_wrapper_forward.1} parent=1 // pred_check_branch
      %171 = sbr.rel (0) target = $region93
    $region92: #{model_wrapper_forward.1} parent=1 // pred_region
      %173 = dma.done [#allocation15], 2048
    $region93: #{model_wrapper_forward.1} parent=1 // pred_fallthru
      _
    %v175 = vld [vmem:[%s0] sm:$0xff]
    %v176 = vld [vmem:[%s0 + $0x8] sm:$0xff]
    %v177 = vld [vmem:[%s1] sm:$0xff]
    %v178 = vld [vmem:[%s1 + $0x8] sm:$0xff]
    %v179 = vlaneseq
    %v180 = vand.u32 %v179, 127
    %181 = vset.pattern.permute.xlu0 0
    %182 = vperm.xlu0 %181, %v175
    %v183 = vpop.permute.xlu0 %182
    %184 = vset.pattern.permute.xlu0 0
    %185 = vperm.xlu0 %184, %v176
    %v186 = vpop.permute.xlu0 %185
    %vm187 = vcmp.eq.s32.totalorder %v180, %v183
    %vm188 = vcmp.eq.s32.totalorder %v180, %v186
    %v189 = vsel %vm187, 1, 0
    %v190 = vsel %vm188, 1, 0
    %v191 = vcvt.s32.f32 %v189
    %v192 = vcvt.s32.f32 %v190
    %v193 = vpack.c.bf16 %v192, %v191
    %194 = vset.pattern.permute.xlu0 0
    %195 = vperm.xlu0 %194, %v177
    %v196 = vpop.permute.xlu0 %195
    %197 = vset.pattern.permute.xlu0 0
    %198 = vperm.xlu0 %197, %v178
    %v199 = vpop.permute.xlu0 %198
    %vm200 = vcmp.eq.s32.totalorder %v180, %v196
    %vm201 = vcmp.eq.s32.totalorder %v180, %v199
    %v202 = vsel %vm200, 1, 0
    %v203 = vsel %vm201, 1, 0
    %v204 = vcvt.s32.f32 %v202
    %v205 = vcvt.s32.f32 %v203
    %v206 = vpack.c.bf16 %v205, %v204
    %v207 = vld [vmem:[#allocation5] sm:$0xf]
    %v208 = vld [vmem:[#allocation5 + $0x4] sm:$0xf]
    %v209 = vld [vmem:[#allocation5 + $0x8] sm:$0xf]
    %v210 = vld [vmem:[#allocation5 + $0xc] sm:$0xf]
    %v211 = vld [vmem:[#allocation5 + $0x10] sm:$0xf]
    %v212 = vld [vmem:[#allocation5 + $0x14] sm:$0xf]
    %v213 = vld [vmem:[#allocation5 + $0x18] sm:$0xf]
    %v214 = vld [vmem:[#allocation5 + $0x1c] sm:$0xf]
    %v215 = vld [vmem:[#allocation5 + $0x20] sm:$0xf]
    %v216 = vld [vmem:[#allocation5 + $0x24] sm:$0xf]
    %v217 = vld [vmem:[#allocation5 + $0x28] sm:$0xf]
    %v218 = vld [vmem:[#allocation5 + $0x2c] sm:$0xf]
    %v219 = vld [vmem:[#allocation5 + $0x30] sm:$0xf]
    %v220 = vld [vmem:[#allocation5 + $0x34] sm:$0xf]
    %v221 = vld [vmem:[#allocation5 + $0x38] sm:$0xf]
    %v222 = vld [vmem:[#allocation5 + $0x3c] sm:$0xf]
    %v223 = vld [vmem:[#allocation7] sm:$0xf]
    %v224 = vld [vmem:[#allocation7 + $0x4] sm:$0xf]
    %v225 = vld [vmem:[#allocation7 + $0x8] sm:$0xf]
    %v226 = vld [vmem:[#allocation7 + $0xc] sm:$0xf]
    %v227 = vld [vmem:[#allocation7 + $0x10] sm:$0xf]
    %v228 = vld [vmem:[#allocation7 + $0x14] sm:$0xf]
    %v229 = vld [vmem:[#allocation7 + $0x18] sm:$0xf]
    %v230 = vld [vmem:[#allocation7 + $0x1c] sm:$0xf]
    %v239 = vunpack.c.l.b16 %v223
    %v240 = vunpack.c.l.b16 %v224
    %v241 = vunpack.c.l.b16 %v225
    %v242 = vunpack.c.l.b16 %v226
    %v243 = vunpack.c.l.b16 %v227
    %v244 = vunpack.c.l.b16 %v228
    %v245 = vunpack.c.l.b16 %v229
    %v246 = vunpack.c.l.b16 %v230
    %v247 = vpack.c.b16 %v240, %v239
    %v248 = vpack.c.b16 %v242, %v241
    %v249 = vpack.c.b16 %v244, %v243
    %v250 = vpack.c.b16 %v246, %v245
    %vm255 = vcmask 523264
    %v257 = vsel %vm255, %v206, 0
    %259 = vmatpush.bf16.msra.mxu0 0
    %260 = vmatpush.bf16.msra.mxu0 0
    %261 = vmatpush.bf16.msra.mxu0 0
    %262 = vmatpush.bf16.msra.mxu0 0
    %263 = vmatpush.bf16.msra.mxu0 %v250
    %264 = vmatpush.bf16.msra.mxu0 %v249
    %265 = vmatpush.bf16.msra.mxu0 %v248
    %266 = vmatpush.bf16.msra.mxu0 %v247
    %267 = vmatmul.bf16.gmra.mxu0 %v257
    %v268 = vpop.f32.mrf.mxu0
    %v269 = vadd.f32 0.0, %v268
    %v270 = vpop.f32.mrf.mxu0
    %v271 = vadd.f32 0.0, %v270
    %272 = vdwg.mxu0
    %v289 = vunpack.c.l.b16 %v207
    %v290 = vunpack.c.l.b16 %v208
    %v291 = vunpack.c.l.b16 %v209
    %v292 = vunpack.c.l.b16 %v210
    %v293 = vunpack.c.l.b16 %v211
    %v294 = vunpack.c.l.b16 %v212
    %v295 = vunpack.c.l.b16 %v213
    %v296 = vunpack.c.l.b16 %v214
    %v297 = vunpack.c.l.b16 %v215
    %v298 = vunpack.c.l.b16 %v216
    %v299 = vunpack.c.l.b16 %v217
    %v300 = vunpack.c.l.b16 %v218
    %v301 = vunpack.c.l.b16 %v219
    %v302 = vunpack.c.l.b16 %v220
    %v303 = vunpack.c.l.b16 %v221
    %v304 = vunpack.c.l.b16 %v222
    %v305 = vpack.c.b16 %v290, %v289
    %v306 = vpack.c.b16 %v292, %v291
    %v307 = vpack.c.b16 %v294, %v293
    %v308 = vpack.c.b16 %v296, %v295
    %v309 = vpack.c.b16 %v298, %v297
    %v310 = vpack.c.b16 %v300, %v299
    %v311 = vpack.c.b16 %v302, %v301
    %v312 = vpack.c.b16 %v304, %v303
    %321 = vmatpush.bf16.msra.mxu0 %v312
    %322 = vmatpush.bf16.msra.mxu0 %v311
    %323 = vmatpush.bf16.msra.mxu0 %v310
    %324 = vmatpush.bf16.msra.mxu0 %v309
    %325 = vmatpush.bf16.msra.mxu0 %v308
    %326 = vmatpush.bf16.msra.mxu0 %v307
    %327 = vmatpush.bf16.msra.mxu0 %v306
    %328 = vmatpush.bf16.msra.mxu0 %v305
    %329 = vmatmul.bf16.gmra.mxu0 %v193
    %v330 = vpop.f32.mrf.mxu0
    %v331 = vadd.f32 %v269, %v330
    %v332 = vpop.f32.mrf.mxu0
    %v333 = vadd.f32 %v271, %v332
    %334 = vdwg.mxu0
    %v335 = vlaneseq
    %v336 = vshrl.u32 %v335, 7
    %v337 = vadd.s32 %v336, 4
    %vm338 = vcmp.le.s32.totalorder %v180, %v337
    %v339 = vsel %vm338, 0.0, -1e+09
    %v340 = vld [vmem:[#allocation2] sm:$0x3]
    %v341 = vcvt.s32.f32 %v340
    %v342 = vsub.f32 1.0, %v341
    %v343 = vmul.f32 %v342, -1e+09
    %v344 = vld [vmem:[%s14] sm:$0xff]
    %v345 = vld [vmem:[%s14 + $0x8] sm:$0xff]
    %v346 = vld [vmem:[#allocation11] sm:$0x1]
    %v347 = vld [vmem:[#allocation11 + $0x1] sm:$0x1]
    %v348 = vld [vmem:[#allocation11 + $0x2] sm:$0x1]
    %v349 = vld [vmem:[#allocation11 + $0x3] sm:$0x1]
    %v350 = vld [vmem:[#allocation11 + $0x4] sm:$0x1]
    %v351 = vld [vmem:[#allocation11 + $0x5] sm:$0x1]
    %v352 = vsel %vm255, %v331, 0.0
    %353 = vadd.xlane.f32.xlu0 %v352
    %v354 = vpop.xlane.xlu0 %353
    %v355 = vsel %vm255, %v333, 0.0
    %356 = vadd.xlane.f32.xlu0 %v355
    %v357 = vpop.xlane.xlu0 %356
    %v358 = vrcp.pop 64.0
    %v359 = vmul.f32 64.0, %v358
    %v360 = vsub.f32 1.0, %v359
    %v361 = vmul.f32 %v358, %v360
    %v362 = vadd.f32 %v358, %v361
    %vm363 = vweird.f32 %v358
    %v364 = vsel %vm363, %v358, %v362
    %v365 = vmul.f32 %v354, %v364
    %v366 = vmul.f32 %v357, %v364
    %v367 = vsub.f32 %v331, %v365
    %v368 = vsub.f32 %v333, %v366
    %v369 = vmul.f32 %v367, %v367
    %v370 = vmul.f32 %v368, %v368
    %v371 = vsel %vm255, %v369, 0.0
    %372 = vadd.xlane.f32.xlu0 %v371
    %v373 = vpop.xlane.xlu0 %372
    %v374 = vsel %vm255, %v370, 0.0
    %375 = vadd.xlane.f32.xlu0 %v374
    %v376 = vpop.xlane.xlu0 %375
    %v377 = vmul.f32 %v373, %v364
    %v378 = vmul.f32 %v376, %v364
    %v379 = vadd.f32 %v377, 1e-05
    %v380 = vadd.f32 %v378, 1e-05
    %v381 = vrsqrt.pop %v379
    %v382 = vmul.f32 %v381, %v379
    %v383 = vmul.f32 %v382, %v381
    %v384 = vmul.f32 0.5, %v383
    %v385 = vsub.f32 1.5, %v384
    %v386 = vmul.f32 %v381, %v385
    %vm387 = vweird.f32 %v379
    %vm388 = vweird.f32 %v381
    %vm389 = vmor %vm387, %vm388
    %v390 = vsel %vm389, %v381, %v386
    %v391 = vrsqrt.pop %v380
    %v392 = vmul.f32 %v391, %v380
    %v393 = vmul.f32 %v392, %v391
    %v394 = vmul.f32 0.5, %v393
    %v395 = vsub.f32 1.5, %v394
    %v396 = vmul.f32 %v391, %v395
    %vm397 = vweird.f32 %v380
    %vm398 = vweird.f32 %v391
    %vm399 = vmor %vm397, %vm398
    %v400 = vsel %vm399, %v391, %v396
    %v401 = vmul.f32 %v367, %v390
    %v402 = vmul.f32 %v368, %v400
    %v403 = vperm.slane %v346, 0
    %v404 = vmul.f32 %v401, %v403
    %v405 = vmul.f32 %v402, %v403
    %v406 = vperm.slane %v347, 0
    %v407 = vadd.f32 %v404, %v406
    %v408 = vadd.f32 %v405, %v406
    %v409 = vpack.c.bf16 %v408, %v407
    %v410 = vld [vmem:[#allocation13] sm:$0xff]
    %v411 = vld [vmem:[#allocation13 + $0x8] sm:$0xff]
    %v412 = vld [vmem:[#allocation13 + $0x10] sm:$0xff]
    %v413 = vld [vmem:[#allocation13 + $0x18] sm:$0xff]
    %v414 = vld [vmem:[#allocation13 + $0x20] sm:$0xff]
    %v415 = vld [vmem:[#allocation13 + $0x28] sm:$0xff]
    %v416 = vld [vmem:[#allocation13 + $0x30] sm:$0xff]
    %v417 = vld [vmem:[#allocation13 + $0x38] sm:$0xff]
    %v418 = vld [vmem:[%s8] sm:$0x3]
    %v420 = vperm.slane %v418, 0
    %v421 = vperm.slane %v418, 1
    %v432 = vunpack.c.l.b16 %v410
    %v433 = vunpack.c.h.b16 %v410
    %v434 = vunpack.c.l.b16 %v411
    %v435 = vunpack.c.h.b16 %v411
    %v436 = vunpack.c.l.b16 %v412
    %v437 = vunpack.c.h.b16 %v412
    %v438 = vunpack.c.l.b16 %v413
    %v439 = vunpack.c.h.b16 %v413
    %v440 = vunpack.c.l.b16 %v414
    %v441 = vunpack.c.h.b16 %v414
    %v442 = vunpack.c.l.b16 %v415
    %v443 = vunpack.c.h.b16 %v415
    %v444 = vunpack.c.l.b16 %v416
    %v445 = vunpack.c.h.b16 %v416
    %v446 = vunpack.c.l.b16 %v417
    %v447 = vunpack.c.h.b16 %v417
    %v448 = vpack.c.b16 %v434, %v432
    %v449 = vpack.c.b16 %v435, %v433
    %v450 = vpack.c.b16 %v438, %v436
    %v451 = vpack.c.b16 %v439, %v437
    %v452 = vpack.c.b16 %v442, %v440
    %v453 = vpack.c.b16 %v443, %v441
    %v454 = vpack.c.b16 %v446, %v444
    %v455 = vpack.c.b16 %v447, %v445
    %v465 = vsel %vm255, %v409, 0
    %467 = vmatpush.bf16.msra.mxu0 0
    %468 = vmatpush.bf16.msra.mxu0 0
    %469 = vmatpush.bf16.msra.mxu0 0
    %470 = vmatpush.bf16.msra.mxu0 0
    %471 = vmatpush.bf16.msra.mxu0 %v454
    %472 = vmatpush.bf16.msra.mxu0 %v452
    %473 = vmatpush.bf16.msra.mxu0 %v450
    %474 = vmatpush.bf16.msra.mxu0 %v448
    %475 = vmatmul.bf16.gmra.mxu0 %v465
    %v476 = vpop.f32.mrf.mxu0
    %v477 = vadd.f32 %v420, %v476
    %v478 = vpop.f32.mrf.mxu0
    %v479 = vadd.f32 %v420, %v478
    %480 = vdwg.mxu0
    %481 = vmatpush.bf16.msra.mxu0 0
    %482 = vmatpush.bf16.msra.mxu0 0
    %483 = vmatpush.bf16.msra.mxu0 0
    %484 = vmatpush.bf16.msra.mxu0 0
    %485 = vmatpush.bf16.msra.mxu0 %v455
    %486 = vmatpush.bf16.msra.mxu0 %v453
    %487 = vmatpush.bf16.msra.mxu0 %v451
    %488 = vmatpush.bf16.msra.mxu0 %v449
    %489 = vmatmul.bf16.gmra.mxu0 %v465
    %v490 = vpop.f32.mrf.mxu0
    %v491 = vadd.f32 %v421, %v490
    %v492 = vpop.f32.mrf.mxu0
    %v493 = vadd.f32 %v421, %v492
    %494 = vdwg.mxu0
    %v495 = vmul.f32 %v477, 0.17677669
    %v496 = vmul.f32 %v479, 0.17677669
    %v497 = vperm.slane %v343, 0
    %v498 = vadd.f32 %v339, %v497
    %v500 = vrot.slane %v477, 4
    %501 = vrot.lane.b32.xlu0 %v500, 64
    %v502 = vpop.permute.xlu0 %501
    %vm504 = vcmask 1043456
    %v505 = vsel %vm504, %v344, %v502
    %v507 = vrot.slane %v491, 4
    %508 = vrot.lane.b32.xlu0 %v507, 64
    %v509 = vpop.permute.xlu0 %508
    %v511 = vsel %vm504, %v344, %v509
    %v512 = vpack.c.bf16 %v495, %v495
    %v513 = vpack.c.bf16 %v502, %v505
    %vm514 = vcmask 261120
    %v516 = vsel %vm514, %v512, 0
    %v519 = vsel %vm514, %v513, 0
    %521 = vmatpush.bf16.xpose.msra.mxu0 0
    %522 = vmatpush.bf16.xpose.msra.mxu0 0
    %523 = vmatpush.bf16.xpose.msra.mxu0 0
    %524 = vmatpush.bf16.xpose.msra.mxu0 0
    %525 = vmatpush.bf16.xpose.msra.mxu0 0
    %526 = vmatpush.bf16.xpose.msra.mxu0 0
    %527 = vmatpush.bf16.xpose.msra.mxu0 0
    %528 = vmatpush.bf16.xpose.msra.mxu0 %v519
    %529 = vmatmul.bf16.gmra.mxu0 %v516
    %v530 = vpop.f32.mrf.mxu0
    %v531 = vadd.f32 %v498, %v530
    %v532 = vpop.f32.mrf.mxu0
    %533 = vdwg.mxu0
    %vm534 = vcmask 97280
    %v535 = vsel %vm534, %v531, -inf
    %536 = vmax.xlane.f32.xlu0 %v535
    %v537 = vpop.xlane.xlu0 %536
    %v538 = vsub.f32 %v531, %v537
    %v539 = vmul.f32 %v538, 1.442695
    %v540 = vpow.pop %v539
    %v541 = vsel %vm534, %v540, 0.0
    %542 = vadd.xlane.f32.xlu0 %v541
    %v543 = vpop.xlane.xlu0 %542
    %v544 = vrcp.pop %v543
    %v545 = vmul.f32 %v543, %v544
    %v546 = vsub.f32 1.0, %v545
    %v547 = vmul.f32 %v544, %v546
    %v548 = vadd.f32 %v544, %v547
    %vm549 = vweird.f32 %v543
    %vm550 = vweird.f32 %v544
    %vm551 = vmor %vm549, %vm550
    %v552 = vsel %vm551, %v544, %v548
    %v553 = vand.u32 2147483647, %v543
    %vm554 = vcmp.eq.f32.partialorder %v553, 8.507059e+37
    %v555 = vand.u32 %v543, 2147483648
    %v556 = vor.u32 1.1754944e-38, %v555
    %v557 = vsel %vm554, %v556, %v552
    %v558 = vmul.f32 %v540, %v557
    %v559 = vpack.c.bf16 %v558, %v558
    %v560 = vpack.c.bf16 %v509, %v511
    %562 = vrot.lane.b32.xlu0 %v560, 64
    %v563 = vpop.permute.xlu0 %562
    %v565 = vsel %vm534, %v559, 0
    %vm567 = vcmask 1045504
    %v569 = vsel %vm567, %v563, 0
    %571 = vmatpush.bf16.msra.mxu0 0
    %572 = vmatpush.bf16.msra.mxu0 0
    %573 = vmatpush.bf16.msra.mxu0 0
    %574 = vmatpush.bf16.msra.mxu0 0
    %575 = vmatpush.bf16.msra.mxu0 0
    %576 = vmatpush.bf16.msra.mxu0 0
    %577 = vmatpush.bf16.msra.mxu0 0
    %578 = vmatpush.bf16.msra.mxu0 %v569
    %579 = vmatmul.bf16.gmra.mxu0 %v565
    %v580 = vpop.f32.mrf.mxu0
    %v581 = vadd.f32 0.0, %v580
    %v582 = vpop.f32.mrf.mxu0
    %583 = vdwg.mxu0
    %585 = vrot.lane.b32.xlu0 %v512, 96
    %v586 = vpop.permute.xlu0 %585
    %588 = vrot.lane.b32.xlu0 %v513, 96
    %v589 = vpop.permute.xlu0 %588
    %v591 = vsel %vm514, %v586, 0
    %v594 = vsel %vm514, %v589, 0
    %596 = vmatpush.bf16.xpose.msra.mxu0 0
    %597 = vmatpush.bf16.xpose.msra.mxu0 0
    %598 = vmatpush.bf16.xpose.msra.mxu0 0
    %599 = vmatpush.bf16.xpose.msra.mxu0 0
    %600 = vmatpush.bf16.xpose.msra.mxu0 0
    %601 = vmatpush.bf16.xpose.msra.mxu0 0
    %602 = vmatpush.bf16.xpose.msra.mxu0 0
    %603 = vmatpush.bf16.xpose.msra.mxu0 %v594
    %604 = vmatmul.bf16.gmra.mxu0 %v591
    %v605 = vpop.f32.mrf.mxu0
    %v606 = vadd.f32 %v498, %v605
    %v607 = vpop.f32.mrf.mxu0
    %608 = vdwg.mxu0
    %v609 = vsel %vm534, %v606, -inf
    %610 = vmax.xlane.f32.xlu0 %v609
    %v611 = vpop.xlane.xlu0 %610
    %v612 = vsub.f32 %v606, %v611
    %v613 = vmul.f32 %v612, 1.442695
    %v614 = vpow.pop %v613
    %v615 = vsel %vm534, %v614, 0.0
    %616 = vadd.xlane.f32.xlu0 %v615
    %v617 = vpop.xlane.xlu0 %616
    %v618 = vrcp.pop %v617
    %v619 = vmul.f32 %v617, %v618
    %v620 = vsub.f32 1.0, %v619
    %v621 = vmul.f32 %v618, %v620
    %v622 = vadd.f32 %v618, %v621
    %vm623 = vweird.f32 %v617
    %vm624 = vweird.f32 %v618
    %vm625 = vmor %vm623, %vm624
    %v626 = vsel %vm625, %v618, %v622
    %v627 = vand.u32 2147483647, %v617
    %vm628 = vcmp.eq.f32.partialorder %v627, 8.507059e+37
    %v629 = vand.u32 %v617, 2147483648
    %v630 = vor.u32 1.1754944e-38, %v629
    %v631 = vsel %vm628, %v630, %v626
    %v632 = vmul.f32 %v614, %v631
    %v633 = vpack.c.bf16 %v632, %v632
    %634 = vrot.lane.b32.xlu0 %v560, 32
    %v635 = vpop.permute.xlu0 %634
    %v637 = vsel %vm534, %v633, 0
    %v640 = vsel %vm567, %v635, 0
    %642 = vmatpush.bf16.msra.mxu0 0
    %643 = vmatpush.bf16.msra.mxu0 0
    %644 = vmatpush.bf16.msra.mxu0 0
    %645 = vmatpush.bf16.msra.mxu0 0
    %646 = vmatpush.bf16.msra.mxu0 0
    %647 = vmatpush.bf16.msra.mxu0 0
    %648 = vmatpush.bf16.msra.mxu0 0
    %649 = vmatpush.bf16.msra.mxu0 %v640
    %650 = vmatmul.bf16.gmra.mxu0 %v637
    %v651 = vpop.f32.mrf.mxu0
    %v652 = vadd.f32 0.0, %v651
    %v653 = vpop.f32.mrf.mxu0
    %654 = vdwg.mxu0
    %656 = vrot.lane.b32.xlu0 %v652, 32
    %v657 = vpop.permute.xlu0 %656
    %v659 = vsel %vm514, %v581, %v657
    %v660 = vperm.slane %v343, 1
    %v661 = vadd.f32 %v339, %v660
    %v663 = vrot.slane %v479, 4
    %664 = vrot.lane.b32.xlu0 %v663, 64
    %v665 = vpop.permute.xlu0 %664
    %v667 = vsel %vm504, %v345, %v665
    %v669 = vrot.slane %v493, 4
    %670 = vrot.lane.b32.xlu0 %v669, 64
    %v671 = vpop.permute.xlu0 %670
    %v673 = vsel %vm504, %v345, %v671
    %v674 = vpack.c.bf16 %v496, %v496
    %v675 = vpack.c.bf16 %v665, %v667
    %v677 = vsel %vm514, %v674, 0
    %v680 = vsel %vm514, %v675, 0
    %682 = vmatpush.bf16.xpose.msra.mxu0 0
    %683 = vmatpush.bf16.xpose.msra.mxu0 0
    %684 = vmatpush.bf16.xpose.msra.mxu0 0
    %685 = vmatpush.bf16.xpose.msra.mxu0 0
    %686 = vmatpush.bf16.xpose.msra.mxu0 0
    %687 = vmatpush.bf16.xpose.msra.mxu0 0
    %688 = vmatpush.bf16.xpose.msra.mxu0 0
    %689 = vmatpush.bf16.xpose.msra.mxu0 %v680
    %690 = vmatmul.bf16.gmra.mxu0 %v677
    %v691 = vpop.f32.mrf.mxu0
    %v692 = vadd.f32 %v661, %v691
    %v693 = vpop.f32.mrf.mxu0
    %694 = vdwg.mxu0
    %v695 = vsel %vm534, %v692, -inf
    %696 = vmax.xlane.f32.xlu0 %v695
    %v697 = vpop.xlane.xlu0 %696
    %v698 = vsub.f32 %v692, %v697
    %v699 = vmul.f32 %v698, 1.442695
    %v700 = vpow.pop %v699
    %v701 = vsel %vm534, %v700, 0.0
    %702 = vadd.xlane.f32.xlu0 %v701
    %v703 = vpop.xlane.xlu0 %702
    %v704 = vrcp.pop %v703
    %v705 = vmul.f32 %v703, %v704
    %v706 = vsub.f32 1.0, %v705
    %v707 = vmul.f32 %v704, %v706
    %v708 = vadd.f32 %v704, %v707
    %vm709 = vweird.f32 %v703
    %vm710 = vweird.f32 %v704
    %vm711 = vmor %vm709, %vm710
    %v712 = vsel %vm711, %v704, %v708
    %v713 = vand.u32 2147483647, %v703
    %vm714 = vcmp.eq.f32.partialorder %v713, 8.507059e+37
    %v715 = vand.u32 %v703, 2147483648
    %v716 = vor.u32 1.1754944e-38, %v715
    %v717 = vsel %vm714, %v716, %v712
    %v718 = vmul.f32 %v700, %v717
    %v719 = vpack.c.bf16 %v718, %v718
    %v720 = vpack.c.bf16 %v671, %v673
    %722 = vrot.lane.b32.xlu0 %v720, 64
    %v723 = vpop.permute.xlu0 %722
    %v725 = vsel %vm534, %v719, 0
    %v728 = vsel %vm567, %v723, 0
    %730 = vmatpush.bf16.msra.mxu0 0
    %731 = vmatpush.bf16.msra.mxu0 0
    %732 = vmatpush.bf16.msra.mxu0 0
    %733 = vmatpush.bf16.msra.mxu0 0
    %734 = vmatpush.bf16.msra.mxu0 0
    %735 = vmatpush.bf16.msra.mxu0 0
    %736 = vmatpush.bf16.msra.mxu0 0
    %737 = vmatpush.bf16.msra.mxu0 %v728
    %738 = vmatmul.bf16.gmra.mxu0 %v725
    %v739 = vpop.f32.mrf.mxu0
    %v740 = vadd.f32 0.0, %v739
    %v741 = vpop.f32.mrf.mxu0
    %742 = vdwg.mxu0
    %744 = vrot.lane.b32.xlu0 %v674, 96
    %v745 = vpop.permute.xlu0 %744
    %747 = vrot.lane.b32.xlu0 %v675, 96
    %v748 = vpop.permute.xlu0 %747
    %v750 = vsel %vm514, %v745, 0
    %v753 = vsel %vm514, %v748, 0
    %755 = vmatpush.bf16.xpose.msra.mxu0 0
    %756 = vmatpush.bf16.xpose.msra.mxu0 0
    %757 = vmatpush.bf16.xpose.msra.mxu0 0
    %758 = vmatpush.bf16.xpose.msra.mxu0 0
    %759 = vmatpush.bf16.xpose.msra.mxu0 0
    %760 = vmatpush.bf16.xpose.msra.mxu0 0
    %761 = vmatpush.bf16.xpose.msra.mxu0 0
    %762 = vmatpush.bf16.xpose.msra.mxu0 %v753
    %763 = vmatmul.bf16.gmra.mxu0 %v750
    %v764 = vpop.f32.mrf.mxu0
    %v765 = vadd.f32 %v661, %v764
    %v766 = vpop.f32.mrf.mxu0
    %767 = vdwg.mxu0
    %v768 = vsel %vm534, %v765, -inf
    %769 = vmax.xlane.f32.xlu0 %v768
    %v770 = vpop.xlane.xlu0 %769
    %v771 = vsub.f32 %v765, %v770
    %v772 = vmul.f32 %v771, 1.442695
    %v773 = vpow.pop %v772
    %v774 = vsel %vm534, %v773, 0.0
    %775 = vadd.xlane.f32.xlu0 %v774
    %v776 = vpop.xlane.xlu0 %775
    %v777 = vrcp.pop %v776
    %v778 = vmul.f32 %v776, %v777
    %v779 = vsub.f32 1.0, %v778
    %v780 = vmul.f32 %v777, %v779
    %v781 = vadd.f32 %v777, %v780
    %vm782 = vweird.f32 %v776
    %vm783 = vweird.f32 %v777
    %vm784 = vmor %vm782, %vm783
    %v785 = vsel %vm784, %v777, %v781
    %v786 = vand.u32 2147483647, %v776
    %vm787 = vcmp.eq.f32.partialorder %v786, 8.507059e+37
    %v788 = vand.u32 %v776, 2147483648
    %v789 = vor.u32 1.1754944e-38, %v788
    %v790 = vsel %vm787, %v789, %v785
    %v791 = vmul.f32 %v773, %v790
    %v792 = vpack.c.bf16 %v791, %v791
    %793 = vrot.lane.b32.xlu0 %v720, 32
    %v794 = vpop.permute.xlu0 %793
    %v796 = vsel %vm534, %v792, 0
    %v799 = vsel %vm567, %v794, 0
    %801 = vmatpush.bf16.msra.mxu0 0
    %802 = vmatpush.bf16.msra.mxu0 0
    %803 = vmatpush.bf16.msra.mxu0 0
    %804 = vmatpush.bf16.msra.mxu0 0
    %805 = vmatpush.bf16.msra.mxu0 0
    %806 = vmatpush.bf16.msra.mxu0 0
    %807 = vmatpush.bf16.msra.mxu0 0
    %808 = vmatpush.bf16.msra.mxu0 %v799
    %809 = vmatmul.bf16.gmra.mxu0 %v796
    %v810 = vpop.f32.mrf.mxu0
    %v811 = vadd.f32 0.0, %v810
    %v812 = vpop.f32.mrf.mxu0
    %813 = vdwg.mxu0
    %815 = vrot.lane.b32.xlu0 %v811, 32
    %v816 = vpop.permute.xlu0 %815
    %v818 = vsel %vm514, %v740, %v816
    %v819 = vpack.c.bf16 %v818, %v659
    %v820 = vld [vmem:[%s11] sm:$0xf]
    %v821 = vld [vmem:[%s11 + $0x4] sm:$0xf]
    %v822 = vld [vmem:[%s11 + $0x8] sm:$0xf]
    %v823 = vld [vmem:[%s11 + $0xc] sm:$0xf]
    %v824 = vld [vmem:[%s11 + $0x10] sm:$0xf]
    %v825 = vld [vmem:[%s11 + $0x14] sm:$0xf]
    %v826 = vld [vmem:[%s11 + $0x18] sm:$0xf]
    %v827 = vld [vmem:[%s11 + $0x1c] sm:$0xf]
    %v828 = vperm.slane %v350, 0
    %v837 = vunpack.c.l.b16 %v820
    %v838 = vunpack.c.l.b16 %v821
    %v839 = vunpack.c.l.b16 %v822
    %v840 = vunpack.c.l.b16 %v823
    %v841 = vunpack.c.l.b16 %v824
    %v842 = vunpack.c.l.b16 %v825
    %v843 = vunpack.c.l.b16 %v826
    %v844 = vunpack.c.l.b16 %v827
    %v845 = vpack.c.b16 %v838, %v837
    %v846 = vpack.c.b16 %v840, %v839
    %v847 = vpack.c.b16 %v842, %v841
    %v848 = vpack.c.b16 %v844, %v843
    %v854 = vsel %vm255, %v819, 0
    %856 = vmatpush.bf16.msra.mxu0 0
    %857 = vmatpush.bf16.msra.mxu0 0
    %858 = vmatpush.bf16.msra.mxu0 0
    %859 = vmatpush.bf16.msra.mxu0 0
    %860 = vmatpush.bf16.msra.mxu0 %v848
    %861 = vmatpush.bf16.msra.mxu0 %v847
    %862 = vmatpush.bf16.msra.mxu0 %v846
    %863 = vmatpush.bf16.msra.mxu0 %v845
    %864 = vmatmul.bf16.gmra.mxu0 %v854
    %v865 = vpop.f32.mrf.mxu0
    %v866 = vadd.f32 %v828, %v865
    %v867 = vpop.f32.mrf.mxu0
    %v868 = vadd.f32 %v828, %v867
    %869 = vdwg.mxu0
    %v870 = vadd.f32 %v331, %v866
    %v871 = vadd.f32 %v333, %v868
    %v872 = vsel %vm255, %v870, 0.0
    %873 = vadd.xlane.f32.xlu0 %v872
    %v874 = vpop.xlane.xlu0 %873
    %v875 = vsel %vm255, %v871, 0.0
    %876 = vadd.xlane.f32.xlu0 %v875
    %v877 = vpop.xlane.xlu0 %876
    %v878 = vmul.f32 %v874, %v364
    %v879 = vmul.f32 %v877, %v364
    %v880 = vsub.f32 %v870, %v878
    %v881 = vsub.f32 %v871, %v879
    %v882 = vmul.f32 %v880, %v880
    %v883 = vmul.f32 %v881, %v881
    %v884 = vsel %vm255, %v882, 0.0
    %885 = vadd.xlane.f32.xlu0 %v884
    %v886 = vpop.xlane.xlu0 %885
    %v887 = vsel %vm255, %v883, 0.0
    %888 = vadd.xlane.f32.xlu0 %v887
    %v889 = vpop.xlane.xlu0 %888
    %v890 = vmul.f32 %v886, %v364
    %v891 = vmul.f32 %v889, %v364
    %v892 = vadd.f32 %v890, 1e-05
    %v893 = vadd.f32 %v891, 1e-05
    %v894 = vrsqrt.pop %v892
    %v895 = vmul.f32 %v894, %v892
    %v896 = vmul.f32 %v895, %v894
    %v897 = vmul.f32 0.5, %v896
    %v898 = vsub.f32 1.5, %v897
    %v899 = vmul.f32 %v894, %v898
    %vm900 = vweird.f32 %v892
    %vm901 = vweird.f32 %v894
    %vm902 = vmor %vm900, %vm901
    %v903 = vsel %vm902, %v894, %v899
    %v904 = vrsqrt.pop %v893
    %v905 = vmul.f32 %v904, %v893
    %v906 = vmul.f32 %v905, %v904
    %v907 = vmul.f32 0.5, %v906
    %v908 = vsub.f32 1.5, %v907
    %v909 = vmul.f32 %v904, %v908
    %vm910 = vweird.f32 %v893
    %vm911 = vweird.f32 %v904
    %vm912 = vmor %vm910, %vm911
    %v913 = vsel %vm912, %v904, %v909
    %v914 = vmul.f32 %v880, %v903
    %v915 = vmul.f32 %v881, %v913
    %v916 = vperm.slane %v348, 0
    %v917 = vmul.f32 %v914, %v916
    %v918 = vmul.f32 %v915, %v916
    %v919 = vperm.slane %v349, 0
    %v920 = vadd.f32 %v917, %v919
    %v921 = vadd.f32 %v918, %v919
    %v922 = vpack.c.bf16 %v921, %v920
    %v923 = vld [vmem:[#allocation14] sm:$0xff]
    %v924 = vld [vmem:[#allocation14 + $0x8] sm:$0xff]
    %v925 = vld [vmem:[#allocation14 + $0x10] sm:$0xff]
    %v926 = vld [vmem:[#allocation14 + $0x18] sm:$0xff]
    %v927 = vld [vmem:[#allocation14 + $0x20] sm:$0xff]
    %v928 = vld [vmem:[#allocation14 + $0x28] sm:$0xff]
    %v929 = vld [vmem:[#allocation14 + $0x30] sm:$0xff]
    %v930 = vld [vmem:[#allocation14 + $0x38] sm:$0xff]
    %v931 = vld [vmem:[%s9] sm:$0x3]
    %v933 = vperm.slane %v931, 0
    %v934 = vperm.slane %v931, 1
    %v945 = vunpack.c.l.b16 %v923
    %v946 = vunpack.c.h.b16 %v923
    %v947 = vunpack.c.l.b16 %v924
    %v948 = vunpack.c.h.b16 %v924
    %v949 = vunpack.c.l.b16 %v925
    %v950 = vunpack.c.h.b16 %v925
    %v951 = vunpack.c.l.b16 %v926
    %v952 = vunpack.c.h.b16 %v926
    %v953 = vunpack.c.l.b16 %v927
    %v954 = vunpack.c.h.b16 %v927
    %v955 = vunpack.c.l.b16 %v928
    %v956 = vunpack.c.h.b16 %v928
    %v957 = vunpack.c.l.b16 %v929
    %v958 = vunpack.c.h.b16 %v929
    %v959 = vunpack.c.l.b16 %v930
    %v960 = vunpack.c.h.b16 %v930
    %v961 = vpack.c.b16 %v947, %v945
    %v962 = vpack.c.b16 %v948, %v946
    %v963 = vpack.c.b16 %v951, %v949
    %v964 = vpack.c.b16 %v952, %v950
    %v965 = vpack.c.b16 %v955, %v953
    %v966 = vpack.c.b16 %v956, %v954
    %v967 = vpack.c.b16 %v959, %v957
    %v968 = vpack.c.b16 %v960, %v958
    %v978 = vsel %vm255, %v922, 0
    %980 = vmatpush.bf16.msra.mxu0 0
    %981 = vmatpush.bf16.msra.mxu0 0
    %982 = vmatpush.bf16.msra.mxu0 0
    %983 = vmatpush.bf16.msra.mxu0 0
    %984 = vmatpush.bf16.msra.mxu0 %v967
    %985 = vmatpush.bf16.msra.mxu0 %v965
    %986 = vmatpush.bf16.msra.mxu0 %v963
    %987 = vmatpush.bf16.msra.mxu0 %v961
    %988 = vmatmul.bf16.gmra.mxu0 %v978
    %v989 = vpop.f32.mrf.mxu0
    %v990 = vadd.f32 %v933, %v989
    %v991 = vpop.f32.mrf.mxu0
    %v992 = vadd.f32 %v933, %v991
    %993 = vdwg.mxu0
    %994 = vmatpush.bf16.msra.mxu0 0
    %995 = vmatpush.bf16.msra.mxu0 0
    %996 = vmatpush.bf16.msra.mxu0 0
    %997 = vmatpush.bf16.msra.mxu0 0
    %998 = vmatpush.bf16.msra.mxu0 %v968
    %999 = vmatpush.bf16.msra.mxu0 %v966
    %1000 = vmatpush.bf16.msra.mxu0 %v964
    %1001 = vmatpush.bf16.msra.mxu0 %v962
    %1002 = vmatmul.bf16.gmra.mxu0 %v978
    %v1003 = vpop.f32.mrf.mxu0
    %v1004 = vadd.f32 %v934, %v1003
    %v1005 = vpop.f32.mrf.mxu0
    %v1006 = vadd.f32 %v934, %v1005
    %1007 = vdwg.mxu0
    %v1008 = vmul.f32 %v990, 0.5
    %v1009 = vmul.f32 %v1004, 0.5
    %v1010 = vmul.f32 %v992, 0.5
    %v1011 = vmul.f32 %v1006, 0.5
    %v1012 = vmul.f32 %v990, 0.044715
    %v1013 = vmul.f32 %v1004, 0.044715
    %v1014 = vmul.f32 %v992, 0.044715
    %v1015 = vmul.f32 %v1006, 0.044715
    %v1016 = vmul.f32 %v1012, %v990
    %v1017 = vmul.f32 %v1013, %v1004
    %v1018 = vmul.f32 %v1014, %v992
    %v1019 = vmul.f32 %v1015, %v1006
    %v1020 = vmul.f32 %v1016, %v990
    %v1021 = vmul.f32 %v1017, %v1004
    %v1022 = vmul.f32 %v1018, %v992
    %v1023 = vmul.f32 %v1019, %v1006
    %v1024 = vadd.f32 %v990, %v1020
    %v1025 = vadd.f32 %v1004, %v1021
    %v1026 = vadd.f32 %v992, %v1022
    %v1027 = vadd.f32 %v1006, %v1023
    %v1028 = vmul.f32 %v1024, 0.7978846
    %v1029 = vmul.f32 %v1025, 0.7978846
    %v1030 = vmul.f32 %v1026, 0.7978846
    %v1031 = vmul.f32 %v1027, 0.7978846
    %v1032 = vtanh.pop %v1028
    %v1033 = vtanh.pop %v1029
    %v1034 = vtanh.pop %v1030
    %v1035 = vtanh.pop %v1031
    %v1036 = vadd.f32 %v1032, 1.0
    %v1037 = vadd.f32 %v1033, 1.0
    %v1038 = vadd.f32 %v1034, 1.0
    %v1039 = vadd.f32 %v1035, 1.0
    %v1040 = vmul.f32 %v1008, %v1036
    %v1041 = vmul.f32 %v1009, %v1037
    %v1042 = vmul.f32 %v1010, %v1038
    %v1043 = vmul.f32 %v1011, %v1039
    %v1044 = vpack.c.bf16 %v1042, %v1040
    %v1045 = vpack.c.bf16 %v1043, %v1041
    %v1046 = vld [vmem:[%s13] sm:$0xf]
    %v1047 = vld [vmem:[%s13 + $0x4] sm:$0xf]
    %v1048 = vld [vmem:[%s13 + $0x8] sm:$0xf]
    %v1049 = vld [vmem:[%s13 + $0xc] sm:$0xf]
    %v1050 = vld [vmem:[%s13 + $0x10] sm:$0xf]
    %v1051 = vld [vmem:[%s13 + $0x14] sm:$0xf]
    %v1052 = vld [vmem:[%s13 + $0x18] sm:$0xf]
    %v1053 = vld [vmem:[%s13 + $0x1c] sm:$0xf]
    %v1054 = vld [vmem:[%s13 + $0x20] sm:$0xf]
    %v1055 = vld [vmem:[%s13 + $0x24] sm:$0xf]
    %v1056 = vld [vmem:[%s13 + $0x28] sm:$0xf]
    %v1057 = vld [vmem:[%s13 + $0x2c] sm:$0xf]
    %v1058 = vld [vmem:[%s13 + $0x30] sm:$0xf]
    %v1059 = vld [vmem:[%s13 + $0x34] sm:$0xf]
    %v1060 = vld [vmem:[%s13 + $0x38] sm:$0xf]
    %v1061 = vld [vmem:[%s13 + $0x3c] sm:$0xf]
    %v1062 = vld [vmem:[%s13 + $0x40] sm:$0xf]
    %v1063 = vld [vmem:[%s13 + $0x44] sm:$0xf]
    %v1064 = vld [vmem:[%s13 + $0x48] sm:$0xf]
    %v1065 = vld [vmem:[%s13 + $0x4c] sm:$0xf]
    %v1066 = vld [vmem:[%s13 + $0x50] sm:$0xf]
    %v1067 = vld [vmem:[%s13 + $0x54] sm:$0xf]
    %v1068 = vld [vmem:[%s13 + $0x58] sm:$0xf]
    %v1069 = vld [vmem:[%s13 + $0x5c] sm:$0xf]
    %v1070 = vld [vmem:[%s13 + $0x60] sm:$0xf]
    %v1071 = vld [vmem:[%s13 + $0x64] sm:$0xf]
    %v1072 = vld [vmem:[%s13 + $0x68] sm:$0xf]
    %v1073 = vld [vmem:[%s13 + $0x6c] sm:$0xf]
    %v1074 = vld [vmem:[%s13 + $0x70] sm:$0xf]
    %v1075 = vld [vmem:[%s13 + $0x74] sm:$0xf]
    %v1076 = vld [vmem:[%s13 + $0x78] sm:$0xf]
    %v1077 = vld [vmem:[%s13 + $0x7c] sm:$0xf]
    %v1078 = vperm.slane %v351, 0
    %v1111 = vunpack.c.l.b16 %v1046
    %v1112 = vunpack.c.l.b16 %v1047
    %v1113 = vunpack.c.l.b16 %v1048
    %v1114 = vunpack.c.l.b16 %v1049
    %v1115 = vunpack.c.l.b16 %v1050
    %v1116 = vunpack.c.l.b16 %v1051
    %v1117 = vunpack.c.l.b16 %v1052
    %v1118 = vunpack.c.l.b16 %v1053
    %v1119 = vunpack.c.l.b16 %v1054
    %v1120 = vunpack.c.l.b16 %v1055
    %v1121 = vunpack.c.l.b16 %v1056
    %v1122 = vunpack.c.l.b16 %v1057
    %v1123 = vunpack.c.l.b16 %v1058
    %v1124 = vunpack.c.l.b16 %v1059
    %v1125 = vunpack.c.l.b16 %v1060
    %v1126 = vunpack.c.l.b16 %v1061
    %v1127 = vunpack.c.l.b16 %v1062
    %v1128 = vunpack.c.l.b16 %v1063
    %v1129 = vunpack.c.l.b16 %v1064
    %v1130 = vunpack.c.l.b16 %v1065
    %v1131 = vunpack.c.l.b16 %v1066
    %v1132 = vunpack.c.l.b16 %v1067
    %v1133 = vunpack.c.l.b16 %v1068
    %v1134 = vunpack.c.l.b16 %v1069
    %v1135 = vunpack.c.l.b16 %v1070
    %v1136 = vunpack.c.l.b16 %v1071
    %v1137 = vunpack.c.l.b16 %v1072
    %v1138 = vunpack.c.l.b16 %v1073
    %v1139 = vunpack.c.l.b16 %v1074
    %v1140 = vunpack.c.l.b16 %v1075
    %v1141 = vunpack.c.l.b16 %v1076
    %v1142 = vunpack.c.l.b16 %v1077
    %v1143 = vpack.c.b16 %v1112, %v1111
    %v1144 = vpack.c.b16 %v1114, %v1113
    %v1145 = vpack.c.b16 %v1116, %v1115
    %v1146 = vpack.c.b16 %v1118, %v1117
    %v1147 = vpack.c.b16 %v1120, %v1119
    %v1148 = vpack.c.b16 %v1122, %v1121
    %v1149 = vpack.c.b16 %v1124, %v1123
    %v1150 = vpack.c.b16 %v1126, %v1125
    %v1151 = vpack.c.b16 %v1128, %v1127
    %v1152 = vpack.c.b16 %v1130, %v1129
    %v1153 = vpack.c.b16 %v1132, %v1131
    %v1154 = vpack.c.b16 %v1134, %v1133
    %v1155 = vpack.c.b16 %v1136, %v1135
    %v1156 = vpack.c.b16 %v1138, %v1137
    %v1157 = vpack.c.b16 %v1140, %v1139
    %v1158 = vpack.c.b16 %v1142, %v1141
    %1175 = vmatpush.bf16.msra.mxu0 %v1150
    %1176 = vmatpush.bf16.msra.mxu0 %v1149
    %1177 = vmatpush.bf16.msra.mxu0 %v1148
    %1178 = vmatpush.bf16.msra.mxu0 %v1147
    %1179 = vmatpush.bf16.msra.mxu0 %v1146
    %1180 = vmatpush.bf16.msra.mxu0 %v1145
    %1181 = vmatpush.bf16.msra.mxu0 %v1144
    %1182 = vmatpush.bf16.msra.mxu0 %v1143
    %1183 = vmatmul.bf16.gmra.mxu0 %v1044
    %v1184 = vpop.f32.mrf.mxu0
    %v1185 = vadd.f32 %v1078, %v1184
    %v1186 = vpop.f32.mrf.mxu0
    %v1187 = vadd.f32 %v1078, %v1186
    %1188 = vdwg.mxu0
    %1189 = vmatpush.bf16.msra.mxu0 %v1158
    %1190 = vmatpush.bf16.msra.mxu0 %v1157
    %1191 = vmatpush.bf16.msra.mxu0 %v1156
    %1192 = vmatpush.bf16.msra.mxu0 %v1155
    %1193 = vmatpush.bf16.msra.mxu0 %v1154
    %1194 = vmatpush.bf16.msra.mxu0 %v1153
    %1195 = vmatpush.bf16.msra.mxu0 %v1152
    %1196 = vmatpush.bf16.msra.mxu0 %v1151
    %1197 = vmatmul.bf16.gmra.mxu0 %v1045
    %v1198 = vpop.f32.mrf.mxu0
    %v1199 = vadd.f32 %v1185, %v1198
    %v1200 = vpop.f32.mrf.mxu0
    %v1201 = vadd.f32 %v1187, %v1200
    %1202 = vdwg.mxu0
    %v1203 = vadd.f32 %v870, %v1199
    %v1204 = vadd.f32 %v871, %v1201
    %s1205 = scalar_lea.vmem [#allocation11], 8
    %v1206 = vld [vmem:[%s1205] sm:$0x1]
    %v1207 = vld [vmem:[%s1205 + $0x1] sm:$0x1]
    %v1208 = vld [vmem:[%s1205 + $0x2] sm:$0x1]
    %v1209 = vld [vmem:[%s1205 + $0x3] sm:$0x1]
    %v1210 = vld [vmem:[%s1205 + $0x4] sm:$0x1]
    %v1211 = vld [vmem:[%s1205 + $0x5] sm:$0x1]
    %v1212 = vsel %vm255, %v1203, 0.0
    %1213 = vadd.xlane.f32.xlu0 %v1212
    %v1214 = vpop.xlane.xlu0 %1213
    %v1215 = vsel %vm255, %v1204, 0.0
    %1216 = vadd.xlane.f32.xlu0 %v1215
    %v1217 = vpop.xlane.xlu0 %1216
    %v1218 = vmul.f32 %v1214, %v364
    %v1219 = vmul.f32 %v1217, %v364
    %v1220 = vsub.f32 %v1203, %v1218
    %v1221 = vsub.f32 %v1204, %v1219
    %v1222 = vmul.f32 %v1220, %v1220
    %v1223 = vmul.f32 %v1221, %v1221
    %v1224 = vsel %vm255, %v1222, 0.0
    %1225 = vadd.xlane.f32.xlu0 %v1224
    %v1226 = vpop.xlane.xlu0 %1225
    %v1227 = vsel %vm255, %v1223, 0.0
    %1228 = vadd.xlane.f32.xlu0 %v1227
    %v1229 = vpop.xlane.xlu0 %1228
    %v1230 = vmul.f32 %v1226, %v364
    %v1231 = vmul.f32 %v1229, %v364
    %v1232 = vadd.f32 %v1230, 1e-05
    %v1233 = vadd.f32 %v1231, 1e-05
    %v1234 = vrsqrt.pop %v1232
    %v1235 = vmul.f32 %v1234, %v1232
    %v1236 = vmul.f32 %v1235, %v1234
    %v1237 = vmul.f32 0.5, %v1236
    %v1238 = vsub.f32 1.5, %v1237
    %v1239 = vmul.f32 %v1234, %v1238
    %vm1240 = vweird.f32 %v1232
    %vm1241 = vweird.f32 %v1234
    %vm1242 = vmor %vm1240, %vm1241
    %v1243 = vsel %vm1242, %v1234, %v1239
    %v1244 = vrsqrt.pop %v1233
    %v1245 = vmul.f32 %v1244, %v1233
    %v1246 = vmul.f32 %v1245, %v1244
    %v1247 = vmul.f32 0.5, %v1246
    %v1248 = vsub.f32 1.5, %v1247
    %v1249 = vmul.f32 %v1244, %v1248
    %vm1250 = vweird.f32 %v1233
    %vm1251 = vweird.f32 %v1244
    %vm1252 = vmor %vm1250, %vm1251
    %v1253 = vsel %vm1252, %v1244, %v1249
    %v1254 = vmul.f32 %v1220, %v1243
    %v1255 = vmul.f32 %v1221, %v1253
    %v1256 = vperm.slane %v1206, 0
    %v1257 = vmul.f32 %v1254, %v1256
    %v1258 = vmul.f32 %v1255, %v1256
    %v1259 = vperm.slane %v1207, 0
    %v1260 = vadd.f32 %v1257, %v1259
    %v1261 = vadd.f32 %v1258, %v1259
    %v1262 = vpack.c.bf16 %v1261, %v1260
    %s1263 = scalar_lea.vmem [#allocation13], 64
    %v1264 = vld [vmem:[%s1263] sm:$0xff]
    %v1265 = vld [vmem:[%s1263 + $0x8] sm:$0xff]
    %v1266 = vld [vmem:[%s1263 + $0x10] sm:$0xff]
    %v1267 = vld [vmem:[%s1263 + $0x18] sm:$0xff]
    %v1268 = vld [vmem:[%s1263 + $0x20] sm:$0xff]
    %v1269 = vld [vmem:[%s1263 + $0x28] sm:$0xff]
    %v1270 = vld [vmem:[%s1263 + $0x30] sm:$0xff]
    %v1271 = vld [vmem:[%s1263 + $0x38] sm:$0xff]
    %s1272 = scalar_lea.vmem %s8, 2
    %v1273 = vld [vmem:[%s1272] sm:$0x3]
    %v1275 = vperm.slane %v1273, 0
    %v1276 = vperm.slane %v1273, 1
    %v1287 = vunpack.c.l.b16 %v1264
    %v1288 = vunpack.c.h.b16 %v1264
    %v1289 = vunpack.c.l.b16 %v1265
    %v1290 = vunpack.c.h.b16 %v1265
    %v1291 = vunpack.c.l.b16 %v1266
    %v1292 = vunpack.c.h.b16 %v1266
    %v1293 = vunpack.c.l.b16 %v1267
    %v1294 = vunpack.c.h.b16 %v1267
    %v1295 = vunpack.c.l.b16 %v1268
    %v1296 = vunpack.c.h.b16 %v1268
    %v1297 = vunpack.c.l.b16 %v1269
    %v1298 = vunpack.c.h.b16 %v1269
    %v1299 = vunpack.c.l.b16 %v1270
    %v1300 = vunpack.c.h.b16 %v1270
    %v1301 = vunpack.c.l.b16 %v1271
    %v1302 = vunpack.c.h.b16 %v1271
    %v1303 = vpack.c.b16 %v1289, %v1287
    %v1304 = vpack.c.b16 %v1290, %v1288
    %v1305 = vpack.c.b16 %v1293, %v1291
    %v1306 = vpack.c.b16 %v1294, %v1292
    %v1307 = vpack.c.b16 %v1297, %v1295
    %v1308 = vpack.c.b16 %v1298, %v1296
    %v1309 = vpack.c.b16 %v1301, %v1299
    %v1310 = vpack.c.b16 %v1302, %v1300
    %v1320 = vsel %vm255, %v1262, 0
    %1322 = vmatpush.bf16.msra.mxu0 0
    %1323 = vmatpush.bf16.msra.mxu0 0
    %1324 = vmatpush.bf16.msra.mxu0 0
    %1325 = vmatpush.bf16.msra.mxu0 0
    %1326 = vmatpush.bf16.msra.mxu0 %v1309
    %1327 = vmatpush.bf16.msra.mxu0 %v1307
    %1328 = vmatpush.bf16.msra.mxu0 %v1305
    %1329 = vmatpush.bf16.msra.mxu0 %v1303
    %1330 = vmatmul.bf16.gmra.mxu0 %v1320
    %v1331 = vpop.f32.mrf.mxu0
    %v1332 = vadd.f32 %v1275, %v1331
    %v1333 = vpop.f32.mrf.mxu0
    %v1334 = vadd.f32 %v1275, %v1333
    %1335 = vdwg.mxu0
    %1336 = vmatpush.bf16.msra.mxu0 0
    %1337 = vmatpush.bf16.msra.mxu0 0
    %1338 = vmatpush.bf16.msra.mxu0 0
    %1339 = vmatpush.bf16.msra.mxu0 0
    %1340 = vmatpush.bf16.msra.mxu0 %v1310
    %1341 = vmatpush.bf16.msra.mxu0 %v1308
    %1342 = vmatpush.bf16.msra.mxu0 %v1306
    %1343 = vmatpush.bf16.msra.mxu0 %v1304
    %1344 = vmatmul.bf16.gmra.mxu0 %v1320
    %v1345 = vpop.f32.mrf.mxu0
    %v1346 = vadd.f32 %v1276, %v1345
    %v1347 = vpop.f32.mrf.mxu0
    %v1348 = vadd.f32 %v1276, %v1347
    %1349 = vdwg.mxu0
    %v1350 = vmul.f32 %v1332, 0.17677669
    %v1351 = vmul.f32 %v1334, 0.17677669
    %v1353 = vrot.slane %v344, 4
    %1355 = vrot.lane.b32.xlu0 %v344, 64
    %v1356 = vpop.permute.xlu0 %1355
    %v1357 = vrot.slane %v1356, 4
    %v1360 = vrot.slane %v1332, 4
    %1361 = vrot.lane.b32.xlu0 %v1360, 64
    %v1362 = vpop.permute.xlu0 %1361
    %v1364 = vsel %vm504, %v1353, %v1362
    %v1366 = vrot.slane %v1346, 4
    %v1368 = vsel %vm504, %v1357, %v1366
    %v1369 = vpack.c.bf16 %v1350, %v1350
    %v1370 = vpack.c.bf16 %v1362, %v1364
    %v1372 = vsel %vm514, %v1369, 0
    %v1375 = vsel %vm514, %v1370, 0
    %1377 = vmatpush.bf16.xpose.msra.mxu0 0
    %1378 = vmatpush.bf16.xpose.msra.mxu0 0
    %1379 = vmatpush.bf16.xpose.msra.mxu0 0
    %1380 = vmatpush.bf16.xpose.msra.mxu0 0
    %1381 = vmatpush.bf16.xpose.msra.mxu0 0
    %1382 = vmatpush.bf16.xpose.msra.mxu0 0
    %1383 = vmatpush.bf16.xpose.msra.mxu0 0
    %1384 = vmatpush.bf16.xpose.msra.mxu0 %v1375
    %1385 = vmatmul.bf16.gmra.mxu0 %v1372
    %v1386 = vpop.f32.mrf.mxu0
    %v1387 = vadd.f32 %v498, %v1386
    %v1388 = vpop.f32.mrf.mxu0
    %1389 = vdwg.mxu0
    %v1390 = vsel %vm534, %v1387, -inf
    %1391 = vmax.xlane.f32.xlu0 %v1390
    %v1392 = vpop.xlane.xlu0 %1391
    %v1393 = vsub.f32 %v1387, %v1392
    %v1394 = vmul.f32 %v1393, 1.442695
    %v1395 = vpow.pop %v1394
    %v1396 = vsel %vm534, %v1395, 0.0
    %1397 = vadd.xlane.f32.xlu0 %v1396
    %v1398 = vpop.xlane.xlu0 %1397
    %v1399 = vrcp.pop %v1398
    %v1400 = vmul.f32 %v1398, %v1399
    %v1401 = vsub.f32 1.0, %v1400
    %v1402 = vmul.f32 %v1399, %v1401
    %v1403 = vadd.f32 %v1399, %v1402
    %vm1404 = vweird.f32 %v1398
    %vm1405 = vweird.f32 %v1399
    %vm1406 = vmor %vm1404, %vm1405
    %v1407 = vsel %vm1406, %v1399, %v1403
    %v1408 = vand.u32 2147483647, %v1398
    %vm1409 = vcmp.eq.f32.partialorder %v1408, 8.507059e+37
    %v1410 = vand.u32 %v1398, 2147483648
    %v1411 = vor.u32 1.1754944e-38, %v1410
    %v1412 = vsel %vm1409, %v1411, %v1407
    %v1413 = vmul.f32 %v1395, %v1412
    %v1414 = vpack.c.bf16 %v1413, %v1413
    %v1415 = vpack.c.bf16 %v1366, %v1368
    %v1417 = vsel %vm534, %v1414, 0
    %v1420 = vsel %vm567, %v1415, 0
    %1422 = vmatpush.bf16.msra.mxu0 0
    %1423 = vmatpush.bf16.msra.mxu0 0
    %1424 = vmatpush.bf16.msra.mxu0 0
    %1425 = vmatpush.bf16.msra.mxu0 0
    %1426 = vmatpush.bf16.msra.mxu0 0
    %1427 = vmatpush.bf16.msra.mxu0 0
    %1428 = vmatpush.bf16.msra.mxu0 0
    %1429 = vmatpush.bf16.msra.mxu0 %v1420
    %1430 = vmatmul.bf16.gmra.mxu0 %v1417
    %v1431 = vpop.f32.mrf.mxu0
    %v1432 = vadd.f32 0.0, %v1431
    %v1433 = vpop.f32.mrf.mxu0
    %1434 = vdwg.mxu0
    %1435 = vrot.lane.b32.xlu0 %v344, 96
    %v1436 = vpop.permute.xlu0 %1435
    %v1437 = vrot.slane %v1436, 4
    %1439 = vrot.lane.b32.xlu0 %v344, 32
    %v1440 = vpop.permute.xlu0 %1439
    %v1441 = vrot.slane %v1440, 4
    %1443 = vrot.lane.b32.xlu0 %v1360, 32
    %v1444 = vpop.permute.xlu0 %1443
    %v1446 = vsel %vm504, %v1437, %v1444
    %1447 = vrot.lane.b32.xlu0 %v1366, 96
    %v1448 = vpop.permute.xlu0 %1447
    %v1450 = vsel %vm504, %v1441, %v1448
    %v1451 = vpack.c.bf16 %v1444, %v1446
    %1453 = vrot.lane.b32.xlu0 %v1369, 96
    %v1454 = vpop.permute.xlu0 %1453
    %v1456 = vsel %vm514, %v1454, 0
    %v1459 = vsel %vm514, %v1451, 0
    %1461 = vmatpush.bf16.xpose.msra.mxu0 0
    %1462 = vmatpush.bf16.xpose.msra.mxu0 0
    %1463 = vmatpush.bf16.xpose.msra.mxu0 0
    %1464 = vmatpush.bf16.xpose.msra.mxu0 0
    %1465 = vmatpush.bf16.xpose.msra.mxu0 0
    %1466 = vmatpush.bf16.xpose.msra.mxu0 0
    %1467 = vmatpush.bf16.xpose.msra.mxu0 0
    %1468 = vmatpush.bf16.xpose.msra.mxu0 %v1459
    %1469 = vmatmul.bf16.gmra.mxu0 %v1456
    %v1470 = vpop.f32.mrf.mxu0
    %v1471 = vadd.f32 %v498, %v1470
    %v1472 = vpop.f32.mrf.mxu0
    %1473 = vdwg.mxu0
    %v1474 = vsel %vm534, %v1471, -inf
    %1475 = vmax.xlane.f32.xlu0 %v1474
    %v1476 = vpop.xlane.xlu0 %1475
    %v1477 = vsub.f32 %v1471, %v1476
    %v1478 = vmul.f32 %v1477, 1.442695
    %v1479 = vpow.pop %v1478
    %v1480 = vsel %vm534, %v1479, 0.0
    %1481 = vadd.xlane.f32.xlu0 %v1480
    %v1482 = vpop.xlane.xlu0 %1481
    %v1483 = vrcp.pop %v1482
    %v1484 = vmul.f32 %v1482, %v1483
    %v1485 = vsub.f32 1.0, %v1484
    %v1486 = vmul.f32 %v1483, %v1485
    %v1487 = vadd.f32 %v1483, %v1486
    %vm1488 = vweird.f32 %v1482
    %vm1489 = vweird.f32 %v1483
    %vm1490 = vmor %vm1488, %vm1489
    %v1491 = vsel %vm1490, %v1483, %v1487
    %v1492 = vand.u32 2147483647, %v1482
    %vm1493 = vcmp.eq.f32.partialorder %v1492, 8.507059e+37
    %v1494 = vand.u32 %v1482, 2147483648
    %v1495 = vor.u32 1.1754944e-38, %v1494
    %v1496 = vsel %vm1493, %v1495, %v1491
    %v1497 = vmul.f32 %v1479, %v1496
    %v1498 = vpack.c.bf16 %v1497, %v1497
    %v1499 = vpack.c.bf16 %v1448, %v1450
    %v1501 = vsel %vm534, %v1498, 0
    %v1504 = vsel %vm567, %v1499, 0
    %1506 = vmatpush.bf16.msra.mxu0 0
    %1507 = vmatpush.bf16.msra.mxu0 0
    %1508 = vmatpush.bf16.msra.mxu0 0
    %1509 = vmatpush.bf16.msra.mxu0 0
    %1510 = vmatpush.bf16.msra.mxu0 0
    %1511 = vmatpush.bf16.msra.mxu0 0
    %1512 = vmatpush.bf16.msra.mxu0 0
    %1513 = vmatpush.bf16.msra.mxu0 %v1504
    %1514 = vmatmul.bf16.gmra.mxu0 %v1501
    %v1515 = vpop.f32.mrf.mxu0
    %v1516 = vadd.f32 0.0, %v1515
    %v1517 = vpop.f32.mrf.mxu0
    %1518 = vdwg.mxu0
    %1520 = vrot.lane.b32.xlu0 %v1516, 32
    %v1521 = vpop.permute.xlu0 %1520
    %v1523 = vsel %vm514, %v1432, %v1521
    %v1525 = vrot.slane %v345, 4
    %1527 = vrot.lane.b32.xlu0 %v345, 64
    %v1528 = vpop.permute.xlu0 %1527
    %v1529 = vrot.slane %v1528, 4
    %v1532 = vrot.slane %v1334, 4
    %1533 = vrot.lane.b32.xlu0 %v1532, 64
    %v1534 = vpop.permute.xlu0 %1533
    %v1536 = vsel %vm504, %v1525, %v1534
    %v1538 = vrot.slane %v1348, 4
    %v1540 = vsel %vm504, %v1529, %v1538
    %v1541 = vpack.c.bf16 %v1351, %v1351
    %v1542 = vpack.c.bf16 %v1534, %v1536
    %v1544 = vsel %vm514, %v1541, 0
    %v1547 = vsel %vm514, %v1542, 0
    %1549 = vmatpush.bf16.xpose.msra.mxu0 0
    %1550 = vmatpush.bf16.xpose.msra.mxu0 0
    %1551 = vmatpush.bf16.xpose.msra.mxu0 0
    %1552 = vmatpush.bf16.xpose.msra.mxu0 0
    %1553 = vmatpush.bf16.xpose.msra.mxu0 0
    %1554 = vmatpush.bf16.xpose.msra.mxu0 0
    %1555 = vmatpush.bf16.xpose.msra.mxu0 0
    %1556 = vmatpush.bf16.xpose.msra.mxu0 %v1547
    %1557 = vmatmul.bf16.gmra.mxu0 %v1544
    %v1558 = vpop.f32.mrf.mxu0
    %v1559 = vadd.f32 %v661, %v1558
    %v1560 = vpop.f32.mrf.mxu0
    %1561 = vdwg.mxu0
    %v1562 = vsel %vm534, %v1559, -inf
    %1563 = vmax.xlane.f32.xlu0 %v1562
    %v1564 = vpop.xlane.xlu0 %1563
    %v1565 = vsub.f32 %v1559, %v1564
    %v1566 = vmul.f32 %v1565, 1.442695
    %v1567 = vpow.pop %v1566
    %v1568 = vsel %vm534, %v1567, 0.0
    %1569 = vadd.xlane.f32.xlu0 %v1568
    %v1570 = vpop.xlane.xlu0 %1569
    %v1571 = vrcp.pop %v1570
    %v1572 = vmul.f32 %v1570, %v1571
    %v1573 = vsub.f32 1.0, %v1572
    %v1574 = vmul.f32 %v1571, %v1573
    %v1575 = vadd.f32 %v1571, %v1574
    %vm1576 = vweird.f32 %v1570
    %vm1577 = vweird.f32 %v1571
    %vm1578 = vmor %vm1576, %vm1577
    %v1579 = vsel %vm1578, %v1571, %v1575
    %v1580 = vand.u32 2147483647, %v1570
    %vm1581 = vcmp.eq.f32.partialorder %v1580, 8.507059e+37
    %v1582 = vand.u32 %v1570, 2147483648
    %v1583 = vor.u32 1.1754944e-38, %v1582
    %v1584 = vsel %vm1581, %v1583, %v1579
    %v1585 = vmul.f32 %v1567, %v1584
    %v1586 = vpack.c.bf16 %v1585, %v1585
    %v1587 = vpack.c.bf16 %v1538, %v1540
    %v1589 = vsel %vm534, %v1586, 0
    %v1592 = vsel %vm567, %v1587, 0
    %1594 = vmatpush.bf16.msra.mxu0 0
    %1595 = vmatpush.bf16.msra.mxu0 0
    %1596 = vmatpush.bf16.msra.mxu0 0
    %1597 = vmatpush.bf16.msra.mxu0 0
    %1598 = vmatpush.bf16.msra.mxu0 0
    %1599 = vmatpush.bf16.msra.mxu0 0
    %1600 = vmatpush.bf16.msra.mxu0 0
    %1601 = vmatpush.bf16.msra.mxu0 %v1592
    %1602 = vmatmul.bf16.gmra.mxu0 %v1589
    %v1603 = vpop.f32.mrf.mxu0
    %v1604 = vadd.f32 0.0, %v1603
    %v1605 = vpop.f32.mrf.mxu0
    %1606 = vdwg.mxu0
    %1607 = vrot.lane.b32.xlu0 %v345, 96
    %v1608 = vpop.permute.xlu0 %1607
    %v1609 = vrot.slane %v1608, 4
    %1611 = vrot.lane.b32.xlu0 %v345, 32
    %v1612 = vpop.permute.xlu0 %1611
    %v1613 = vrot.slane %v1612, 4
    %1615 = vrot.lane.b32.xlu0 %v1532, 32
    %v1616 = vpop.permute.xlu0 %1615
    %v1618 = vsel %vm504, %v1609, %v1616
    %1619 = vrot.lane.b32.xlu0 %v1538, 96
    %v1620 = vpop.permute.xlu0 %1619
    %v1622 = vsel %vm504, %v1613, %v1620
    %v1623 = vpack.c.bf16 %v1616, %v1618
    %1625 = vrot.lane.b32.xlu0 %v1541, 96
    %v1626 = vpop.permute.xlu0 %1625
    %v1628 = vsel %vm514, %v1626, 0
    %v1631 = vsel %vm514, %v1623, 0
    %1633 = vmatpush.bf16.xpose.msra.mxu0 0
    %1634 = vmatpush.bf16.xpose.msra.mxu0 0
    %1635 = vmatpush.bf16.xpose.msra.mxu0 0
    %1636 = vmatpush.bf16.xpose.msra.mxu0 0
    %1637 = vmatpush.bf16.xpose.msra.mxu0 0
    %1638 = vmatpush.bf16.xpose.msra.mxu0 0
    %1639 = vmatpush.bf16.xpose.msra.mxu0 0
    %1640 = vmatpush.bf16.xpose.msra.mxu0 %v1631
    %1641 = vmatmul.bf16.gmra.mxu0 %v1628
    %v1642 = vpop.f32.mrf.mxu0
    %v1643 = vadd.f32 %v661, %v1642
    %v1644 = vpop.f32.mrf.mxu0
    %1645 = vdwg.mxu0
    %v1646 = vsel %vm534, %v1643, -inf
    %1647 = vmax.xlane.f32.xlu0 %v1646
    %v1648 = vpop.xlane.xlu0 %1647
    %v1649 = vsub.f32 %v1643, %v1648
    %v1650 = vmul.f32 %v1649, 1.442695
    %v1651 = vpow.pop %v1650
    %v1652 = vsel %vm534, %v1651, 0.0
    %1653 = vadd.xlane.f32.xlu0 %v1652
    %v1654 = vpop.xlane.xlu0 %1653
    %v1655 = vrcp.pop %v1654
    %v1656 = vmul.f32 %v1654, %v1655
    %v1657 = vsub.f32 1.0, %v1656
    %v1658 = vmul.f32 %v1655, %v1657
    %v1659 = vadd.f32 %v1655, %v1658
    %vm1660 = vweird.f32 %v1654
    %vm1661 = vweird.f32 %v1655
    %vm1662 = vmor %vm1660, %vm1661
    %v1663 = vsel %vm1662, %v1655, %v1659
    %v1664 = vand.u32 2147483647, %v1654
    %vm1665 = vcmp.eq.f32.partialorder %v1664, 8.507059e+37
    %v1666 = vand.u32 %v1654, 2147483648
    %v1667 = vor.u32 1.1754944e-38, %v1666
    %v1668 = vsel %vm1665, %v1667, %v1663
    %v1669 = vmul.f32 %v1651, %v1668
    %v1670 = vpack.c.bf16 %v1669, %v1669
    %v1671 = vpack.c.bf16 %v1620, %v1622
    %v1673 = vsel %vm534, %v1670, 0
    %v1676 = vsel %vm567, %v1671, 0
    %1678 = vmatpush.bf16.msra.mxu0 0
    %1679 = vmatpush.bf16.msra.mxu0 0
    %1680 = vmatpush.bf16.msra.mxu0 0
    %1681 = vmatpush.bf16.msra.mxu0 0
    %1682 = vmatpush.bf16.msra.mxu0 0
    %1683 = vmatpush.bf16.msra.mxu0 0
    %1684 = vmatpush.bf16.msra.mxu0 0
    %1685 = vmatpush.bf16.msra.mxu0 %v1676
    %1686 = vmatmul.bf16.gmra.mxu0 %v1673
    %v1687 = vpop.f32.mrf.mxu0
    %v1688 = vadd.f32 0.0, %v1687
    %v1689 = vpop.f32.mrf.mxu0
    %1690 = vdwg.mxu0
    %1692 = vrot.lane.b32.xlu0 %v1688, 32
    %v1693 = vpop.permute.xlu0 %1692
    %v1695 = vsel %vm514, %v1604, %v1693
    %v1696 = vpack.c.bf16 %v1695, %v1523
    %s1697 = scalar_lea.vmem %s11, 32
    %v1698 = vld [vmem:[%s1697] sm:$0xf]
    %v1699 = vld [vmem:[%s1697 + $0x4] sm:$0xf]
    %v1700 = vld [vmem:[%s1697 + $0x8] sm:$0xf]
    %v1701 = vld [vmem:[%s1697 + $0xc] sm:$0xf]
    %v1702 = vld [vmem:[%s1697 + $0x10] sm:$0xf]
    %v1703 = vld [vmem:[%s1697 + $0x14] sm:$0xf]
    %v1704 = vld [vmem:[%s1697 + $0x18] sm:$0xf]
    %v1705 = vld [vmem:[%s1697 + $0x1c] sm:$0xf]
    %v1706 = vperm.slane %v1210, 0
    %v1715 = vunpack.c.l.b16 %v1698
    %v1716 = vunpack.c.l.b16 %v1699
    %v1717 = vunpack.c.l.b16 %v1700
    %v1718 = vunpack.c.l.b16 %v1701
    %v1719 = vunpack.c.l.b16 %v1702
    %v1720 = vunpack.c.l.b16 %v1703
    %v1721 = vunpack.c.l.b16 %v1704
    %v1722 = vunpack.c.l.b16 %v1705
    %v1723 = vpack.c.b16 %v1716, %v1715
    %v1724 = vpack.c.b16 %v1718, %v1717
    %v1725 = vpack.c.b16 %v1720, %v1719
    %v1726 = vpack.c.b16 %v1722, %v1721
    %v1732 = vsel %vm255, %v1696, 0
    %1734 = vmatpush.bf16.msra.mxu0 0
    %1735 = vmatpush.bf16.msra.mxu0 0
    %1736 = vmatpush.bf16.msra.mxu0 0
    %1737 = vmatpush.bf16.msra.mxu0 0
    %1738 = vmatpush.bf16.msra.mxu0 %v1726
    %1739 = vmatpush.bf16.msra.mxu0 %v1725
    %1740 = vmatpush.bf16.msra.mxu0 %v1724
    %1741 = vmatpush.bf16.msra.mxu0 %v1723
    %1742 = vmatmul.bf16.gmra.mxu0 %v1732
    %v1743 = vpop.f32.mrf.mxu0
    %v1744 = vadd.f32 %v1706, %v1743
    %v1745 = vpop.f32.mrf.mxu0
    %v1746 = vadd.f32 %v1706, %v1745
    %1747 = vdwg.mxu0
    %v1748 = vadd.f32 %v1203, %v1744
    %v1749 = vadd.f32 %v1204, %v1746
    %v1750 = vsel %vm255, %v1748, 0.0
    %1751 = vadd.xlane.f32.xlu0 %v1750
    %v1752 = vpop.xlane.xlu0 %1751
    %v1753 = vsel %vm255, %v1749, 0.0
    %1754 = vadd.xlane.f32.xlu0 %v1753
    %v1755 = vpop.xlane.xlu0 %1754
    %v1756 = vmul.f32 %v1752, %v364
    %v1757 = vmul.f32 %v1755, %v364
    %v1758 = vsub.f32 %v1748, %v1756
    %v1759 = vsub.f32 %v1749, %v1757
    %v1760 = vmul.f32 %v1758, %v1758
    %v1761 = vmul.f32 %v1759, %v1759
    %v1762 = vsel %vm255, %v1760, 0.0
    %1763 = vadd.xlane.f32.xlu0 %v1762
    %v1764 = vpop.xlane.xlu0 %1763
    %v1765 = vsel %vm255, %v1761, 0.0
    %1766 = vadd.xlane.f32.xlu0 %v1765
    %v1767 = vpop.xlane.xlu0 %1766
    %v1768 = vmul.f32 %v1764, %v364
    %v1769 = vmul.f32 %v1767, %v364
    %v1770 = vadd.f32 %v1768, 1e-05
    %v1771 = vadd.f32 %v1769, 1e-05
    %v1772 = vrsqrt.pop %v1770
    %v1773 = vmul.f32 %v1772, %v1770
    %v1774 = vmul.f32 %v1773, %v1772
    %v1775 = vmul.f32 0.5, %v1774
    %v1776 = vsub.f32 1.5, %v1775
    %v1777 = vmul.f32 %v1772, %v1776
    %vm1778 = vweird.f32 %v1770
    %vm1779 = vweird.f32 %v1772
    %vm1780 = vmor %vm1778, %vm1779
    %v1781 = vsel %vm1780, %v1772, %v1777
    %v1782 = vrsqrt.pop %v1771
    %v1783 = vmul.f32 %v1782, %v1771
    %v1784 = vmul.f32 %v1783, %v1782
    %v1785 = vmul.f32 0.5, %v1784
    %v1786 = vsub.f32 1.5, %v1785
    %v1787 = vmul.f32 %v1782, %v1786
    %vm1788 = vweird.f32 %v1771
    %vm1789 = vweird.f32 %v1782
    %vm1790 = vmor %vm1788, %vm1789
    %v1791 = vsel %vm1790, %v1782, %v1787
    %v1792 = vmul.f32 %v1758, %v1781
    %v1793 = vmul.f32 %v1759, %v1791
    %v1794 = vperm.slane %v1208, 0
    %v1795 = vmul.f32 %v1792, %v1794
    %v1796 = vmul.f32 %v1793, %v1794
    %v1797 = vperm.slane %v1209, 0
    %v1798 = vadd.f32 %v1795, %v1797
    %v1799 = vadd.f32 %v1796, %v1797
    %v1800 = vpack.c.bf16 %v1799, %v1798
    %s1801 = scalar_lea.vmem [#allocation14], 64
    %v1802 = vld [vmem:[%s1801] sm:$0xff]
    %v1803 = vld [vmem:[%s1801 + $0x8] sm:$0xff]
    %v1804 = vld [vmem:[%s1801 + $0x10] sm:$0xff]
    %v1805 = vld [vmem:[%s1801 + $0x18] sm:$0xff]
    %v1806 = vld [vmem:[%s1801 + $0x20] sm:$0xff]
    %v1807 = vld [vmem:[%s1801 + $0x28] sm:$0xff]
    %v1808 = vld [vmem:[%s1801 + $0x30] sm:$0xff]
    %v1809 = vld [vmem:[%s1801 + $0x38] sm:$0xff]
    %s1810 = scalar_lea.vmem %s9, 2
    %v1811 = vld [vmem:[%s1810] sm:$0x3]
    %v1813 = vperm.slane %v1811, 0
    %v1814 = vperm.slane %v1811, 1
    %v1825 = vunpack.c.l.b16 %v1802
    %v1826 = vunpack.c.h.b16 %v1802
    %v1827 = vunpack.c.l.b16 %v1803
    %v1828 = vunpack.c.h.b16 %v1803
    %v1829 = vunpack.c.l.b16 %v1804
    %v1830 = vunpack.c.h.b16 %v1804
    %v1831 = vunpack.c.l.b16 %v1805
    %v1832 = vunpack.c.h.b16 %v1805
    %v1833 = vunpack.c.l.b16 %v1806
    %v1834 = vunpack.c.h.b16 %v1806
    %v1835 = vunpack.c.l.b16 %v1807
    %v1836 = vunpack.c.h.b16 %v1807
    %v1837 = vunpack.c.l.b16 %v1808
    %v1838 = vunpack.c.h.b16 %v1808
    %v1839 = vunpack.c.l.b16 %v1809
    %v1840 = vunpack.c.h.b16 %v1809
    %v1841 = vpack.c.b16 %v1827, %v1825
    %v1842 = vpack.c.b16 %v1828, %v1826
    %v1843 = vpack.c.b16 %v1831, %v1829
    %v1844 = vpack.c.b16 %v1832, %v1830
    %v1845 = vpack.c.b16 %v1835, %v1833
    %v1846 = vpack.c.b16 %v1836, %v1834
    %v1847 = vpack.c.b16 %v1839, %v1837
    %v1848 = vpack.c.b16 %v1840, %v1838
    %v1858 = vsel %vm255, %v1800, 0
    %1860 = vmatpush.bf16.msra.mxu0 0
    %1861 = vmatpush.bf16.msra.mxu0 0
    %1862 = vmatpush.bf16.msra.mxu0 0
    %1863 = vmatpush.bf16.msra.mxu0 0
    %1864 = vmatpush.bf16.msra.mxu0 %v1847
    %1865 = vmatpush.bf16.msra.mxu0 %v1845
    %1866 = vmatpush.bf16.msra.mxu0 %v1843
    %1867 = vmatpush.bf16.msra.mxu0 %v1841
    %1868 = vmatmul.bf16.gmra.mxu0 %v1858
    %v1869 = vpop.f32.mrf.mxu0
    %v1870 = vadd.f32 %v1813, %v1869
    %v1871 = vpop.f32.mrf.mxu0
    %v1872 = vadd.f32 %v1813, %v1871
    %1873 = vdwg.mxu0
    %1874 = vmatpush.bf16.msra.mxu0 0
    %1875 = vmatpush.bf16.msra.mxu0 0
    %1876 = vmatpush.bf16.msra.mxu0 0
    %1877 = vmatpush.bf16.msra.mxu0 0
    %1878 = vmatpush.bf16.msra.mxu0 %v1848
    %1879 = vmatpush.bf16.msra.mxu0 %v1846
    %1880 = vmatpush.bf16.msra.mxu0 %v1844
    %1881 = vmatpush.bf16.msra.mxu0 %v1842
    %1882 = vmatmul.bf16.gmra.mxu0 %v1858
    %v1883 = vpop.f32.mrf.mxu0
    %v1884 = vadd.f32 %v1814, %v1883
    %v1885 = vpop.f32.mrf.mxu0
    %v1886 = vadd.f32 %v1814, %v1885
    %1887 = vdwg.mxu0
    %v1888 = vmul.f32 %v1870, 0.5
    %v1889 = vmul.f32 %v1884, 0.5
    %v1890 = vmul.f32 %v1872, 0.5
    %v1891 = vmul.f32 %v1886, 0.5
    %v1892 = vmul.f32 %v1870, 0.044715
    %v1893 = vmul.f32 %v1884, 0.044715
    %v1894 = vmul.f32 %v1872, 0.044715
    %v1895 = vmul.f32 %v1886, 0.044715
    %v1896 = vmul.f32 %v1892, %v1870
    %v1897 = vmul.f32 %v1893, %v1884
    %v1898 = vmul.f32 %v1894, %v1872
    %v1899 = vmul.f32 %v1895, %v1886
    %v1900 = vmul.f32 %v1896, %v1870
    %v1901 = vmul.f32 %v1897, %v1884
    %v1902 = vmul.f32 %v1898, %v1872
    %v1903 = vmul.f32 %v1899, %v1886
    %v1904 = vadd.f32 %v1870, %v1900
    %v1905 = vadd.f32 %v1884, %v1901
    %v1906 = vadd.f32 %v1872, %v1902
    %v1907 = vadd.f32 %v1886, %v1903
    %v1908 = vmul.f32 %v1904, 0.7978846
    %v1909 = vmul.f32 %v1905, 0.7978846
    %v1910 = vmul.f32 %v1906, 0.7978846
    %v1911 = vmul.f32 %v1907, 0.7978846
    %v1912 = vtanh.pop %v1908
    %v1913 = vtanh.pop %v1909
    %v1914 = vtanh.pop %v1910
    %v1915 = vtanh.pop %v1911
    %v1916 = vadd.f32 %v1912, 1.0
    %v1917 = vadd.f32 %v1913, 1.0
    %v1918 = vadd.f32 %v1914, 1.0
    %v1919 = vadd.f32 %v1915, 1.0
    %v1920 = vmul.f32 %v1888, %v1916
    %v1921 = vmul.f32 %v1889, %v1917
    %v1922 = vmul.f32 %v1890, %v1918
    %v1923 = vmul.f32 %v1891, %v1919
    %v1924 = vpack.c.bf16 %v1922, %v1920
    %v1925 = vpack.c.bf16 %v1923, %v1921
    %s1926 = scalar_lea.vmem %s13, 128
    %v1927 = vld [vmem:[%s1926] sm:$0xf]
    %v1928 = vld [vmem:[%s1926 + $0x4] sm:$0xf]
    %v1929 = vld [vmem:[%s1926 + $0x8] sm:$0xf]
    %v1930 = vld [vmem:[%s1926 + $0xc] sm:$0xf]
    %v1931 = vld [vmem:[%s1926 + $0x10] sm:$0xf]
    %v1932 = vld [vmem:[%s1926 + $0x14] sm:$0xf]
    %v1933 = vld [vmem:[%s1926 + $0x18] sm:$0xf]
    %v1934 = vld [vmem:[%s1926 + $0x1c] sm:$0xf]
    %v1935 = vld [vmem:[%s1926 + $0x20] sm:$0xf]
    %v1936 = vld [vmem:[%s1926 + $0x24] sm:$0xf]
    %v1937 = vld [vmem:[%s1926 + $0x28] sm:$0xf]
    %v1938 = vld [vmem:[%s1926 + $0x2c] sm:$0xf]
    %v1939 = vld [vmem:[%s1926 + $0x30] sm:$0xf]
    %v1940 = vld [vmem:[%s1926 + $0x34] sm:$0xf]
    %v1941 = vld [vmem:[%s1926 + $0x38] sm:$0xf]
    %v1942 = vld [vmem:[%s1926 + $0x3c] sm:$0xf]
    %v1943 = vld [vmem:[%s1926 + $0x40] sm:$0xf]
    %v1944 = vld [vmem:[%s1926 + $0x44] sm:$0xf]
    %v1945 = vld [vmem:[%s1926 + $0x48] sm:$0xf]
    %v1946 = vld [vmem:[%s1926 + $0x4c] sm:$0xf]
    %v1947 = vld [vmem:[%s1926 + $0x50] sm:$0xf]
    %v1948 = vld [vmem:[%s1926 + $0x54] sm:$0xf]
    %v1949 = vld [vmem:[%s1926 + $0x58] sm:$0xf]
    %v1950 = vld [vmem:[%s1926 + $0x5c] sm:$0xf]
    %v1951 = vld [vmem:[%s1926 + $0x60] sm:$0xf]
    %v1952 = vld [vmem:[%s1926 + $0x64] sm:$0xf]
    %v1953 = vld [vmem:[%s1926 + $0x68] sm:$0xf]
    %v1954 = vld [vmem:[%s1926 + $0x6c] sm:$0xf]
    %v1955 = vld [vmem:[%s1926 + $0x70] sm:$0xf]
    %v1956 = vld [vmem:[%s1926 + $0x74] sm:$0xf]
    %v1957 = vld [vmem:[%s1926 + $0x78] sm:$0xf]
    %v1958 = vld [vmem:[%s1926 + $0x7c] sm:$0xf]
    %v1959 = vperm.slane %v1211, 0
    %v1992 = vunpack.c.l.b16 %v1927
    %v1993 = vunpack.c.l.b16 %v1928
    %v1994 = vunpack.c.l.b16 %v1929
    %v1995 = vunpack.c.l.b16 %v1930
    %v1996 = vunpack.c.l.b16 %v1931
    %v1997 = vunpack.c.l.b16 %v1932
    %v1998 = vunpack.c.l.b16 %v1933
    %v1999 = vunpack.c.l.b16 %v1934
    %v2000 = vunpack.c.l.b16 %v1935
    %v2001 = vunpack.c.l.b16 %v1936
    %v2002 = vunpack.c.l.b16 %v1937
    %v2003 = vunpack.c.l.b16 %v1938
    %v2004 = vunpack.c.l.b16 %v1939
    %v2005 = vunpack.c.l.b16 %v1940
    %v2006 = vunpack.c.l.b16 %v1941
    %v2007 = vunpack.c.l.b16 %v1942
    %v2008 = vunpack.c.l.b16 %v1943
    %v2009 = vunpack.c.l.b16 %v1944
    %v2010 = vunpack.c.l.b16 %v1945
    %v2011 = vunpack.c.l.b16 %v1946
    %v2012 = vunpack.c.l.b16 %v1947
    %v2013 = vunpack.c.l.b16 %v1948
    %v2014 = vunpack.c.l.b16 %v1949
    %v2015 = vunpack.c.l.b16 %v1950
    %v2016 = vunpack.c.l.b16 %v1951
    %v2017 = vunpack.c.l.b16 %v1952
    %v2018 = vunpack.c.l.b16 %v1953
    %v2019 = vunpack.c.l.b16 %v1954
    %v2020 = vunpack.c.l.b16 %v1955
    %v2021 = vunpack.c.l.b16 %v1956
    %v2022 = vunpack.c.l.b16 %v1957
    %v2023 = vunpack.c.l.b16 %v1958
    %v2024 = vpack.c.b16 %v1993, %v1992
    %v2025 = vpack.c.b16 %v1995, %v1994
    %v2026 = vpack.c.b16 %v1997, %v1996
    %v2027 = vpack.c.b16 %v1999, %v1998
    %v2028 = vpack.c.b16 %v2001, %v2000
    %v2029 = vpack.c.b16 %v2003, %v2002
    %v2030 = vpack.c.b16 %v2005, %v2004
    %v2031 = vpack.c.b16 %v2007, %v2006
    %v2032 = vpack.c.b16 %v2009, %v2008
    %v2033 = vpack.c.b16 %v2011, %v2010
    %v2034 = vpack.c.b16 %v2013, %v2012
    %v2035 = vpack.c.b16 %v2015, %v2014
    %v2036 = vpack.c.b16 %v2017, %v2016
    %v2037 = vpack.c.b16 %v2019, %v2018
    %v2038 = vpack.c.b16 %v2021, %v2020
    %v2039 = vpack.c.b16 %v2023, %v2022
    %2056 = vmatpush.bf16.msra.mxu0 %v2031
    %2057 = vmatpush.bf16.msra.mxu0 %v2030
    %2058 = vmatpush.bf16.msra.mxu0 %v2029
    %2059 = vmatpush.bf16.msra.mxu0 %v2028
    %2060 = vmatpush.bf16.msra.mxu0 %v2027
    %2061 = vmatpush.bf16.msra.mxu0 %v2026
    %2062 = vmatpush.bf16.msra.mxu0 %v2025
    %2063 = vmatpush.bf16.msra.mxu0 %v2024
    %2064 = vmatmul.bf16.gmra.mxu0 %v1924
    %v2065 = vpop.f32.mrf.mxu0
    %v2066 = vadd.f32 %v1959, %v2065
    %v2067 = vpop.f32.mrf.mxu0
    %v2068 = vadd.f32 %v1959, %v2067
    %2069 = vdwg.mxu0
    %2070 = vmatpush.bf16.msra.mxu0 %v2039
    %2071 = vmatpush.bf16.msra.mxu0 %v2038
    %2072 = vmatpush.bf16.msra.mxu0 %v2037
    %2073 = vmatpush.bf16.msra.mxu0 %v2036
    %2074 = vmatpush.bf16.msra.mxu0 %v2035
    %2075 = vmatpush.bf16.msra.mxu0 %v2034
    %2076 = vmatpush.bf16.msra.mxu0 %v2033
    %2077 = vmatpush.bf16.msra.mxu0 %v2032
    %2078 = vmatmul.bf16.gmra.mxu0 %v1925
    %v2079 = vpop.f32.mrf.mxu0
    %v2080 = vadd.f32 %v2066, %v2079
    %v2081 = vpop.f32.mrf.mxu0
    %v2082 = vadd.f32 %v2068, %v2081
    %2083 = vdwg.mxu0
    %v2084 = vadd.f32 %v1748, %v2080
    %v2085 = vadd.f32 %v1749, %v2082
    %v2086 = vld [vmem:[#allocation10] sm:$0x1]
    %v2087 = vld [vmem:[#allocation10 + $0x1] sm:$0x1]
    %v2088 = vsel %vm255, %v2084, 0.0
    %2089 = vadd.xlane.f32.xlu0 %v2088
    %v2090 = vpop.xlane.xlu0 %2089
    %v2091 = vsel %vm255, %v2085, 0.0
    %2092 = vadd.xlane.f32.xlu0 %v2091
    %v2093 = vpop.xlane.xlu0 %2092
    %v2094 = vmul.f32 %v2090, %v364
    %v2095 = vmul.f32 %v2093, %v364
    %v2096 = vsub.f32 %v2084, %v2094
    %v2097 = vsub.f32 %v2085, %v2095
    %v2098 = vmul.f32 %v2096, %v2096
    %v2099 = vmul.f32 %v2097, %v2097
    %v2100 = vsel %vm255, %v2098, 0.0
    %2101 = vadd.xlane.f32.xlu0 %v2100
    %v2102 = vpop.xlane.xlu0 %2101
    %v2103 = vsel %vm255, %v2099, 0.0
    %2104 = vadd.xlane.f32.xlu0 %v2103
    %v2105 = vpop.xlane.xlu0 %2104
    %v2106 = vmul.f32 %v2102, %v364
    %v2107 = vmul.f32 %v2105, %v364
    %v2108 = vadd.f32 %v2106, 1e-05
    %v2109 = vadd.f32 %v2107, 1e-05
    %v2110 = vrsqrt.pop %v2108
    %v2111 = vmul.f32 %v2110, %v2108
    %v2112 = vmul.f32 %v2111, %v2110
    %v2113 = vmul.f32 0.5, %v2112
    %v2114 = vsub.f32 1.5, %v2113
    %v2115 = vmul.f32 %v2110, %v2114
    %vm2116 = vweird.f32 %v2108
    %vm2117 = vweird.f32 %v2110
    %vm2118 = vmor %vm2116, %vm2117
    %v2119 = vsel %vm2118, %v2110, %v2115
    %v2120 = vrsqrt.pop %v2109
    %v2121 = vmul.f32 %v2120, %v2109
    %v2122 = vmul.f32 %v2121, %v2120
    %v2123 = vmul.f32 0.5, %v2122
    %v2124 = vsub.f32 1.5, %v2123
    %v2125 = vmul.f32 %v2120, %v2124
    %vm2126 = vweird.f32 %v2109
    %vm2127 = vweird.f32 %v2120
    %vm2128 = vmor %vm2126, %vm2127
    %v2129 = vsel %vm2128, %v2120, %v2125
    %v2130 = vmul.f32 %v2096, %v2119
    %v2131 = vmul.f32 %v2097, %v2129
    %v2132 = vperm.slane %v2086, 0
    %v2133 = vmul.f32 %v2130, %v2132
    %v2134 = vmul.f32 %v2131, %v2132
    %v2135 = vperm.slane %v2087, 0
    %v2136 = vadd.f32 %v2133, %v2135
    %v2137 = vadd.f32 %v2134, %v2135
    %v2138 = vpack.c.bf16 %v2137, %v2136
    %v2139 = vld [vmem:[#allocation8] sm:$0xf]
    %v2140 = vld [vmem:[#allocation8 + $0x4] sm:$0xf]
    %v2141 = vld [vmem:[#allocation8 + $0x8] sm:$0xf]
    %v2142 = vld [vmem:[#allocation8 + $0xc] sm:$0xf]
    %v2143 = vld [vmem:[#allocation8 + $0x10] sm:$0xf]
    %v2144 = vld [vmem:[#allocation8 + $0x14] sm:$0xf]
    %v2145 = vld [vmem:[#allocation8 + $0x18] sm:$0xf]
    %v2146 = vld [vmem:[#allocation8 + $0x1c] sm:$0xf]
    %v2155 = vunpack.c.l.b16 %v2139
    %v2156 = vunpack.c.l.b16 %v2140
    %v2157 = vunpack.c.l.b16 %v2141
    %v2158 = vunpack.c.l.b16 %v2142
    %v2159 = vunpack.c.l.b16 %v2143
    %v2160 = vunpack.c.l.b16 %v2144
    %v2161 = vunpack.c.l.b16 %v2145
    %v2162 = vunpack.c.l.b16 %v2146
    %v2163 = vpack.c.b16 %v2156, %v2155
    %v2164 = vpack.c.b16 %v2158, %v2157
    %v2165 = vpack.c.b16 %v2160, %v2159
    %v2166 = vpack.c.b16 %v2162, %v2161
    %v2172 = vsel %vm255, %v2138, 0
    %2174 = vmatpush.bf16.msra.mxu0 0
    %2175 = vmatpush.bf16.msra.mxu0 0
    %2176 = vmatpush.bf16.msra.mxu0 0
    %2177 = vmatpush.bf16.msra.mxu0 0
    %2178 = vmatpush.bf16.msra.mxu0 %v2166
    %2179 = vmatpush.bf16.msra.mxu0 %v2165
    %2180 = vmatpush.bf16.msra.mxu0 %v2164
    %2181 = vmatpush.bf16.msra.mxu0 %v2163
    %2182 = vmatmul.bf16.gmra.mxu0 %v2172
    %v2183 = vpop.f32.mrf.mxu0
    %v2184 = vadd.f32 0.0, %v2183
    %v2185 = vpop.f32.mrf.mxu0
    %v2186 = vadd.f32 0.0, %v2185
    %2187 = vdwg.mxu0
    %2188 = vst [vmem:[#allocation16] sm:$0xff] %v2184
    %2189 = vst [vmem:[#allocation16 + $0x8] sm:$0xff] %v2186
    %2190 = vrot.lane.b32.xlu0 %v477, 64
    %v2191 = vpop.permute.xlu0 %2190
    %2192 = vrot.lane.b32.xlu0 %v479, 64
    %v2193 = vpop.permute.xlu0 %2192
    %2196 = vrot.lane.b32.xlu0 %v491, 64
    %v2197 = vpop.permute.xlu0 %2196
    %2198 = vrot.lane.b32.xlu0 %v493, 64
    %v2199 = vpop.permute.xlu0 %2198
    %2202 = vrot.lane.b32.xlu0 %v1332, 64
    %v2203 = vpop.permute.xlu0 %2202
    %2204 = vrot.lane.b32.xlu0 %v1334, 64
    %v2205 = vpop.permute.xlu0 %2204
    %2208 = vrot.lane.b32.xlu0 %v1346, 64
    %v2209 = vpop.permute.xlu0 %2208
    %2210 = vrot.lane.b32.xlu0 %v1348, 64
    %v2211 = vpop.permute.xlu0 %2210
    %v2214 = vsel %vm255, %v2191, %v2197
    %v2215 = vsel %vm255, %v2193, %v2199
    %v2216 = vsel %vm255, %v2203, %v2209
    %v2217 = vsel %vm255, %v2205, %v2211
    %2218 = vst [vmem:[#allocation1] ss:$2 sm:$0xff] %v344
    %v2219 = vld.sshfl [vmem:[#allocation1] sm:$0xff pattern:$0x75316420]
    %v2220 = vld.sshfl [vmem:[#allocation1 + $0x8] sm:$0xff pattern:$0x75316420]
    %s2221 = scalar_lea.vmem [#allocation1], 16
    %2222 = vst [vmem:[%s2221] ss:$2 sm:$0xff] %v345
    %v2223 = vld.sshfl [vmem:[#allocation1 + $0x10] sm:$0xff pattern:$0x75316420]
    %v2224 = vld.sshfl [vmem:[#allocation1 + $0x18] sm:$0xff pattern:$0x75316420]
    %v2233 = vrot.slane %v2214, 4
    %v2234 = vrot.slane %v2216, 4
    %v2235 = vrot.slane %v2215, 4
    %v2236 = vrot.slane %v2217, 4
    %v2241 = vsel %vm504, %v2219, %v2233
    %v2242 = vsel %vm504, %v2220, %v2234
    %v2243 = vsel %vm504, %v2223, %v2235
    %v2244 = vsel %vm504, %v2224, %v2236
    %2245 = vst [vmem:[%s16] sm:$0xff] %v2241
    %2246 = vst [vmem:[%s16 + $0x8] sm:$0xff] %v2242
    %2247 = vst [vmem:[%s16 + $0x10] sm:$0xf] %v2233
    %2248 = vst [vmem:[%s16 + $0x18] sm:$0xf] %v2234
    %2249 = vst [vmem:[%s16 + $0x20] sm:$0xff] %v2243
    %2250 = vst [vmem:[%s16 + $0x28] sm:$0xff] %v2244
    %2251 = vst [vmem:[%s16 + $0x30] sm:$0xf] %v2235
    %2252 = vst [vmem:[%s16 + $0x38] sm:$0xf] %v2236
    // Predicated region
    $region94: #{model_wrapper_forward.1} parent=1 // pred_check
      _
    $region95: #{model_wrapper_forward.1} parent=1 // pred_check_branch
      %2254 = sbr.rel (0) target = $region97
    $region96: #{model_wrapper_forward.1} parent=1 // pred_region
      %2256 = vsyncadd [#allocation4], 0
      %s2257 = sshll.u32 [#allocation16], 4
      %s2258 = int_to_ptr.vmem [resolvable:$true] %s2257
      %s2259 = sshll.u32 %s15, 4
      %s2260 = int_to_ptr.hbm [resolvable:$true] %s2259
      %2265 = dma.vmem_to_hbm [thread:$0]  %s2258, 256, %s2260, [#allocation4], 128, 128, 8
    $region97: #{model_wrapper_forward.1} parent=1 // pred_fallthru
      _
    // Predicated region
    $region98: #{model_wrapper_forward.1} parent=1 // pred_check
      _
    $region99: #{model_wrapper_forward.1} parent=1 // pred_check_branch
      %2267 = sbr.rel (0) target = $region101
    $region100: #{model_wrapper_forward.1} parent=1 // pred_region
      _
    $region101: #{model_wrapper_forward.1} parent=1 // pred_fallthru
      _
    // Predicated region
    $region102: #{model_wrapper_forward.1} parent=1 // pred_check
      _
    $region103: #{model_wrapper_forward.1} parent=1 // pred_check_branch
      %2269 = sbr.rel (0) target = $region105
    $region104: #{model_wrapper_forward.1} parent=1 // pred_region
      %2271 = dma.done [#allocation4], 256
    $region105: #{model_wrapper_forward.1} parent=1 // pred_fallthru
      _
    // Predicated region
    $region106: #{model_wrapper_forward.1} parent=1 // pred_check
      _
    $region107: #{model_wrapper_forward.1} parent=1 // pred_check_branch
      %2273 = sbr.rel (0) target = $region109
    $region108: #{model_wrapper_forward.1} parent=1 // pred_region
      _
    $region109: #{model_wrapper_forward.1} parent=1 // pred_fallthru
      _
    %2274 = vsyncpa [#allocation3], 1
    %2275 = vsyncpa [#allocation6], 1
    %2276 = vsyncpa [#allocation9], 1
    %2277 = vsyncpa [#allocation12], 1
    %2278 = vsyncpa [#allocation15], 1
    %2279 = vsyncpa [#allocation4], 1

</llo_original>
